<compile_context>
chip_gen: v7x
topology: tpu7x:2x2x1
jax: 0.10.0
libtpu: 0.0.40
codegen_flags: <defaults>
</compile_context>

<pallas_src>
import functools

import jax
import jax.numpy as jnp
from jax.experimental import pallas as pl
from jax.experimental.pallas import tpu as pltpu


def _encoder_lstm_kernel(num_layers, seq_len, hidden_size, *refs):
    """Whole encoder LSTM forward; everything resident in VMEM (no grid).

    Layer-major schedule: per layer, one batched input-projection matmul over
    all timesteps (M = T*B), then T serial steps of the small recurrent matmul
    plus gate math.
    """
    L, T, H = num_layers, seq_len, hidden_size

    x_ref, h0_ref, c0_ref = refs[0], refs[1], refs[2]            # x: (T*B, F)
    wih_refs = refs[3:3 + L]                                     # (in_dim, 4H) bf16
    whh_refs = refs[3 + L:3 + 2 * L]                             # (H, 4H) bf16
    b_refs = refs[3 + 2 * L:3 + 3 * L]                           # (1, 4H) fp32
    hn_ref, cn_ref = refs[3 + 3 * L], refs[3 + 3 * L + 1]        # (L, B, H)

    B = h0_ref.shape[1]

    # Layer-0 input for the batched projection (single tiny cast, done once).
    layer_in = x_ref[...].astype(jnp.bfloat16)                   # (T*B, F)

    for l in range(L):
        # Batched input projection for all T timesteps in one MXU pass, bias
        # added here -- both are off the serial recurrence.
        proj = (jnp.dot(layer_in, wih_refs[l][...],
                        preferred_element_type=jnp.float32)
                + b_refs[l][...])                                # (T*B, 4H) fp32

        h = h0_ref[l]                                            # (B, H) fp32
        c = c0_ref[l]
        h_bf = h.astype(jnp.bfloat16)

        outs = []
        # T = 8 -> full static unroll keeps the schedule visible to LLO.
        for t in range(T):
            # Recurrent matmul: RHS read from VMEM at the use site (not held in
            # vregs across the layer); the same weight is reused back-to-back
            # for all 8 steps so Mosaic can keep it MXU-stationary.
            # TODO(synk): drive the MXU explicitly (pltpu.matmul_push_rhs /
            # matmul_acc_lhs / matmul_pop) if the weight gets re-pushed per step.
            gates = (proj[t * B:(t + 1) * B, :]
                     + jnp.dot(h_bf, whh_refs[l][...],
                               preferred_element_type=jnp.float32))
            # Gate columns were permuted to [i, f, o, g] in the wrapper: one
            # contiguous sigmoid over 3H lanes, one tanh over H lanes.
            sig = jax.nn.sigmoid(gates[:, 0:3 * H])
            i_g = sig[:, 0 * H:1 * H]
            f_g = sig[:, 1 * H:2 * H]
            o_g = sig[:, 2 * H:3 * H]
            g_g = jnp.tanh(gates[:, 3 * H:4 * H])
            c = f_g * c + i_g * g_g
            h = o_g * jnp.tanh(c)
            h_bf = h.astype(jnp.bfloat16)                        # next-step LHS
            outs.append(h_bf)
        # TODO(synk): pack the B=2-row gate tiles sublane-dense before the
        # sigmoid/tanh if EUP occupancy ever matters at larger sizes.

        # Final hidden / cell state of this layer: lane-dense (H = 128) stores.
        hn_ref[l] = h
        cn_ref[l] = c

        # Input to the next layer's batched projection: (T*B, H) bf16.
        layer_in = jnp.concatenate(outs, axis=0)


def _permute_gates(a, H):
    """PyTorch gate column order [i, f, g, o] -> kernel order [i, f, o, g]."""
    return jnp.concatenate(
        [a[..., 0:2 * H], a[..., 3 * H:4 * H], a[..., 2 * H:3 * H]], axis=-1)


def _prepare_kernel_params(params, num_layers, hidden_size):
    """Per-layer bf16 wih / whh kept separate (so the input projection can be
    batched over all timesteps), gate columns permuted; biases stay fp32."""
    L, H = num_layers, hidden_size
    wih, whh, b = [], [], []
    for l in range(L):
        wih.append(_permute_gates(params["wih"][l], H).astype(jnp.bfloat16))
        whh.append(_permute_gates(params["whh"][l], H).astype(jnp.bfloat16))
        b.append(_permute_gates(params["b"][l], H).astype(jnp.float32))
    return wih, whh, b


def encoder_forward(x, params, h0, c0, *, num_layers, hidden_size):
    """x: (B, T, F) fp32; returns (hn, cn) each (num_layers, B, hidden)."""
    B, T, F = x.shape
    L, H = num_layers, hidden_size
    assert H % 128 == 0, (
        "hidden_size must be a multiple of 128 for lane-dense gate slicing/stores")
    wih, whh, b = _prepare_kernel_params(params, L, H)

    # Time-major, flattened to (T*B, F) so rows [t*B:(t+1)*B] are timestep t.
    x_2d = jnp.transpose(x, (1, 0, 2)).reshape(T * B, F)

    inputs = [x_2d, h0, c0] + wih + whh + b
    kernel = functools.partial(_encoder_lstm_kernel, L, T, H)
    vmem = lambda: pl.BlockSpec(memory_space=pltpu.MemorySpace.VMEM)

    # Total residency (weights + activations) is well under 1 MiB: fits VMEM on
    # v5e/v6e/v7x with no grid. Per review, do NOT add a grid / cross-core split
    # at this size -- per-step grid overhead and semaphore round-trips would
    # dominate this us-scale, latency-bound kernel.
    hn, cn = pl.pallas_call(
        kernel,
        out_shape=(jax.ShapeDtypeStruct((L, B, H), jnp.float32),
                   jax.ShapeDtypeStruct((L, B, H), jnp.float32)),
        in_specs=[vmem() for _ in inputs],
        out_specs=(vmem(), vmem()),
    )(*inputs)
    return hn, cn


def init_params(key, num_layers, hidden_size, n_features):
    """PyTorch-style LSTM params: per layer wih (in_dim, 4H), whh (H, 4H),
    folded bias (1, 4H); uniform(-1/sqrt(H), 1/sqrt(H)); gate order [i,f,g,o]."""
    H, F, L = hidden_size, n_features, num_layers
    bound = 1.0 / float(H) ** 0.5

    def u(k, shape):
        return jax.random.uniform(k, shape, jnp.float32, -bound, bound)

    params = {"wih": [], "whh": [], "b": []}
    keys = iter(jax.random.split(key, 3 * L))
    for l in range(L):
        in_dim = F if l == 0 else H
        params["wih"].append(u(next(keys), (in_dim, 4 * H)))
        params["whh"].append(u(next(keys), (H, 4 * H)))
        params["b"].append(u(next(keys), (1, 4 * H)))
    return params


def reference_forward(x, params, h0, c0, num_layers, hidden_size):
    """Pure-JAX reference (PyTorch gate order). Matches the kernel's numerics:
    bf16 matmul operands, fp32 accumulation and gate/state math."""
    L, H = num_layers, hidden_size
    B, T, F = x.shape

    def cell(x_t, h_prev, c_prev, wih, whh, bias):
        gates = (jnp.dot(x_t.astype(jnp.bfloat16), wih.astype(jnp.bfloat16),
                         preferred_element_type=jnp.float32)
                 + jnp.dot(h_prev.astype(jnp.bfloat16), whh.astype(jnp.bfloat16),
                           preferred_element_type=jnp.float32)
                 + bias)
        i = jax.nn.sigmoid(gates[:, 0 * H:1 * H])
        f = jax.nn.sigmoid(gates[:, 1 * H:2 * H])
        g = jnp.tanh(gates[:, 2 * H:3 * H])
        o = jax.nn.sigmoid(gates[:, 3 * H:4 * H])
        c_new = f * c_prev + i * g
        return o * jnp.tanh(c_new), c_new

    h = [h0[l] for l in range(L)]
    c = [c0[l] for l in range(L)]
    for t in range(T):
        inp = x[:, t, :]
        for l in range(L):
            h[l], c[l] = cell(inp, h[l], c[l], params["wih"][l],
                              params["whh"][l], params["b"][l])
            inp = h[l]
    return jnp.stack(h), jnp.stack(c)


if __name__ == "__main__":
    # Small shapes consistent with the module: batch=2, seq_len=8,
    # n_features=32, hidden_size=128, num_layers=2.
    L, H, F, B, T = 2, 128, 32, 2, 8

    key = jax.random.PRNGKey(0)
    k_x, k_p, k_h, k_c = jax.random.split(key, 4)
    x = jax.random.normal(k_x, (B, T, F), jnp.float32)
    params = init_params(k_p, L, H, F)
    # PyTorch Encoder.initHidden draws torch.randn every call; here it is a
    # deterministic normal draw with a fixed key, passed in as an input.
    h0 = jax.random.normal(k_h, (L, B, H), jnp.float32)
    c0 = jax.random.normal(k_c, (L, B, H), jnp.float32)

    hn, cn = encoder_forward(x, params, h0, c0, num_layers=L, hidden_size=H)
    hn, cn = jax.block_until_ready((hn, cn))

    hn_ref, cn_ref = reference_forward(x, params, h0, c0, L, H)
    assert hn.shape == (L, B, H) and cn.shape == (L, B, H)
    assert jnp.allclose(hn, hn_ref, atol=2e-3, rtol=2e-3), "hn mismatch vs reference"
    assert jnp.allclose(cn, cn_ref, atol=2e-3, rtol=2e-3), "cn mismatch vs reference"
    print("KERNEL_OK")
</pallas_src>

<mosaic_0001>
module attributes {stable_mosaic.version = 11 : i64} {
  func.func @_encoder_lstm_kernel(%arg0: memref<16x32xf32, #tpu.memory_space<vmem>>, %arg1: memref<2x2x128xf32, #tpu.memory_space<vmem>>, %arg2: memref<2x2x128xf32, #tpu.memory_space<vmem>>, %arg3: memref<32x512xbf16, #tpu.memory_space<vmem>>, %arg4: memref<128x512xbf16, #tpu.memory_space<vmem>>, %arg5: memref<128x512xbf16, #tpu.memory_space<vmem>>, %arg6: memref<128x512xbf16, #tpu.memory_space<vmem>>, %arg7: memref<1x512xf32, #tpu.memory_space<vmem>>, %arg8: memref<1x512xf32, #tpu.memory_space<vmem>>, %arg9: memref<2x2x128xf32, #tpu.memory_space<vmem>>, %arg10: memref<2x2x128xf32, #tpu.memory_space<vmem>>) attributes {dimension_semantics = [], scalar_prefetch = 0 : i64, scratch_operands = 0 : i64, tpu.core_type = #tpu.core_type<tc>} {
    %c0 = arith.constant 0 : index
    %c0_0 = arith.constant 0 : index
    %0 = vector.load %arg0[%c0, %c0_0] : memref<16x32xf32, #tpu.memory_space<vmem>>, vector<16x32xf32>
    %1 = arith.truncf %0 : vector<16x32xf32> to vector<16x32xbf16>
    %c0_1 = arith.constant 0 : index
    %c0_2 = arith.constant 0 : index
    %2 = vector.load %arg3[%c0_1, %c0_2] : memref<32x512xbf16, #tpu.memory_space<vmem>>, vector<32x512xbf16>
    %cst = arith.constant dense<0.000000e+00> : vector<16x512xf32>
    %3 = tpu.matmul %1, %2, %cst {dimension_numbers = #tpu.dot_dimension_numbers<[1], [0], [0], [1], [0, 0, 1, 1], [], []>} : vector<16x32xbf16>, vector<32x512xbf16>, vector<16x512xf32> -> vector<16x512xf32>
    %c0_3 = arith.constant 0 : index
    %c0_4 = arith.constant 0 : index
    %4 = vector.load %arg7[%c0_3, %c0_4] : memref<1x512xf32, #tpu.memory_space<vmem>>, vector<1x512xf32>
    %5 = vector.broadcast %4 : vector<1x512xf32> to vector<16x512xf32>
    %6 = arith.addf %3, %5 : vector<16x512xf32>
    %c0_5 = arith.constant 0 : index
    %c0_6 = arith.constant 0 : index
    %c0_7 = arith.constant 0 : index
    %7 = vector.load %arg1[%c0_5, %c0_6, %c0_7] : memref<2x2x128xf32, #tpu.memory_space<vmem>>, vector<1x2x128xf32>
    %8 = vector.shape_cast %7 : vector<1x2x128xf32> to vector<2x128xf32>
    %c0_8 = arith.constant 0 : index
    %c0_9 = arith.constant 0 : index
    %c0_10 = arith.constant 0 : index
    %9 = vector.load %arg2[%c0_8, %c0_9, %c0_10] : memref<2x2x128xf32, #tpu.memory_space<vmem>>, vector<1x2x128xf32>
    %10 = vector.shape_cast %9 : vector<1x2x128xf32> to vector<2x128xf32>
    %11 = arith.truncf %8 : vector<2x128xf32> to vector<2x128xbf16>
    %12 = vector.extract_strided_slice %6 {offsets = [0, 0], sizes = [2, 512], strides = [1, 1]} : vector<16x512xf32> to vector<2x512xf32>
    %c0_11 = arith.constant 0 : index
    %c0_12 = arith.constant 0 : index
    %13 = vector.load %arg5[%c0_11, %c0_12] : memref<128x512xbf16, #tpu.memory_space<vmem>>, vector<128x512xbf16>
    %cst_13 = arith.constant dense<0.000000e+00> : vector<2x512xf32>
    %14 = tpu.matmul %11, %13, %cst_13 {dimension_numbers = #tpu.dot_dimension_numbers<[1], [0], [0], [1], [0, 0, 1, 1], [], []>} : vector<2x128xbf16>, vector<128x512xbf16>, vector<2x512xf32> -> vector<2x512xf32>
    %15 = arith.addf %12, %14 : vector<2x512xf32>
    %16 = vector.extract_strided_slice %15 {offsets = [0, 0], sizes = [2, 384], strides = [1, 1]} : vector<2x512xf32> to vector<2x384xf32>
    %17 = arith.negf %16 : vector<2x384xf32>
    %18 = math.exp %17 : vector<2x384xf32>
    %cst_14 = arith.constant 1.000000e+00 : f32
    %19 = vector.broadcast %cst_14 : f32 to vector<2x384xf32>
    %20 = arith.addf %19, %18 : vector<2x384xf32>
    %21 = arith.divf %19, %20 : vector<2x384xf32>
    %22 = vector.extract_strided_slice %21 {offsets = [0, 0], sizes = [2, 128], strides = [1, 1]} : vector<2x384xf32> to vector<2x128xf32>
    %23 = vector.extract_strided_slice %21 {offsets = [0, 128], sizes = [2, 128], strides = [1, 1]} : vector<2x384xf32> to vector<2x128xf32>
    %24 = vector.extract_strided_slice %21 {offsets = [0, 256], sizes = [2, 128], strides = [1, 1]} : vector<2x384xf32> to vector<2x128xf32>
    %25 = vector.extract_strided_slice %15 {offsets = [0, 384], sizes = [2, 128], strides = [1, 1]} : vector<2x512xf32> to vector<2x128xf32>
    %26 = math.tanh %25 : vector<2x128xf32>
    %27 = arith.mulf %23, %10 : vector<2x128xf32>
    %28 = arith.mulf %22, %26 : vector<2x128xf32>
    %29 = arith.addf %27, %28 : vector<2x128xf32>
    %30 = math.tanh %29 : vector<2x128xf32>
    %31 = arith.mulf %24, %30 : vector<2x128xf32>
    %32 = arith.truncf %31 : vector<2x128xf32> to vector<2x128xbf16>
    %33 = vector.extract_strided_slice %6 {offsets = [2, 0], sizes = [2, 512], strides = [1, 1]} : vector<16x512xf32> to vector<2x512xf32>
    %c0_15 = arith.constant 0 : index
    %c0_16 = arith.constant 0 : index
    %34 = vector.load %arg5[%c0_15, %c0_16] : memref<128x512xbf16, #tpu.memory_space<vmem>>, vector<128x512xbf16>
    %cst_17 = arith.constant dense<0.000000e+00> : vector<2x512xf32>
    %35 = tpu.matmul %32, %34, %cst_17 {dimension_numbers = #tpu.dot_dimension_numbers<[1], [0], [0], [1], [0, 0, 1, 1], [], []>} : vector<2x128xbf16>, vector<128x512xbf16>, vector<2x512xf32> -> vector<2x512xf32>
    %36 = arith.addf %33, %35 : vector<2x512xf32>
    %37 = vector.extract_strided_slice %36 {offsets = [0, 0], sizes = [2, 384], strides = [1, 1]} : vector<2x512xf32> to vector<2x384xf32>
    %38 = arith.negf %37 : vector<2x384xf32>
    %39 = math.exp %38 : vector<2x384xf32>
    %cst_18 = arith.constant 1.000000e+00 : f32
    %40 = vector.broadcast %cst_18 : f32 to vector<2x384xf32>
    %41 = arith.addf %40, %39 : vector<2x384xf32>
    %42 = arith.divf %40, %41 : vector<2x384xf32>
    %43 = vector.extract_strided_slice %42 {offsets = [0, 0], sizes = [2, 128], strides = [1, 1]} : vector<2x384xf32> to vector<2x128xf32>
    %44 = vector.extract_strided_slice %42 {offsets = [0, 128], sizes = [2, 128], strides = [1, 1]} : vector<2x384xf32> to vector<2x128xf32>
    %45 = vector.extract_strided_slice %42 {offsets = [0, 256], sizes = [2, 128], strides = [1, 1]} : vector<2x384xf32> to vector<2x128xf32>
    %46 = vector.extract_strided_slice %36 {offsets = [0, 384], sizes = [2, 128], strides = [1, 1]} : vector<2x512xf32> to vector<2x128xf32>
    %47 = math.tanh %46 : vector<2x128xf32>
    %48 = arith.mulf %44, %29 : vector<2x128xf32>
    %49 = arith.mulf %43, %47 : vector<2x128xf32>
    %50 = arith.addf %48, %49 : vector<2x128xf32>
    %51 = math.tanh %50 : vector<2x128xf32>
    %52 = arith.mulf %45, %51 : vector<2x128xf32>
    %53 = arith.truncf %52 : vector<2x128xf32> to vector<2x128xbf16>
    %54 = vector.extract_strided_slice %6 {offsets = [4, 0], sizes = [2, 512], strides = [1, 1]} : vector<16x512xf32> to vector<2x512xf32>
    %c0_19 = arith.constant 0 : index
    %c0_20 = arith.constant 0 : index
    %55 = vector.load %arg5[%c0_19, %c0_20] : memref<128x512xbf16, #tpu.memory_space<vmem>>, vector<128x512xbf16>
    %cst_21 = arith.constant dense<0.000000e+00> : vector<2x512xf32>
    %56 = tpu.matmul %53, %55, %cst_21 {dimension_numbers = #tpu.dot_dimension_numbers<[1], [0], [0], [1], [0, 0, 1, 1], [], []>} : vector<2x128xbf16>, vector<128x512xbf16>, vector<2x512xf32> -> vector<2x512xf32>
    %57 = arith.addf %54, %56 : vector<2x512xf32>
    %58 = vector.extract_strided_slice %57 {offsets = [0, 0], sizes = [2, 384], strides = [1, 1]} : vector<2x512xf32> to vector<2x384xf32>
    %59 = arith.negf %58 : vector<2x384xf32>
    %60 = math.exp %59 : vector<2x384xf32>
    %cst_22 = arith.constant 1.000000e+00 : f32
    %61 = vector.broadcast %cst_22 : f32 to vector<2x384xf32>
    %62 = arith.addf %61, %60 : vector<2x384xf32>
    %63 = arith.divf %61, %62 : vector<2x384xf32>
    %64 = vector.extract_strided_slice %63 {offsets = [0, 0], sizes = [2, 128], strides = [1, 1]} : vector<2x384xf32> to vector<2x128xf32>
    %65 = vector.extract_strided_slice %63 {offsets = [0, 128], sizes = [2, 128], strides = [1, 1]} : vector<2x384xf32> to vector<2x128xf32>
    %66 = vector.extract_strided_slice %63 {offsets = [0, 256], sizes = [2, 128], strides = [1, 1]} : vector<2x384xf32> to vector<2x128xf32>
    %67 = vector.extract_strided_slice %57 {offsets = [0, 384], sizes = [2, 128], strides = [1, 1]} : vector<2x512xf32> to vector<2x128xf32>
    %68 = math.tanh %67 : vector<2x128xf32>
    %69 = arith.mulf %65, %50 : vector<2x128xf32>
    %70 = arith.mulf %64, %68 : vector<2x128xf32>
    %71 = arith.addf %69, %70 : vector<2x128xf32>
    %72 = math.tanh %71 : vector<2x128xf32>
    %73 = arith.mulf %66, %72 : vector<2x128xf32>
    %74 = arith.truncf %73 : vector<2x128xf32> to vector<2x128xbf16>
    %75 = vector.extract_strided_slice %6 {offsets = [6, 0], sizes = [2, 512], strides = [1, 1]} : vector<16x512xf32> to vector<2x512xf32>
    %c0_23 = arith.constant 0 : index
    %c0_24 = arith.constant 0 : index
    %76 = vector.load %arg5[%c0_23, %c0_24] : memref<128x512xbf16, #tpu.memory_space<vmem>>, vector<128x512xbf16>
    %cst_25 = arith.constant dense<0.000000e+00> : vector<2x512xf32>
    %77 = tpu.matmul %74, %76, %cst_25 {dimension_numbers = #tpu.dot_dimension_numbers<[1], [0], [0], [1], [0, 0, 1, 1], [], []>} : vector<2x128xbf16>, vector<128x512xbf16>, vector<2x512xf32> -> vector<2x512xf32>
    %78 = arith.addf %75, %77 : vector<2x512xf32>
    %79 = vector.extract_strided_slice %78 {offsets = [0, 0], sizes = [2, 384], strides = [1, 1]} : vector<2x512xf32> to vector<2x384xf32>
    %80 = arith.negf %79 : vector<2x384xf32>
    %81 = math.exp %80 : vector<2x384xf32>
    %cst_26 = arith.constant 1.000000e+00 : f32
    %82 = vector.broadcast %cst_26 : f32 to vector<2x384xf32>
    %83 = arith.addf %82, %81 : vector<2x384xf32>
    %84 = arith.divf %82, %83 : vector<2x384xf32>
    %85 = vector.extract_strided_slice %84 {offsets = [0, 0], sizes = [2, 128], strides = [1, 1]} : vector<2x384xf32> to vector<2x128xf32>
    %86 = vector.extract_strided_slice %84 {offsets = [0, 128], sizes = [2, 128], strides = [1, 1]} : vector<2x384xf32> to vector<2x128xf32>
    %87 = vector.extract_strided_slice %84 {offsets = [0, 256], sizes = [2, 128], strides = [1, 1]} : vector<2x384xf32> to vector<2x128xf32>
    %88 = vector.extract_strided_slice %78 {offsets = [0, 384], sizes = [2, 128], strides = [1, 1]} : vector<2x512xf32> to vector<2x128xf32>
    %89 = math.tanh %88 : vector<2x128xf32>
    %90 = arith.mulf %86, %71 : vector<2x128xf32>
    %91 = arith.mulf %85, %89 : vector<2x128xf32>
    %92 = arith.addf %90, %91 : vector<2x128xf32>
    %93 = math.tanh %92 : vector<2x128xf32>
    %94 = arith.mulf %87, %93 : vector<2x128xf32>
    %95 = arith.truncf %94 : vector<2x128xf32> to vector<2x128xbf16>
    %96 = vector.extract_strided_slice %6 {offsets = [8, 0], sizes = [2, 512], strides = [1, 1]} : vector<16x512xf32> to vector<2x512xf32>
    %c0_27 = arith.constant 0 : index
    %c0_28 = arith.constant 0 : index
    %97 = vector.load %arg5[%c0_27, %c0_28] : memref<128x512xbf16, #tpu.memory_space<vmem>>, vector<128x512xbf16>
    %cst_29 = arith.constant dense<0.000000e+00> : vector<2x512xf32>
    %98 = tpu.matmul %95, %97, %cst_29 {dimension_numbers = #tpu.dot_dimension_numbers<[1], [0], [0], [1], [0, 0, 1, 1], [], []>} : vector<2x128xbf16>, vector<128x512xbf16>, vector<2x512xf32> -> vector<2x512xf32>
    %99 = arith.addf %96, %98 : vector<2x512xf32>
    %100 = vector.extract_strided_slice %99 {offsets = [0, 0], sizes = [2, 384], strides = [1, 1]} : vector<2x512xf32> to vector<2x384xf32>
    %101 = arith.negf %100 : vector<2x384xf32>
    %102 = math.exp %101 : vector<2x384xf32>
    %cst_30 = arith.constant 1.000000e+00 : f32
    %103 = vector.broadcast %cst_30 : f32 to vector<2x384xf32>
    %104 = arith.addf %103, %102 : vector<2x384xf32>
    %105 = arith.divf %103, %104 : vector<2x384xf32>
    %106 = vector.extract_strided_slice %105 {offsets = [0, 0], sizes = [2, 128], strides = [1, 1]} : vector<2x384xf32> to vector<2x128xf32>
    %107 = vector.extract_strided_slice %105 {offsets = [0, 128], sizes = [2, 128], strides = [1, 1]} : vector<2x384xf32> to vector<2x128xf32>
    %108 = vector.extract_strided_slice %105 {offsets = [0, 256], sizes = [2, 128], strides = [1, 1]} : vector<2x384xf32> to vector<2x128xf32>
    %109 = vector.extract_strided_slice %99 {offsets = [0, 384], sizes = [2, 128], strides = [1, 1]} : vector<2x512xf32> to vector<2x128xf32>
    %110 = math.tanh %109 : vector<2x128xf32>
    %111 = arith.mulf %107, %92 : vector<2x128xf32>
    %112 = arith.mulf %106, %110 : vector<2x128xf32>
    %113 = arith.addf %111, %112 : vector<2x128xf32>
    %114 = math.tanh %113 : vector<2x128xf32>
    %115 = arith.mulf %108, %114 : vector<2x128xf32>
    %116 = arith.truncf %115 : vector<2x128xf32> to vector<2x128xbf16>
    %117 = vector.extract_strided_slice %6 {offsets = [10, 0], sizes = [2, 512], strides = [1, 1]} : vector<16x512xf32> to vector<2x512xf32>
    %c0_31 = arith.constant 0 : index
    %c0_32 = arith.constant 0 : index
    %118 = vector.load %arg5[%c0_31, %c0_32] : memref<128x512xbf16, #tpu.memory_space<vmem>>, vector<128x512xbf16>
    %cst_33 = arith.constant dense<0.000000e+00> : vector<2x512xf32>
    %119 = tpu.matmul %116, %118, %cst_33 {dimension_numbers = #tpu.dot_dimension_numbers<[1], [0], [0], [1], [0, 0, 1, 1], [], []>} : vector<2x128xbf16>, vector<128x512xbf16>, vector<2x512xf32> -> vector<2x512xf32>
    %120 = arith.addf %117, %119 : vector<2x512xf32>
    %121 = vector.extract_strided_slice %120 {offsets = [0, 0], sizes = [2, 384], strides = [1, 1]} : vector<2x512xf32> to vector<2x384xf32>
    %122 = arith.negf %121 : vector<2x384xf32>
    %123 = math.exp %122 : vector<2x384xf32>
    %cst_34 = arith.constant 1.000000e+00 : f32
    %124 = vector.broadcast %cst_34 : f32 to vector<2x384xf32>
    %125 = arith.addf %124, %123 : vector<2x384xf32>
    %126 = arith.divf %124, %125 : vector<2x384xf32>
    %127 = vector.extract_strided_slice %126 {offsets = [0, 0], sizes = [2, 128], strides = [1, 1]} : vector<2x384xf32> to vector<2x128xf32>
    %128 = vector.extract_strided_slice %126 {offsets = [0, 128], sizes = [2, 128], strides = [1, 1]} : vector<2x384xf32> to vector<2x128xf32>
    %129 = vector.extract_strided_slice %126 {offsets = [0, 256], sizes = [2, 128], strides = [1, 1]} : vector<2x384xf32> to vector<2x128xf32>
    %130 = vector.extract_strided_slice %120 {offsets = [0, 384], sizes = [2, 128], strides = [1, 1]} : vector<2x512xf32> to vector<2x128xf32>
    %131 = math.tanh %130 : vector<2x128xf32>
    %132 = arith.mulf %128, %113 : vector<2x128xf32>
    %133 = arith.mulf %127, %131 : vector<2x128xf32>
    %134 = arith.addf %132, %133 : vector<2x128xf32>
    %135 = math.tanh %134 : vector<2x128xf32>
    %136 = arith.mulf %129, %135 : vector<2x128xf32>
    %137 = arith.truncf %136 : vector<2x128xf32> to vector<2x128xbf16>
    %138 = vector.extract_strided_slice %6 {offsets = [12, 0], sizes = [2, 512], strides = [1, 1]} : vector<16x512xf32> to vector<2x512xf32>
    %c0_35 = arith.constant 0 : index
    %c0_36 = arith.constant 0 : index
    %139 = vector.load %arg5[%c0_35, %c0_36] : memref<128x512xbf16, #tpu.memory_space<vmem>>, vector<128x512xbf16>
    %cst_37 = arith.constant dense<0.000000e+00> : vector<2x512xf32>
    %140 = tpu.matmul %137, %139, %cst_37 {dimension_numbers = #tpu.dot_dimension_numbers<[1], [0], [0], [1], [0, 0, 1, 1], [], []>} : vector<2x128xbf16>, vector<128x512xbf16>, vector<2x512xf32> -> vector<2x512xf32>
    %141 = arith.addf %138, %140 : vector<2x512xf32>
    %142 = vector.extract_strided_slice %141 {offsets = [0, 0], sizes = [2, 384], strides = [1, 1]} : vector<2x512xf32> to vector<2x384xf32>
    %143 = arith.negf %142 : vector<2x384xf32>
    %144 = math.exp %143 : vector<2x384xf32>
    %cst_38 = arith.constant 1.000000e+00 : f32
    %145 = vector.broadcast %cst_38 : f32 to vector<2x384xf32>
    %146 = arith.addf %145, %144 : vector<2x384xf32>
    %147 = arith.divf %145, %146 : vector<2x384xf32>
    %148 = vector.extract_strided_slice %147 {offsets = [0, 0], sizes = [2, 128], strides = [1, 1]} : vector<2x384xf32> to vector<2x128xf32>
    %149 = vector.extract_strided_slice %147 {offsets = [0, 128], sizes = [2, 128], strides = [1, 1]} : vector<2x384xf32> to vector<2x128xf32>
    %150 = vector.extract_strided_slice %147 {offsets = [0, 256], sizes = [2, 128], strides = [1, 1]} : vector<2x384xf32> to vector<2x128xf32>
    %151 = vector.extract_strided_slice %141 {offsets = [0, 384], sizes = [2, 128], strides = [1, 1]} : vector<2x512xf32> to vector<2x128xf32>
    %152 = math.tanh %151 : vector<2x128xf32>
    %153 = arith.mulf %149, %134 : vector<2x128xf32>
    %154 = arith.mulf %148, %152 : vector<2x128xf32>
    %155 = arith.addf %153, %154 : vector<2x128xf32>
    %156 = math.tanh %155 : vector<2x128xf32>
    %157 = arith.mulf %150, %156 : vector<2x128xf32>
    %158 = arith.truncf %157 : vector<2x128xf32> to vector<2x128xbf16>
    %159 = vector.extract_strided_slice %6 {offsets = [14, 0], sizes = [2, 512], strides = [1, 1]} : vector<16x512xf32> to vector<2x512xf32>
    %c0_39 = arith.constant 0 : index
    %c0_40 = arith.constant 0 : index
    %160 = vector.load %arg5[%c0_39, %c0_40] : memref<128x512xbf16, #tpu.memory_space<vmem>>, vector<128x512xbf16>
    %cst_41 = arith.constant dense<0.000000e+00> : vector<2x512xf32>
    %161 = tpu.matmul %158, %160, %cst_41 {dimension_numbers = #tpu.dot_dimension_numbers<[1], [0], [0], [1], [0, 0, 1, 1], [], []>} : vector<2x128xbf16>, vector<128x512xbf16>, vector<2x512xf32> -> vector<2x512xf32>
    %162 = arith.addf %159, %161 : vector<2x512xf32>
    %163 = vector.extract_strided_slice %162 {offsets = [0, 0], sizes = [2, 384], strides = [1, 1]} : vector<2x512xf32> to vector<2x384xf32>
    %164 = arith.negf %163 : vector<2x384xf32>
    %165 = math.exp %164 : vector<2x384xf32>
    %cst_42 = arith.constant 1.000000e+00 : f32
    %166 = vector.broadcast %cst_42 : f32 to vector<2x384xf32>
    %167 = arith.addf %166, %165 : vector<2x384xf32>
    %168 = arith.divf %166, %167 : vector<2x384xf32>
    %169 = vector.extract_strided_slice %168 {offsets = [0, 0], sizes = [2, 128], strides = [1, 1]} : vector<2x384xf32> to vector<2x128xf32>
    %170 = vector.extract_strided_slice %168 {offsets = [0, 128], sizes = [2, 128], strides = [1, 1]} : vector<2x384xf32> to vector<2x128xf32>
    %171 = vector.extract_strided_slice %168 {offsets = [0, 256], sizes = [2, 128], strides = [1, 1]} : vector<2x384xf32> to vector<2x128xf32>
    %172 = vector.extract_strided_slice %162 {offsets = [0, 384], sizes = [2, 128], strides = [1, 1]} : vector<2x512xf32> to vector<2x128xf32>
    %173 = math.tanh %172 : vector<2x128xf32>
    %174 = arith.mulf %170, %155 : vector<2x128xf32>
    %175 = arith.mulf %169, %173 : vector<2x128xf32>
    %176 = arith.addf %174, %175 : vector<2x128xf32>
    %177 = math.tanh %176 : vector<2x128xf32>
    %178 = arith.mulf %171, %177 : vector<2x128xf32>
    %179 = arith.truncf %178 : vector<2x128xf32> to vector<2x128xbf16>
    %c0_43 = arith.constant 0 : index
    %c0_44 = arith.constant 0 : index
    %c0_45 = arith.constant 0 : index
    %180 = vector.load %arg9[%c0_43, %c0_44, %c0_45] : memref<2x2x128xf32, #tpu.memory_space<vmem>>, vector<1x2x128xf32>
    %181 = vector.shape_cast %180 : vector<1x2x128xf32> to vector<2x128xf32>
    %182 = vector.shape_cast %178 : vector<2x128xf32> to vector<1x2x128xf32>
    tpu.vector_store %arg9[%c0_43, %c0_44, %c0_45], %182 {strides = array<i32>} : memref<2x2x128xf32, #tpu.memory_space<vmem>>, vector<1x2x128xf32>,
    %c0_46 = arith.constant 0 : index
    %c0_47 = arith.constant 0 : index
    %c0_48 = arith.constant 0 : index
    %183 = vector.load %arg10[%c0_46, %c0_47, %c0_48] : memref<2x2x128xf32, #tpu.memory_space<vmem>>, vector<1x2x128xf32>
    %184 = vector.shape_cast %183 : vector<1x2x128xf32> to vector<2x128xf32>
    %185 = vector.shape_cast %176 : vector<2x128xf32> to vector<1x2x128xf32>
    tpu.vector_store %arg10[%c0_46, %c0_47, %c0_48], %185 {strides = array<i32>} : memref<2x2x128xf32, #tpu.memory_space<vmem>>, vector<1x2x128xf32>,
    %186 = tpu.concatenate %32, %53, %74, %95, %116, %137, %158, %179 in 0 : vector<2x128xbf16>, vector<2x128xbf16>, vector<2x128xbf16>, vector<2x128xbf16>, vector<2x128xbf16>, vector<2x128xbf16>, vector<2x128xbf16>, vector<2x128xbf16> -> vector<16x128xbf16>
    %c0_49 = arith.constant 0 : index
    %c0_50 = arith.constant 0 : index
    %187 = vector.load %arg4[%c0_49, %c0_50] : memref<128x512xbf16, #tpu.memory_space<vmem>>, vector<128x512xbf16>
    %cst_51 = arith.constant dense<0.000000e+00> : vector<16x512xf32>
    %188 = tpu.matmul %186, %187, %cst_51 {dimension_numbers = #tpu.dot_dimension_numbers<[1], [0], [0], [1], [0, 0, 1, 1], [], []>} : vector<16x128xbf16>, vector<128x512xbf16>, vector<16x512xf32> -> vector<16x512xf32>
    %c0_52 = arith.constant 0 : index
    %c0_53 = arith.constant 0 : index
    %189 = vector.load %arg8[%c0_52, %c0_53] : memref<1x512xf32, #tpu.memory_space<vmem>>, vector<1x512xf32>
    %190 = vector.broadcast %189 : vector<1x512xf32> to vector<16x512xf32>
    %191 = arith.addf %188, %190 : vector<16x512xf32>
    %c1 = arith.constant 1 : index
    %c0_54 = arith.constant 0 : index
    %c0_55 = arith.constant 0 : index
    %192 = vector.load %arg1[%c1, %c0_54, %c0_55] : memref<2x2x128xf32, #tpu.memory_space<vmem>>, vector<1x2x128xf32>
    %193 = vector.shape_cast %192 : vector<1x2x128xf32> to vector<2x128xf32>
    %c1_56 = arith.constant 1 : index
    %c0_57 = arith.constant 0 : index
    %c0_58 = arith.constant 0 : index
    %194 = vector.load %arg2[%c1_56, %c0_57, %c0_58] : memref<2x2x128xf32, #tpu.memory_space<vmem>>, vector<1x2x128xf32>
    %195 = vector.shape_cast %194 : vector<1x2x128xf32> to vector<2x128xf32>
    %196 = arith.truncf %193 : vector<2x128xf32> to vector<2x128xbf16>
    %197 = vector.extract_strided_slice %191 {offsets = [0, 0], sizes = [2, 512], strides = [1, 1]} : vector<16x512xf32> to vector<2x512xf32>
    %c0_59 = arith.constant 0 : index
    %c0_60 = arith.constant 0 : index
    %198 = vector.load %arg6[%c0_59, %c0_60] : memref<128x512xbf16, #tpu.memory_space<vmem>>, vector<128x512xbf16>
    %cst_61 = arith.constant dense<0.000000e+00> : vector<2x512xf32>
    %199 = tpu.matmul %196, %198, %cst_61 {dimension_numbers = #tpu.dot_dimension_numbers<[1], [0], [0], [1], [0, 0, 1, 1], [], []>} : vector<2x128xbf16>, vector<128x512xbf16>, vector<2x512xf32> -> vector<2x512xf32>
    %200 = arith.addf %197, %199 : vector<2x512xf32>
    %201 = vector.extract_strided_slice %200 {offsets = [0, 0], sizes = [2, 384], strides = [1, 1]} : vector<2x512xf32> to vector<2x384xf32>
    %202 = arith.negf %201 : vector<2x384xf32>
    %203 = math.exp %202 : vector<2x384xf32>
    %cst_62 = arith.constant 1.000000e+00 : f32
    %204 = vector.broadcast %cst_62 : f32 to vector<2x384xf32>
    %205 = arith.addf %204, %203 : vector<2x384xf32>
    %206 = arith.divf %204, %205 : vector<2x384xf32>
    %207 = vector.extract_strided_slice %206 {offsets = [0, 0], sizes = [2, 128], strides = [1, 1]} : vector<2x384xf32> to vector<2x128xf32>
    %208 = vector.extract_strided_slice %206 {offsets = [0, 128], sizes = [2, 128], strides = [1, 1]} : vector<2x384xf32> to vector<2x128xf32>
    %209 = vector.extract_strided_slice %206 {offsets = [0, 256], sizes = [2, 128], strides = [1, 1]} : vector<2x384xf32> to vector<2x128xf32>
    %210 = vector.extract_strided_slice %200 {offsets = [0, 384], sizes = [2, 128], strides = [1, 1]} : vector<2x512xf32> to vector<2x128xf32>
    %211 = math.tanh %210 : vector<2x128xf32>
    %212 = arith.mulf %208, %195 : vector<2x128xf32>
    %213 = arith.mulf %207, %211 : vector<2x128xf32>
    %214 = arith.addf %212, %213 : vector<2x128xf32>
    %215 = math.tanh %214 : vector<2x128xf32>
    %216 = arith.mulf %209, %215 : vector<2x128xf32>
    %217 = arith.truncf %216 : vector<2x128xf32> to vector<2x128xbf16>
    %218 = vector.extract_strided_slice %191 {offsets = [2, 0], sizes = [2, 512], strides = [1, 1]} : vector<16x512xf32> to vector<2x512xf32>
    %c0_63 = arith.constant 0 : index
    %c0_64 = arith.constant 0 : index
    %219 = vector.load %arg6[%c0_63, %c0_64] : memref<128x512xbf16, #tpu.memory_space<vmem>>, vector<128x512xbf16>
    %cst_65 = arith.constant dense<0.000000e+00> : vector<2x512xf32>
    %220 = tpu.matmul %217, %219, %cst_65 {dimension_numbers = #tpu.dot_dimension_numbers<[1], [0], [0], [1], [0, 0, 1, 1], [], []>} : vector<2x128xbf16>, vector<128x512xbf16>, vector<2x512xf32> -> vector<2x512xf32>
    %221 = arith.addf %218, %220 : vector<2x512xf32>
    %222 = vector.extract_strided_slice %221 {offsets = [0, 0], sizes = [2, 384], strides = [1, 1]} : vector<2x512xf32> to vector<2x384xf32>
    %223 = arith.negf %222 : vector<2x384xf32>
    %224 = math.exp %223 : vector<2x384xf32>
    %cst_66 = arith.constant 1.000000e+00 : f32
    %225 = vector.broadcast %cst_66 : f32 to vector<2x384xf32>
    %226 = arith.addf %225, %224 : vector<2x384xf32>
    %227 = arith.divf %225, %226 : vector<2x384xf32>
    %228 = vector.extract_strided_slice %227 {offsets = [0, 0], sizes = [2, 128], strides = [1, 1]} : vector<2x384xf32> to vector<2x128xf32>
    %229 = vector.extract_strided_slice %227 {offsets = [0, 128], sizes = [2, 128], strides = [1, 1]} : vector<2x384xf32> to vector<2x128xf32>
    %230 = vector.extract_strided_slice %227 {offsets = [0, 256], sizes = [2, 128], strides = [1, 1]} : vector<2x384xf32> to vector<2x128xf32>
    %231 = vector.extract_strided_slice %221 {offsets = [0, 384], sizes = [2, 128], strides = [1, 1]} : vector<2x512xf32> to vector<2x128xf32>
    %232 = math.tanh %231 : vector<2x128xf32>
    %233 = arith.mulf %229, %214 : vector<2x128xf32>
    %234 = arith.mulf %228, %232 : vector<2x128xf32>
    %235 = arith.addf %233, %234 : vector<2x128xf32>
    %236 = math.tanh %235 : vector<2x128xf32>
    %237 = arith.mulf %230, %236 : vector<2x128xf32>
    %238 = arith.truncf %237 : vector<2x128xf32> to vector<2x128xbf16>
    %239 = vector.extract_strided_slice %191 {offsets = [4, 0], sizes = [2, 512], strides = [1, 1]} : vector<16x512xf32> to vector<2x512xf32>
    %c0_67 = arith.constant 0 : index
    %c0_68 = arith.constant 0 : index
    %240 = vector.load %arg6[%c0_67, %c0_68] : memref<128x512xbf16, #tpu.memory_space<vmem>>, vector<128x512xbf16>
    %cst_69 = arith.constant dense<0.000000e+00> : vector<2x512xf32>
    %241 = tpu.matmul %238, %240, %cst_69 {dimension_numbers = #tpu.dot_dimension_numbers<[1], [0], [0], [1], [0, 0, 1, 1], [], []>} : vector<2x128xbf16>, vector<128x512xbf16>, vector<2x512xf32> -> vector<2x512xf32>
    %242 = arith.addf %239, %241 : vector<2x512xf32>
    %243 = vector.extract_strided_slice %242 {offsets = [0, 0], sizes = [2, 384], strides = [1, 1]} : vector<2x512xf32> to vector<2x384xf32>
    %244 = arith.negf %243 : vector<2x384xf32>
    %245 = math.exp %244 : vector<2x384xf32>
    %cst_70 = arith.constant 1.000000e+00 : f32
    %246 = vector.broadcast %cst_70 : f32 to vector<2x384xf32>
    %247 = arith.addf %246, %245 : vector<2x384xf32>
    %248 = arith.divf %246, %247 : vector<2x384xf32>
    %249 = vector.extract_strided_slice %248 {offsets = [0, 0], sizes = [2, 128], strides = [1, 1]} : vector<2x384xf32> to vector<2x128xf32>
    %250 = vector.extract_strided_slice %248 {offsets = [0, 128], sizes = [2, 128], strides = [1, 1]} : vector<2x384xf32> to vector<2x128xf32>
    %251 = vector.extract_strided_slice %248 {offsets = [0, 256], sizes = [2, 128], strides = [1, 1]} : vector<2x384xf32> to vector<2x128xf32>
    %252 = vector.extract_strided_slice %242 {offsets = [0, 384], sizes = [2, 128], strides = [1, 1]} : vector<2x512xf32> to vector<2x128xf32>
    %253 = math.tanh %252 : vector<2x128xf32>
    %254 = arith.mulf %250, %235 : vector<2x128xf32>
    %255 = arith.mulf %249, %253 : vector<2x128xf32>
    %256 = arith.addf %254, %255 : vector<2x128xf32>
    %257 = math.tanh %256 : vector<2x128xf32>
    %258 = arith.mulf %251, %257 : vector<2x128xf32>
    %259 = arith.truncf %258 : vector<2x128xf32> to vector<2x128xbf16>
    %260 = vector.extract_strided_slice %191 {offsets = [6, 0], sizes = [2, 512], strides = [1, 1]} : vector<16x512xf32> to vector<2x512xf32>
    %c0_71 = arith.constant 0 : index
    %c0_72 = arith.constant 0 : index
    %261 = vector.load %arg6[%c0_71, %c0_72] : memref<128x512xbf16, #tpu.memory_space<vmem>>, vector<128x512xbf16>
    %cst_73 = arith.constant dense<0.000000e+00> : vector<2x512xf32>
    %262 = tpu.matmul %259, %261, %cst_73 {dimension_numbers = #tpu.dot_dimension_numbers<[1], [0], [0], [1], [0, 0, 1, 1], [], []>} : vector<2x128xbf16>, vector<128x512xbf16>, vector<2x512xf32> -> vector<2x512xf32>
    %263 = arith.addf %260, %262 : vector<2x512xf32>
    %264 = vector.extract_strided_slice %263 {offsets = [0, 0], sizes = [2, 384], strides = [1, 1]} : vector<2x512xf32> to vector<2x384xf32>
    %265 = arith.negf %264 : vector<2x384xf32>
    %266 = math.exp %265 : vector<2x384xf32>
    %cst_74 = arith.constant 1.000000e+00 : f32
    %267 = vector.broadcast %cst_74 : f32 to vector<2x384xf32>
    %268 = arith.addf %267, %266 : vector<2x384xf32>
    %269 = arith.divf %267, %268 : vector<2x384xf32>
    %270 = vector.extract_strided_slice %269 {offsets = [0, 0], sizes = [2, 128], strides = [1, 1]} : vector<2x384xf32> to vector<2x128xf32>
    %271 = vector.extract_strided_slice %269 {offsets = [0, 128], sizes = [2, 128], strides = [1, 1]} : vector<2x384xf32> to vector<2x128xf32>
    %272 = vector.extract_strided_slice %269 {offsets = [0, 256], sizes = [2, 128], strides = [1, 1]} : vector<2x384xf32> to vector<2x128xf32>
    %273 = vector.extract_strided_slice %263 {offsets = [0, 384], sizes = [2, 128], strides = [1, 1]} : vector<2x512xf32> to vector<2x128xf32>
    %274 = math.tanh %273 : vector<2x128xf32>
    %275 = arith.mulf %271, %256 : vector<2x128xf32>
    %276 = arith.mulf %270, %274 : vector<2x128xf32>
    %277 = arith.addf %275, %276 : vector<2x128xf32>
    %278 = math.tanh %277 : vector<2x128xf32>
    %279 = arith.mulf %272, %278 : vector<2x128xf32>
    %280 = arith.truncf %279 : vector<2x128xf32> to vector<2x128xbf16>
    %281 = vector.extract_strided_slice %191 {offsets = [8, 0], sizes = [2, 512], strides = [1, 1]} : vector<16x512xf32> to vector<2x512xf32>
    %c0_75 = arith.constant 0 : index
    %c0_76 = arith.constant 0 : index
    %282 = vector.load %arg6[%c0_75, %c0_76] : memref<128x512xbf16, #tpu.memory_space<vmem>>, vector<128x512xbf16>
    %cst_77 = arith.constant dense<0.000000e+00> : vector<2x512xf32>
    %283 = tpu.matmul %280, %282, %cst_77 {dimension_numbers = #tpu.dot_dimension_numbers<[1], [0], [0], [1], [0, 0, 1, 1], [], []>} : vector<2x128xbf16>, vector<128x512xbf16>, vector<2x512xf32> -> vector<2x512xf32>
    %284 = arith.addf %281, %283 : vector<2x512xf32>
    %285 = vector.extract_strided_slice %284 {offsets = [0, 0], sizes = [2, 384], strides = [1, 1]} : vector<2x512xf32> to vector<2x384xf32>
    %286 = arith.negf %285 : vector<2x384xf32>
    %287 = math.exp %286 : vector<2x384xf32>
    %cst_78 = arith.constant 1.000000e+00 : f32
    %288 = vector.broadcast %cst_78 : f32 to vector<2x384xf32>
    %289 = arith.addf %288, %287 : vector<2x384xf32>
    %290 = arith.divf %288, %289 : vector<2x384xf32>
    %291 = vector.extract_strided_slice %290 {offsets = [0, 0], sizes = [2, 128], strides = [1, 1]} : vector<2x384xf32> to vector<2x128xf32>
    %292 = vector.extract_strided_slice %290 {offsets = [0, 128], sizes = [2, 128], strides = [1, 1]} : vector<2x384xf32> to vector<2x128xf32>
    %293 = vector.extract_strided_slice %290 {offsets = [0, 256], sizes = [2, 128], strides = [1, 1]} : vector<2x384xf32> to vector<2x128xf32>
    %294 = vector.extract_strided_slice %284 {offsets = [0, 384], sizes = [2, 128], strides = [1, 1]} : vector<2x512xf32> to vector<2x128xf32>
    %295 = math.tanh %294 : vector<2x128xf32>
    %296 = arith.mulf %292, %277 : vector<2x128xf32>
    %297 = arith.mulf %291, %295 : vector<2x128xf32>
    %298 = arith.addf %296, %297 : vector<2x128xf32>
    %299 = math.tanh %298 : vector<2x128xf32>
    %300 = arith.mulf %293, %299 : vector<2x128xf32>
    %301 = arith.truncf %300 : vector<2x128xf32> to vector<2x128xbf16>
    %302 = vector.extract_strided_slice %191 {offsets = [10, 0], sizes = [2, 512], strides = [1, 1]} : vector<16x512xf32> to vector<2x512xf32>
    %c0_79 = arith.constant 0 : index
    %c0_80 = arith.constant 0 : index
    %303 = vector.load %arg6[%c0_79, %c0_80] : memref<128x512xbf16, #tpu.memory_space<vmem>>, vector<128x512xbf16>
    %cst_81 = arith.constant dense<0.000000e+00> : vector<2x512xf32>
    %304 = tpu.matmul %301, %303, %cst_81 {dimension_numbers = #tpu.dot_dimension_numbers<[1], [0], [0], [1], [0, 0, 1, 1], [], []>} : vector<2x128xbf16>, vector<128x512xbf16>, vector<2x512xf32> -> vector<2x512xf32>
    %305 = arith.addf %302, %304 : vector<2x512xf32>
    %306 = vector.extract_strided_slice %305 {offsets = [0, 0], sizes = [2, 384], strides = [1, 1]} : vector<2x512xf32> to vector<2x384xf32>
    %307 = arith.negf %306 : vector<2x384xf32>
    %308 = math.exp %307 : vector<2x384xf32>
    %cst_82 = arith.constant 1.000000e+00 : f32
    %309 = vector.broadcast %cst_82 : f32 to vector<2x384xf32>
    %310 = arith.addf %309, %308 : vector<2x384xf32>
    %311 = arith.divf %309, %310 : vector<2x384xf32>
    %312 = vector.extract_strided_slice %311 {offsets = [0, 0], sizes = [2, 128], strides = [1, 1]} : vector<2x384xf32> to vector<2x128xf32>
    %313 = vector.extract_strided_slice %311 {offsets = [0, 128], sizes = [2, 128], strides = [1, 1]} : vector<2x384xf32> to vector<2x128xf32>
    %314 = vector.extract_strided_slice %311 {offsets = [0, 256], sizes = [2, 128], strides = [1, 1]} : vector<2x384xf32> to vector<2x128xf32>
    %315 = vector.extract_strided_slice %305 {offsets = [0, 384], sizes = [2, 128], strides = [1, 1]} : vector<2x512xf32> to vector<2x128xf32>
    %316 = math.tanh %315 : vector<2x128xf32>
    %317 = arith.mulf %313, %298 : vector<2x128xf32>
    %318 = arith.mulf %312, %316 : vector<2x128xf32>
    %319 = arith.addf %317, %318 : vector<2x128xf32>
    %320 = math.tanh %319 : vector<2x128xf32>
    %321 = arith.mulf %314, %320 : vector<2x128xf32>
    %322 = arith.truncf %321 : vector<2x128xf32> to vector<2x128xbf16>
    %323 = vector.extract_strided_slice %191 {offsets = [12, 0], sizes = [2, 512], strides = [1, 1]} : vector<16x512xf32> to vector<2x512xf32>
    %c0_83 = arith.constant 0 : index
    %c0_84 = arith.constant 0 : index
    %324 = vector.load %arg6[%c0_83, %c0_84] : memref<128x512xbf16, #tpu.memory_space<vmem>>, vector<128x512xbf16>
    %cst_85 = arith.constant dense<0.000000e+00> : vector<2x512xf32>
    %325 = tpu.matmul %322, %324, %cst_85 {dimension_numbers = #tpu.dot_dimension_numbers<[1], [0], [0], [1], [0, 0, 1, 1], [], []>} : vector<2x128xbf16>, vector<128x512xbf16>, vector<2x512xf32> -> vector<2x512xf32>
    %326 = arith.addf %323, %325 : vector<2x512xf32>
    %327 = vector.extract_strided_slice %326 {offsets = [0, 0], sizes = [2, 384], strides = [1, 1]} : vector<2x512xf32> to vector<2x384xf32>
    %328 = arith.negf %327 : vector<2x384xf32>
    %329 = math.exp %328 : vector<2x384xf32>
    %cst_86 = arith.constant 1.000000e+00 : f32
    %330 = vector.broadcast %cst_86 : f32 to vector<2x384xf32>
    %331 = arith.addf %330, %329 : vector<2x384xf32>
    %332 = arith.divf %330, %331 : vector<2x384xf32>
    %333 = vector.extract_strided_slice %332 {offsets = [0, 0], sizes = [2, 128], strides = [1, 1]} : vector<2x384xf32> to vector<2x128xf32>
    %334 = vector.extract_strided_slice %332 {offsets = [0, 128], sizes = [2, 128], strides = [1, 1]} : vector<2x384xf32> to vector<2x128xf32>
    %335 = vector.extract_strided_slice %332 {offsets = [0, 256], sizes = [2, 128], strides = [1, 1]} : vector<2x384xf32> to vector<2x128xf32>
    %336 = vector.extract_strided_slice %326 {offsets = [0, 384], sizes = [2, 128], strides = [1, 1]} : vector<2x512xf32> to vector<2x128xf32>
    %337 = math.tanh %336 : vector<2x128xf32>
    %338 = arith.mulf %334, %319 : vector<2x128xf32>
    %339 = arith.mulf %333, %337 : vector<2x128xf32>
    %340 = arith.addf %338, %339 : vector<2x128xf32>
    %341 = math.tanh %340 : vector<2x128xf32>
    %342 = arith.mulf %335, %341 : vector<2x128xf32>
    %343 = arith.truncf %342 : vector<2x128xf32> to vector<2x128xbf16>
    %344 = vector.extract_strided_slice %191 {offsets = [14, 0], sizes = [2, 512], strides = [1, 1]} : vector<16x512xf32> to vector<2x512xf32>
    %c0_87 = arith.constant 0 : index
    %c0_88 = arith.constant 0 : index
    %345 = vector.load %arg6[%c0_87, %c0_88] : memref<128x512xbf16, #tpu.memory_space<vmem>>, vector<128x512xbf16>
    %cst_89 = arith.constant dense<0.000000e+00> : vector<2x512xf32>
    %346 = tpu.matmul %343, %345, %cst_89 {dimension_numbers = #tpu.dot_dimension_numbers<[1], [0], [0], [1], [0, 0, 1, 1], [], []>} : vector<2x128xbf16>, vector<128x512xbf16>, vector<2x512xf32> -> vector<2x512xf32>
    %347 = arith.addf %344, %346 : vector<2x512xf32>
    %348 = vector.extract_strided_slice %347 {offsets = [0, 0], sizes = [2, 384], strides = [1, 1]} : vector<2x512xf32> to vector<2x384xf32>
    %349 = arith.negf %348 : vector<2x384xf32>
    %350 = math.exp %349 : vector<2x384xf32>
    %cst_90 = arith.constant 1.000000e+00 : f32
    %351 = vector.broadcast %cst_90 : f32 to vector<2x384xf32>
    %352 = arith.addf %351, %350 : vector<2x384xf32>
    %353 = arith.divf %351, %352 : vector<2x384xf32>
    %354 = vector.extract_strided_slice %353 {offsets = [0, 0], sizes = [2, 128], strides = [1, 1]} : vector<2x384xf32> to vector<2x128xf32>
    %355 = vector.extract_strided_slice %353 {offsets = [0, 128], sizes = [2, 128], strides = [1, 1]} : vector<2x384xf32> to vector<2x128xf32>
    %356 = vector.extract_strided_slice %353 {offsets = [0, 256], sizes = [2, 128], strides = [1, 1]} : vector<2x384xf32> to vector<2x128xf32>
    %357 = vector.extract_strided_slice %347 {offsets = [0, 384], sizes = [2, 128], strides = [1, 1]} : vector<2x512xf32> to vector<2x128xf32>
    %358 = math.tanh %357 : vector<2x128xf32>
    %359 = arith.mulf %355, %340 : vector<2x128xf32>
    %360 = arith.mulf %354, %358 : vector<2x128xf32>
    %361 = arith.addf %359, %360 : vector<2x128xf32>
    %362 = math.tanh %361 : vector<2x128xf32>
    %363 = arith.mulf %356, %362 : vector<2x128xf32>
    %c1_91 = arith.constant 1 : index
    %c0_92 = arith.constant 0 : index
    %c0_93 = arith.constant 0 : index
    %364 = vector.load %arg9[%c1_91, %c0_92, %c0_93] : memref<2x2x128xf32, #tpu.memory_space<vmem>>, vector<1x2x128xf32>
    %365 = vector.shape_cast %364 : vector<1x2x128xf32> to vector<2x128xf32>
    %366 = vector.shape_cast %363 : vector<2x128xf32> to vector<1x2x128xf32>
    tpu.vector_store %arg9[%c1_91, %c0_92, %c0_93], %366 {strides = array<i32>} : memref<2x2x128xf32, #tpu.memory_space<vmem>>, vector<1x2x128xf32>,
    %c1_94 = arith.constant 1 : index
    %c0_95 = arith.constant 0 : index
    %c0_96 = arith.constant 0 : index
    %367 = vector.load %arg10[%c1_94, %c0_95, %c0_96] : memref<2x2x128xf32, #tpu.memory_space<vmem>>, vector<1x2x128xf32>
    %368 = vector.shape_cast %367 : vector<1x2x128xf32> to vector<2x128xf32>
    %369 = vector.shape_cast %361 : vector<2x128xf32> to vector<1x2x128xf32>
    tpu.vector_store %arg10[%c1_94, %c0_95, %c0_96], %369 {strides = array<i32>} : memref<2x2x128xf32, #tpu.memory_space<vmem>>, vector<1x2x128xf32>,
    return
  }
}

</mosaic_0001>

<llo_original>
// kernel: tpu_custom_call.1
$region0: #{tpu_custom_call.1}
  #allocation0 [shape = 'u32[]', space=smem, size = 0x4, offset = 0x4, fixed_abs, tag = 'smem constant byte address 0x4 - core index']
  #allocation1 [shape = 'u32[144,128]{1,0:T(1,128)}', space=vmem, size = 0x12000, scoped, tag = 'internal scratch']
  %s0 = inlined_call_operand.hbm [shape: f32[16,32], index: 0, kind: input, shape index: {}]
  %s1 = inlined_call_operand.hbm [shape: f32[2,2,128], index: 1, kind: input, shape index: {}]
  %s2 = inlined_call_operand.vmem [shape: f32[2,2,128], index: 2, kind: input, shape index: {}]
  %s3 = inlined_call_operand.hbm [shape: bf16[32,512], index: 3, kind: input, shape index: {}]
  %s4 = inlined_call_operand.hbm [shape: bf16[128,512], index: 4, kind: input, shape index: {}]
  %s5 = inlined_call_operand.hbm [shape: bf16[128,512], index: 5, kind: input, shape index: {}]
  %s6 = inlined_call_operand.hbm [shape: bf16[128,512], index: 6, kind: input, shape index: {}]
  %s7 = inlined_call_operand.vmem [shape: f32[1,512], index: 7, kind: input, shape index: {}]
  %s8 = inlined_call_operand.vmem [shape: f32[1,512], index: 8, kind: input, shape index: {}]
  %s9 = inlined_call_operand.hbm [shape: f32[2,2,128], index: 9, kind: output, shape index: {0}]
  %s10 = inlined_call_operand.hbm [shape: f32[2,2,128], index: 10, kind: output, shape index: {1}]
  %11 = xla_tuple %s9, %s10
  %s12 = sld [smem:[#allocation0]]
  $region78: #{tpu_custom_call.1} parent=0
    _
  %s14 = ssub.s32 1, %s12
  %s15 = scalar_select 0, %s14, %s12
  $region1: #{tpu_custom_call.1} parent=0
    #allocation2 [shape = 'u8[8192]{0}', space=vmem, size = 0x2000, scoped, tag = 'input window, operand 0, single buffered']
    #allocation3 [shape = 's32[1]{0}', space=sflag, size = 0x4, scoped, tag = 'scoped memory for tpu_custom_call.1']
    #allocation4 [shape = 's32[1]{0}', space=sflag, size = 0x4, scoped, tag = 'scoped memory for tpu_custom_call.1']
    #allocation5 [shape = 'u8[2048]{0}', space=vmem, size = 0x800, scoped, tag = 'input window, operand 1, single buffered']
    #allocation6 [shape = 's32[1]{0}', space=sflag, size = 0x4, scoped, tag = 'scoped memory for tpu_custom_call.1']
    #allocation7 [shape = 'u8[32768]{0}', space=vmem, size = 0x8000, scoped, tag = 'input window, operand 3, single buffered']
    #allocation8 [shape = 'u8[131072]{0}', space=vmem, size = 0x20000, scoped, tag = 'input window, operand 4, single buffered']
    #allocation9 [shape = 's32[1]{0}', space=sflag, size = 0x4, scoped, tag = 'scoped memory for tpu_custom_call.1']
    #allocation10 [shape = 'u8[131072]{0}', space=vmem, size = 0x20000, scoped, tag = 'input window, operand 5, single buffered']
    #allocation11 [shape = 'u8[131072]{0}', space=vmem, size = 0x20000, scoped, tag = 'input window, operand 6, single buffered']
    #allocation12 [shape = 's32[1]{0}', space=sflag, size = 0x4, scoped, tag = 'scoped memory for tpu_custom_call.1']
    #allocation13 [shape = 'u8[2048]{0}', space=vmem, size = 0x800, scoped, tag = 'output window, operand 0, single buffered']
    #allocation14 [shape = 'u8[2048]{0}', space=vmem, size = 0x800, scoped, tag = 'output window, operand 1, single buffered']
    #allocation15 [shape = 's32[1]{0}', space=sflag, size = 0x4, scoped, tag = 'scoped memory for tpu_custom_call.1']
    %16 = vsyncpa [#allocation3], 0
    %17 = vsyncpa [#allocation6], 0
    %18 = vsyncpa [#allocation9], 0
    %19 = vsyncpa [#allocation12], 0
    %20 = vsyncpa [#allocation4], 0
    %21 = vsyncpa [#allocation15], 0
    // Predicated region
    $region2: #{tpu_custom_call.1} parent=1 // pred_check
      _
    $region3: #{tpu_custom_call.1} parent=1 // pred_check_branch
      %23 = sbr.rel (0) target = $region5
    $region4: #{tpu_custom_call.1} parent=1 // pred_region
      %s25 = ssub.s32 256, 256
      %26 = vsyncadd [#allocation3], %s25
      %s27 = sshll.u32 [#allocation2], 4
      %s28 = int_to_ptr.vmem [resolvable:$true] %s27
      %33 = dma.hbm_to_vmem [thread:$0]  %s0, 256, %s28, [#allocation3], 128, 128, 8
    $region5: #{tpu_custom_call.1} parent=1 // pred_fallthru
      _
    // Predicated region
    $region6: #{tpu_custom_call.1} parent=1 // pred_check
      _
    $region7: #{tpu_custom_call.1} parent=1 // pred_check_branch
      %35 = sbr.rel (0) target = $region9
    $region8: #{tpu_custom_call.1} parent=1 // pred_region
      %s37 = ssub.s32 64, 64
      %38 = vsyncadd [#allocation6], %s37
      %s39 = sshll.u32 [#allocation5], 4
      %s40 = int_to_ptr.vmem [resolvable:$true] %s39
      %45 = dma.hbm_to_vmem [thread:$0]  %s1, 64, %s40, [#allocation6], 32, 32, 2
    $region9: #{tpu_custom_call.1} parent=1 // pred_fallthru
      _
    // Predicated region
    $region10: #{tpu_custom_call.1} parent=1 // pred_check
      _
    $region11: #{tpu_custom_call.1} parent=1 // pred_check_branch
      %47 = sbr.rel (0) target = $region13
    $region12: #{tpu_custom_call.1} parent=1 // pred_region
      _
    $region13: #{tpu_custom_call.1} parent=1 // pred_fallthru
      _
    // Predicated region
    $region14: #{tpu_custom_call.1} parent=1 // pred_check
      _
    $region15: #{tpu_custom_call.1} parent=1 // pred_check_branch
      %49 = sbr.rel (0) target = $region17
    $region16: #{tpu_custom_call.1} parent=1 // pred_region
      %s51 = ssub.s32 1024, 1024
      %52 = vsyncadd [#allocation6], %s51
      %s53 = sshll.u32 [#allocation7], 4
      %s54 = int_to_ptr.vmem [resolvable:$true] %s53
      %59 = dma.hbm_to_vmem [thread:$0]  %s3, 1024, %s54, [#allocation6], 256, 256, 16
    $region17: #{tpu_custom_call.1} parent=1 // pred_fallthru
      _
    // Predicated region
    $region18: #{tpu_custom_call.1} parent=1 // pred_check
      _
    $region19: #{tpu_custom_call.1} parent=1 // pred_check_branch
      %61 = sbr.rel (0) target = $region21
    $region20: #{tpu_custom_call.1} parent=1 // pred_region
      %s63 = ssub.s32 4096, 4096
      %64 = vsyncadd [#allocation9], %s63
      %s65 = sshll.u32 [#allocation8], 4
      %s66 = int_to_ptr.vmem [resolvable:$true] %s65
      %71 = dma.hbm_to_vmem [thread:$0]  %s4, 4096, %s66, [#allocation9], 256, 256, 16
    $region21: #{tpu_custom_call.1} parent=1 // pred_fallthru
      _
    // Predicated region
    $region22: #{tpu_custom_call.1} parent=1 // pred_check
      _
    $region23: #{tpu_custom_call.1} parent=1 // pred_check_branch
      %73 = sbr.rel (0) target = $region25
    $region24: #{tpu_custom_call.1} parent=1 // pred_region
      %s75 = ssub.s32 4096, 4096
      %76 = vsyncadd [#allocation9], %s75
      %s77 = sshll.u32 [#allocation10], 4
      %s78 = int_to_ptr.vmem [resolvable:$true] %s77
      %83 = dma.hbm_to_vmem [thread:$0]  %s5, 4096, %s78, [#allocation9], 256, 256, 16
    $region25: #{tpu_custom_call.1} parent=1 // pred_fallthru
      _
    // Predicated region
    $region26: #{tpu_custom_call.1} parent=1 // pred_check
      _
    $region27: #{tpu_custom_call.1} parent=1 // pred_check_branch
      %85 = sbr.rel (0) target = $region29
    $region28: #{tpu_custom_call.1} parent=1 // pred_region
      %s87 = ssub.s32 4096, 4096
      %88 = vsyncadd [#allocation12], %s87
      %s89 = sshll.u32 [#allocation11], 4
      %s90 = int_to_ptr.vmem [resolvable:$true] %s89
      %95 = dma.hbm_to_vmem [thread:$0]  %s6, 4096, %s90, [#allocation12], 256, 256, 16
    $region29: #{tpu_custom_call.1} parent=1 // pred_fallthru
      _
    // Predicated region
    $region30: #{tpu_custom_call.1} parent=1 // pred_check
      _
    $region31: #{tpu_custom_call.1} parent=1 // pred_check_branch
      %97 = sbr.rel (0) target = $region33
    $region32: #{tpu_custom_call.1} parent=1 // pred_region
      _
    $region33: #{tpu_custom_call.1} parent=1 // pred_fallthru
      _
    // Predicated region
    $region34: #{tpu_custom_call.1} parent=1 // pred_check
      _
    $region35: #{tpu_custom_call.1} parent=1 // pred_check_branch
      %99 = sbr.rel (0) target = $region37
    $region36: #{tpu_custom_call.1} parent=1 // pred_region
      _
    $region37: #{tpu_custom_call.1} parent=1 // pred_fallthru
      _
    // Predicated region
    $region38: #{tpu_custom_call.1} parent=1 // pred_check
      _
    $region39: #{tpu_custom_call.1} parent=1 // pred_check_branch
      %101 = sbr.rel (0) target = $region41
    $region40: #{tpu_custom_call.1} parent=1 // pred_region
      %102 = dma.done [#allocation3], 256
    $region41: #{tpu_custom_call.1} parent=1 // pred_fallthru
      _
    // Predicated region
    $region42: #{tpu_custom_call.1} parent=1 // pred_check
      _
    $region43: #{tpu_custom_call.1} parent=1 // pred_check_branch
      %104 = sbr.rel (0) target = $region45
    $region44: #{tpu_custom_call.1} parent=1 // pred_region
      %105 = dma.done [#allocation6], 64
    $region45: #{tpu_custom_call.1} parent=1 // pred_fallthru
      _
    // Predicated region
    $region46: #{tpu_custom_call.1} parent=1 // pred_check
      _
    $region47: #{tpu_custom_call.1} parent=1 // pred_check_branch
      %107 = sbr.rel (0) target = $region49
    $region48: #{tpu_custom_call.1} parent=1 // pred_region
      %108 = dma.done [#allocation6], 1024
    $region49: #{tpu_custom_call.1} parent=1 // pred_fallthru
      _
    // Predicated region
    $region50: #{tpu_custom_call.1} parent=1 // pred_check
      _
    $region51: #{tpu_custom_call.1} parent=1 // pred_check_branch
      %110 = sbr.rel (0) target = $region53
    $region52: #{tpu_custom_call.1} parent=1 // pred_region
      %111 = dma.done [#allocation9], 4096
    $region53: #{tpu_custom_call.1} parent=1 // pred_fallthru
      _
    // Predicated region
    $region54: #{tpu_custom_call.1} parent=1 // pred_check
      _
    $region55: #{tpu_custom_call.1} parent=1 // pred_check_branch
      %113 = sbr.rel (0) target = $region57
    $region56: #{tpu_custom_call.1} parent=1 // pred_region
      %114 = dma.done [#allocation9], 4096
    $region57: #{tpu_custom_call.1} parent=1 // pred_fallthru
      _
    // Predicated region
    $region58: #{tpu_custom_call.1} parent=1 // pred_check
      _
    $region59: #{tpu_custom_call.1} parent=1 // pred_check_branch
      %116 = sbr.rel (0) target = $region61
    $region60: #{tpu_custom_call.1} parent=1 // pred_region
      %117 = dma.done [#allocation12], 4096
    $region61: #{tpu_custom_call.1} parent=1 // pred_fallthru
      _
    %v119 = vld [vmem:[#allocation2] sm:$0xff]
    %v120 = vld [vmem:[#allocation2 + $0x8] sm:$0xff]
    %v121 = vpack.c.bf16 %v120, %v119
    %v122 = vld [vmem:[#allocation7] sm:$0xff]
    %v123 = vld [vmem:[#allocation7 + $0x8] sm:$0xff]
    %v124 = vld [vmem:[#allocation7 + $0x10] sm:$0xff]
    %v125 = vld [vmem:[#allocation7 + $0x18] sm:$0xff]
    %v126 = vld [vmem:[#allocation7 + $0x20] sm:$0xff]
    %v127 = vld [vmem:[#allocation7 + $0x28] sm:$0xff]
    %v128 = vld [vmem:[#allocation7 + $0x30] sm:$0xff]
    %v129 = vld [vmem:[#allocation7 + $0x38] sm:$0xff]
    %v130 = vld [vmem:[%s7] sm:$0xf]
    %v132 = vlaneseq
    %v133 = vshrl.u32 %v132, 7
    %v134 = vsub.s32 0, %v133
    %v135 = vrot.slane %v130, %v134
    %v136 = vlaneseq
    %v137 = vshrl.u32 %v136, 7
    %v138 = vsub.s32 1, %v137
    %v139 = vrot.slane %v130, %v138
    %v140 = vlaneseq
    %v141 = vshrl.u32 %v140, 7
    %v142 = vsub.s32 2, %v141
    %v143 = vrot.slane %v130, %v142
    %v144 = vlaneseq
    %v145 = vshrl.u32 %v144, 7
    %v146 = vsub.s32 3, %v145
    %v147 = vrot.slane %v130, %v146
    %v160 = vunpack.c.l.b16 %v122
    %v161 = vunpack.c.h.b16 %v122
    %v162 = vunpack.c.l.b16 %v123
    %v163 = vunpack.c.h.b16 %v123
    %v164 = vunpack.c.l.b16 %v124
    %v165 = vunpack.c.h.b16 %v124
    %v166 = vunpack.c.l.b16 %v125
    %v167 = vunpack.c.h.b16 %v125
    %v168 = vunpack.c.l.b16 %v126
    %v169 = vunpack.c.h.b16 %v126
    %v170 = vunpack.c.l.b16 %v127
    %v171 = vunpack.c.h.b16 %v127
    %v172 = vunpack.c.l.b16 %v128
    %v173 = vunpack.c.h.b16 %v128
    %v174 = vunpack.c.l.b16 %v129
    %v175 = vunpack.c.h.b16 %v129
    %v176 = vpack.c.b16 %v164, %v160
    %v177 = vpack.c.b16 %v165, %v161
    %v178 = vpack.c.b16 %v166, %v162
    %v179 = vpack.c.b16 %v167, %v163
    %v180 = vpack.c.b16 %v172, %v168
    %v181 = vpack.c.b16 %v173, %v169
    %v182 = vpack.c.b16 %v174, %v170
    %v183 = vpack.c.b16 %v175, %v171
    %vm192 = vcmask 261120
    %v194 = vsel %vm192, %v121, 0
    %196 = vmatprep.subr.bf16.mxu0 %v177
    %197 = vmatpush1.bf16.msra.mxu0 %v176
    %198 = vmatprep.subr.bf16.mxu0 %v181
    %199 = vmatpush1.bf16.msra.mxu0 %v180
    %200 = vmatprep.subr.bf16.mxu0 0
    %201 = vmatpush1.bf16.msra.mxu0 0
    %202 = vmatprep.subr.bf16.mxu0 0
    %203 = vmatpush1.bf16.msra.mxu0 0
    %204 = vmatprep.subr.bf16.mxu0 0
    %205 = vmatpush1.bf16.msra.mxu0 0
    %206 = vmatprep.subr.bf16.mxu0 0
    %207 = vmatpush1.bf16.msra.mxu0 0
    %208 = vmatprep.subr.bf16.mxu0 0
    %209 = vmatpush1.bf16.msra.mxu0 0
    %210 = vmatprep.subr.bf16.mxu0 0
    %211 = vmatpush1.bf16.msra.mxu0 0
    %212 = vmatprep.subr.bf16.mxu0 0
    %213 = vmatpush1.bf16.msra.mxu0 0
    %214 = vmatprep.subr.bf16.mxu0 0
    %215 = vmatpush1.bf16.msra.mxu0 0
    %216 = vmatprep.subr.bf16.mxu0 0
    %217 = vmatpush1.bf16.msra.mxu0 0
    %218 = vmatprep.subr.bf16.mxu0 0
    %219 = vmatpush1.bf16.msra.mxu0 0
    %220 = vmatprep.subr.bf16.mxu0 0
    %221 = vmatpush1.bf16.msra.mxu0 0
    %222 = vmatprep.subr.bf16.mxu0 0
    %223 = vmatpush1.bf16.msra.mxu0 0
    %224 = vmatprep.subr.bf16.mxu0 0
    %225 = vmatpush1.bf16.msra.mxu0 0
    %226 = vmatprep.subr.bf16.mxu0 0
    %227 = vmatpush1.bf16.msra.mxu0 0
    %228 = vmatprep.mubr.bf16.mxu0 0
    %229 = vmatmul.mubr.bf16.gmra.mrb[0].mxu0 %v194
    %v230 = vpop.f32.mrb[0].mxu0
    %v231 = vadd.f32 %v135, %v230
    %v232 = vpop.f32.mrb[0].mxu0
    %v233 = vadd.f32 %v139, %v232
    %v234 = vpop.f32.mrb[0].mxu0
    %v235 = vadd.f32 %v135, %v234
    %v236 = vpop.f32.mrb[0].mxu0
    %v237 = vadd.f32 %v139, %v236
    %238 = vdwg.mxu0
    %239 = vmatprep.subr.bf16.mxu0 %v179
    %240 = vmatpush1.bf16.msra.mxu0 %v178
    %241 = vmatprep.subr.bf16.mxu0 %v183
    %242 = vmatpush1.bf16.msra.mxu0 %v182
    %243 = vmatprep.subr.bf16.mxu0 0
    %244 = vmatpush1.bf16.msra.mxu0 0
    %245 = vmatprep.subr.bf16.mxu0 0
    %246 = vmatpush1.bf16.msra.mxu0 0
    %247 = vmatprep.subr.bf16.mxu0 0
    %248 = vmatpush1.bf16.msra.mxu0 0
    %249 = vmatprep.subr.bf16.mxu0 0
    %250 = vmatpush1.bf16.msra.mxu0 0
    %251 = vmatprep.subr.bf16.mxu0 0
    %252 = vmatpush1.bf16.msra.mxu0 0
    %253 = vmatprep.subr.bf16.mxu0 0
    %254 = vmatpush1.bf16.msra.mxu0 0
    %255 = vmatprep.subr.bf16.mxu0 0
    %256 = vmatpush1.bf16.msra.mxu0 0
    %257 = vmatprep.subr.bf16.mxu0 0
    %258 = vmatpush1.bf16.msra.mxu0 0
    %259 = vmatprep.subr.bf16.mxu0 0
    %260 = vmatpush1.bf16.msra.mxu0 0
    %261 = vmatprep.subr.bf16.mxu0 0
    %262 = vmatpush1.bf16.msra.mxu0 0
    %263 = vmatprep.subr.bf16.mxu0 0
    %264 = vmatpush1.bf16.msra.mxu0 0
    %265 = vmatprep.subr.bf16.mxu0 0
    %266 = vmatpush1.bf16.msra.mxu0 0
    %267 = vmatprep.subr.bf16.mxu0 0
    %268 = vmatpush1.bf16.msra.mxu0 0
    %269 = vmatprep.subr.bf16.mxu0 0
    %270 = vmatpush1.bf16.msra.mxu0 0
    %271 = vmatprep.mubr.bf16.mxu0 0
    %272 = vmatmul.mubr.bf16.gmra.mrb[0].mxu0 %v194
    %v273 = vpop.f32.mrb[0].mxu0
    %v274 = vadd.f32 %v143, %v273
    %v275 = vpop.f32.mrb[0].mxu0
    %v276 = vadd.f32 %v147, %v275
    %v277 = vpop.f32.mrb[0].mxu0
    %v278 = vadd.f32 %v143, %v277
    %v279 = vpop.f32.mrb[0].mxu0
    %v280 = vadd.f32 %v147, %v279
    %281 = vdwg.mxu0
    %v282 = vld [vmem:[#allocation5] sm:$0x3]
    %v283 = vld [vmem:[%s2] sm:$0x3]
    %v284 = vpack.c.bf16 %v282, %v282
    %v285 = vld [vmem:[#allocation10] sm:$0xff]
    %v286 = vld [vmem:[#allocation10 + $0x8] sm:$0xff]
    %v287 = vld [vmem:[#allocation10 + $0x10] sm:$0xff]
    %v288 = vld [vmem:[#allocation10 + $0x18] sm:$0xff]
    %v289 = vld [vmem:[#allocation10 + $0x20] sm:$0xff]
    %v290 = vld [vmem:[#allocation10 + $0x28] sm:$0xff]
    %v291 = vld [vmem:[#allocation10 + $0x30] sm:$0xff]
    %v292 = vld [vmem:[#allocation10 + $0x38] sm:$0xff]
    %v293 = vld [vmem:[#allocation10 + $0x40] sm:$0xff]
    %v294 = vld [vmem:[#allocation10 + $0x48] sm:$0xff]
    %v295 = vld [vmem:[#allocation10 + $0x50] sm:$0xff]
    %v296 = vld [vmem:[#allocation10 + $0x58] sm:$0xff]
    %v297 = vld [vmem:[#allocation10 + $0x60] sm:$0xff]
    %v298 = vld [vmem:[#allocation10 + $0x68] sm:$0xff]
    %v299 = vld [vmem:[#allocation10 + $0x70] sm:$0xff]
    %v300 = vld [vmem:[#allocation10 + $0x78] sm:$0xff]
    %v301 = vld [vmem:[#allocation10 + $0x80] sm:$0xff]
    %v302 = vld [vmem:[#allocation10 + $0x88] sm:$0xff]
    %v303 = vld [vmem:[#allocation10 + $0x90] sm:$0xff]
    %v304 = vld [vmem:[#allocation10 + $0x98] sm:$0xff]
    %v305 = vld [vmem:[#allocation10 + $0xa0] sm:$0xff]
    %v306 = vld [vmem:[#allocation10 + $0xa8] sm:$0xff]
    %v307 = vld [vmem:[#allocation10 + $0xb0] sm:$0xff]
    %v308 = vld [vmem:[#allocation10 + $0xb8] sm:$0xff]
    %v309 = vld [vmem:[#allocation10 + $0xc0] sm:$0xff]
    %v310 = vld [vmem:[#allocation10 + $0xc8] sm:$0xff]
    %v311 = vld [vmem:[#allocation10 + $0xd0] sm:$0xff]
    %v312 = vld [vmem:[#allocation10 + $0xd8] sm:$0xff]
    %v313 = vld [vmem:[#allocation10 + $0xe0] sm:$0xff]
    %v314 = vld [vmem:[#allocation10 + $0xe8] sm:$0xff]
    %v315 = vld [vmem:[#allocation10 + $0xf0] sm:$0xff]
    %v316 = vld [vmem:[#allocation10 + $0xf8] sm:$0xff]
    %v349 = vunpack.c.l.b16 %v285
    %v350 = vunpack.c.h.b16 %v285
    %v351 = vunpack.c.l.b16 %v286
    %v352 = vunpack.c.h.b16 %v286
    %v353 = vunpack.c.l.b16 %v287
    %v354 = vunpack.c.h.b16 %v287
    %v355 = vunpack.c.l.b16 %v288
    %v356 = vunpack.c.h.b16 %v288
    %v357 = vunpack.c.l.b16 %v289
    %v358 = vunpack.c.h.b16 %v289
    %v359 = vunpack.c.l.b16 %v290
    %v360 = vunpack.c.h.b16 %v290
    %v361 = vunpack.c.l.b16 %v291
    %v362 = vunpack.c.h.b16 %v291
    %v363 = vunpack.c.l.b16 %v292
    %v364 = vunpack.c.h.b16 %v292
    %v365 = vunpack.c.l.b16 %v293
    %v366 = vunpack.c.h.b16 %v293
    %v367 = vunpack.c.l.b16 %v294
    %v368 = vunpack.c.h.b16 %v294
    %v369 = vunpack.c.l.b16 %v295
    %v370 = vunpack.c.h.b16 %v295
    %v371 = vunpack.c.l.b16 %v296
    %v372 = vunpack.c.h.b16 %v296
    %v373 = vunpack.c.l.b16 %v297
    %v374 = vunpack.c.h.b16 %v297
    %v375 = vunpack.c.l.b16 %v298
    %v376 = vunpack.c.h.b16 %v298
    %v377 = vunpack.c.l.b16 %v299
    %v378 = vunpack.c.h.b16 %v299
    %v379 = vunpack.c.l.b16 %v300
    %v380 = vunpack.c.h.b16 %v300
    %v381 = vunpack.c.l.b16 %v301
    %v382 = vunpack.c.h.b16 %v301
    %v383 = vunpack.c.l.b16 %v302
    %v384 = vunpack.c.h.b16 %v302
    %v385 = vunpack.c.l.b16 %v303
    %v386 = vunpack.c.h.b16 %v303
    %v387 = vunpack.c.l.b16 %v304
    %v388 = vunpack.c.h.b16 %v304
    %v389 = vunpack.c.l.b16 %v305
    %v390 = vunpack.c.h.b16 %v305
    %v391 = vunpack.c.l.b16 %v306
    %v392 = vunpack.c.h.b16 %v306
    %v393 = vunpack.c.l.b16 %v307
    %v394 = vunpack.c.h.b16 %v307
    %v395 = vunpack.c.l.b16 %v308
    %v396 = vunpack.c.h.b16 %v308
    %v397 = vunpack.c.l.b16 %v309
    %v398 = vunpack.c.h.b16 %v309
    %v399 = vunpack.c.l.b16 %v310
    %v400 = vunpack.c.h.b16 %v310
    %v401 = vunpack.c.l.b16 %v311
    %v402 = vunpack.c.h.b16 %v311
    %v403 = vunpack.c.l.b16 %v312
    %v404 = vunpack.c.h.b16 %v312
    %v405 = vunpack.c.l.b16 %v313
    %v406 = vunpack.c.h.b16 %v313
    %v407 = vunpack.c.l.b16 %v314
    %v408 = vunpack.c.h.b16 %v314
    %v409 = vunpack.c.l.b16 %v315
    %v410 = vunpack.c.h.b16 %v315
    %v411 = vunpack.c.l.b16 %v316
    %v412 = vunpack.c.h.b16 %v316
    %v413 = vpack.c.b16 %v353, %v349
    %v414 = vpack.c.b16 %v354, %v350
    %v415 = vpack.c.b16 %v355, %v351
    %v416 = vpack.c.b16 %v356, %v352
    %v417 = vpack.c.b16 %v361, %v357
    %v418 = vpack.c.b16 %v362, %v358
    %v419 = vpack.c.b16 %v363, %v359
    %v420 = vpack.c.b16 %v364, %v360
    %v421 = vpack.c.b16 %v369, %v365
    %v422 = vpack.c.b16 %v370, %v366
    %v423 = vpack.c.b16 %v371, %v367
    %v424 = vpack.c.b16 %v372, %v368
    %v425 = vpack.c.b16 %v377, %v373
    %v426 = vpack.c.b16 %v378, %v374
    %v427 = vpack.c.b16 %v379, %v375
    %v428 = vpack.c.b16 %v380, %v376
    %v429 = vpack.c.b16 %v385, %v381
    %v430 = vpack.c.b16 %v386, %v382
    %v431 = vpack.c.b16 %v387, %v383
    %v432 = vpack.c.b16 %v388, %v384
    %v433 = vpack.c.b16 %v393, %v389
    %v434 = vpack.c.b16 %v394, %v390
    %v435 = vpack.c.b16 %v395, %v391
    %v436 = vpack.c.b16 %v396, %v392
    %v437 = vpack.c.b16 %v401, %v397
    %v438 = vpack.c.b16 %v402, %v398
    %v439 = vpack.c.b16 %v403, %v399
    %v440 = vpack.c.b16 %v404, %v400
    %v441 = vpack.c.b16 %v409, %v405
    %v442 = vpack.c.b16 %v410, %v406
    %v443 = vpack.c.b16 %v411, %v407
    %v444 = vpack.c.b16 %v412, %v408
    %477 = vmatprep.subr.bf16.mxu0 %v414
    %478 = vmatpush1.bf16.msra.mxu0 %v413
    %479 = vmatprep.subr.bf16.mxu0 %v418
    %480 = vmatpush1.bf16.msra.mxu0 %v417
    %481 = vmatprep.subr.bf16.mxu0 %v422
    %482 = vmatpush1.bf16.msra.mxu0 %v421
    %483 = vmatprep.subr.bf16.mxu0 %v426
    %484 = vmatpush1.bf16.msra.mxu0 %v425
    %485 = vmatprep.subr.bf16.mxu0 %v430
    %486 = vmatpush1.bf16.msra.mxu0 %v429
    %487 = vmatprep.subr.bf16.mxu0 %v434
    %488 = vmatpush1.bf16.msra.mxu0 %v433
    %489 = vmatprep.subr.bf16.mxu0 %v438
    %490 = vmatpush1.bf16.msra.mxu0 %v437
    %491 = vmatprep.subr.bf16.mxu0 %v442
    %492 = vmatpush1.bf16.msra.mxu0 %v441
    %493 = vmatprep.subr.bf16.mxu0 0
    %494 = vmatpush1.bf16.msra.mxu0 0
    %495 = vmatprep.subr.bf16.mxu0 0
    %496 = vmatpush1.bf16.msra.mxu0 0
    %497 = vmatprep.subr.bf16.mxu0 0
    %498 = vmatpush1.bf16.msra.mxu0 0
    %499 = vmatprep.subr.bf16.mxu0 0
    %500 = vmatpush1.bf16.msra.mxu0 0
    %501 = vmatprep.subr.bf16.mxu0 0
    %502 = vmatpush1.bf16.msra.mxu0 0
    %503 = vmatprep.subr.bf16.mxu0 0
    %504 = vmatpush1.bf16.msra.mxu0 0
    %505 = vmatprep.subr.bf16.mxu0 0
    %506 = vmatpush1.bf16.msra.mxu0 0
    %507 = vmatprep.subr.bf16.mxu0 0
    %508 = vmatpush1.bf16.msra.mxu0 0
    %509 = vmatprep.mubr.bf16.mxu0 0
    %510 = vmatmul.mubr.bf16.gmra.mrb[0].mxu0 %v284
    %v511 = vpop.f32.mrb[0].mxu0
    %v512 = vadd.f32 0.0, %v511
    %v513 = vpop.f32.mrb[0].mxu0
    %v514 = vadd.f32 0.0, %v513
    %v515 = vpop.f32.mrb[0].mxu0
    %v516 = vpop.f32.mrb[0].mxu0
    %517 = vdwg.mxu0
    %518 = vmatprep.subr.bf16.mxu0 %v416
    %519 = vmatpush1.bf16.msra.mxu0 %v415
    %520 = vmatprep.subr.bf16.mxu0 %v420
    %521 = vmatpush1.bf16.msra.mxu0 %v419
    %522 = vmatprep.subr.bf16.mxu0 %v424
    %523 = vmatpush1.bf16.msra.mxu0 %v423
    %524 = vmatprep.subr.bf16.mxu0 %v428
    %525 = vmatpush1.bf16.msra.mxu0 %v427
    %526 = vmatprep.subr.bf16.mxu0 %v432
    %527 = vmatpush1.bf16.msra.mxu0 %v431
    %528 = vmatprep.subr.bf16.mxu0 %v436
    %529 = vmatpush1.bf16.msra.mxu0 %v435
    %530 = vmatprep.subr.bf16.mxu0 %v440
    %531 = vmatpush1.bf16.msra.mxu0 %v439
    %532 = vmatprep.subr.bf16.mxu0 %v444
    %533 = vmatpush1.bf16.msra.mxu0 %v443
    %534 = vmatprep.subr.bf16.mxu0 0
    %535 = vmatpush1.bf16.msra.mxu0 0
    %536 = vmatprep.subr.bf16.mxu0 0
    %537 = vmatpush1.bf16.msra.mxu0 0
    %538 = vmatprep.subr.bf16.mxu0 0
    %539 = vmatpush1.bf16.msra.mxu0 0
    %540 = vmatprep.subr.bf16.mxu0 0
    %541 = vmatpush1.bf16.msra.mxu0 0
    %542 = vmatprep.subr.bf16.mxu0 0
    %543 = vmatpush1.bf16.msra.mxu0 0
    %544 = vmatprep.subr.bf16.mxu0 0
    %545 = vmatpush1.bf16.msra.mxu0 0
    %546 = vmatprep.subr.bf16.mxu0 0
    %547 = vmatpush1.bf16.msra.mxu0 0
    %548 = vmatprep.subr.bf16.mxu0 0
    %549 = vmatpush1.bf16.msra.mxu0 0
    %550 = vmatprep.mubr.bf16.mxu0 0
    %551 = vmatmul.mubr.bf16.gmra.mrb[0].mxu0 %v284
    %v552 = vpop.f32.mrb[0].mxu0
    %v553 = vadd.f32 0.0, %v552
    %v554 = vpop.f32.mrb[0].mxu0
    %v555 = vadd.f32 0.0, %v554
    %v556 = vpop.f32.mrb[0].mxu0
    %v557 = vpop.f32.mrb[0].mxu0
    %558 = vdwg.mxu0
    %v559 = vadd.f32 %v231, %v512
    %v560 = vadd.f32 %v233, %v514
    %v561 = vadd.f32 %v274, %v553
    %v562 = vadd.f32 %v276, %v555
    %v563 = vxor.u32 %v559, 2147483648
    %v564 = vxor.u32 %v560, 2147483648
    %v565 = vxor.u32 %v561, 2147483648
    %v566 = vmul.f32 %v563, 1.442695
    %v567 = vpow.pop %v566
    %v568 = vmul.f32 %v564, 1.442695
    %v569 = vpow.pop %v568
    %v570 = vmul.f32 %v565, 1.442695
    %v571 = vpow.pop %v570
    %v572 = vadd.f32 %v567, 1.0
    %v573 = vadd.f32 %v569, 1.0
    %v574 = vadd.f32 %v571, 1.0
    %v575 = vrcp.pop %v572
    %v576 = vmul.f32 1.0, %v575
    %v577 = vrcp.pop %v573
    %v578 = vmul.f32 1.0, %v577
    %v579 = vrcp.pop %v574
    %v580 = vmul.f32 1.0, %v579
    %v581 = vtanh.pop %v562
    %v582 = vmul.f32 %v578, %v283
    %v583 = vmul.f32 %v576, %v581
    %v584 = vadd.f32 %v582, %v583
    %v585 = vtanh.pop %v584
    %v586 = vmul.f32 %v580, %v585
    %v587 = vpack.c.bf16 %v586, %v586
    %588 = vmatprep.subr.bf16.mxu0 %v414
    %589 = vmatpush1.bf16.msra.mxu0 %v413
    %590 = vmatprep.subr.bf16.mxu0 %v418
    %591 = vmatpush1.bf16.msra.mxu0 %v417
    %592 = vmatprep.subr.bf16.mxu0 %v422
    %593 = vmatpush1.bf16.msra.mxu0 %v421
    %594 = vmatprep.subr.bf16.mxu0 %v426
    %595 = vmatpush1.bf16.msra.mxu0 %v425
    %596 = vmatprep.subr.bf16.mxu0 %v430
    %597 = vmatpush1.bf16.msra.mxu0 %v429
    %598 = vmatprep.subr.bf16.mxu0 %v434
    %599 = vmatpush1.bf16.msra.mxu0 %v433
    %600 = vmatprep.subr.bf16.mxu0 %v438
    %601 = vmatpush1.bf16.msra.mxu0 %v437
    %602 = vmatprep.subr.bf16.mxu0 %v442
    %603 = vmatpush1.bf16.msra.mxu0 %v441
    %604 = vmatprep.subr.bf16.mxu0 0
    %605 = vmatpush1.bf16.msra.mxu0 0
    %606 = vmatprep.subr.bf16.mxu0 0
    %607 = vmatpush1.bf16.msra.mxu0 0
    %608 = vmatprep.subr.bf16.mxu0 0
    %609 = vmatpush1.bf16.msra.mxu0 0
    %610 = vmatprep.subr.bf16.mxu0 0
    %611 = vmatpush1.bf16.msra.mxu0 0
    %612 = vmatprep.subr.bf16.mxu0 0
    %613 = vmatpush1.bf16.msra.mxu0 0
    %614 = vmatprep.subr.bf16.mxu0 0
    %615 = vmatpush1.bf16.msra.mxu0 0
    %616 = vmatprep.subr.bf16.mxu0 0
    %617 = vmatpush1.bf16.msra.mxu0 0
    %618 = vmatprep.subr.bf16.mxu0 0
    %619 = vmatpush1.bf16.msra.mxu0 0
    %620 = vmatprep.mubr.bf16.mxu0 0
    %621 = vmatmul.mubr.bf16.gmra.mrb[0].mxu0 %v587
    %v622 = vpop.f32.mrb[0].mxu0
    %v623 = vadd.f32 0.0, %v622
    %v624 = vpop.f32.mrb[0].mxu0
    %v625 = vadd.f32 0.0, %v624
    %v626 = vpop.f32.mrb[0].mxu0
    %v627 = vpop.f32.mrb[0].mxu0
    %628 = vdwg.mxu0
    %629 = vmatprep.subr.bf16.mxu0 %v416
    %630 = vmatpush1.bf16.msra.mxu0 %v415
    %631 = vmatprep.subr.bf16.mxu0 %v420
    %632 = vmatpush1.bf16.msra.mxu0 %v419
    %633 = vmatprep.subr.bf16.mxu0 %v424
    %634 = vmatpush1.bf16.msra.mxu0 %v423
    %635 = vmatprep.subr.bf16.mxu0 %v428
    %636 = vmatpush1.bf16.msra.mxu0 %v427
    %637 = vmatprep.subr.bf16.mxu0 %v432
    %638 = vmatpush1.bf16.msra.mxu0 %v431
    %639 = vmatprep.subr.bf16.mxu0 %v436
    %640 = vmatpush1.bf16.msra.mxu0 %v435
    %641 = vmatprep.subr.bf16.mxu0 %v440
    %642 = vmatpush1.bf16.msra.mxu0 %v439
    %643 = vmatprep.subr.bf16.mxu0 %v444
    %644 = vmatpush1.bf16.msra.mxu0 %v443
    %645 = vmatprep.subr.bf16.mxu0 0
    %646 = vmatpush1.bf16.msra.mxu0 0
    %647 = vmatprep.subr.bf16.mxu0 0
    %648 = vmatpush1.bf16.msra.mxu0 0
    %649 = vmatprep.subr.bf16.mxu0 0
    %650 = vmatpush1.bf16.msra.mxu0 0
    %651 = vmatprep.subr.bf16.mxu0 0
    %652 = vmatpush1.bf16.msra.mxu0 0
    %653 = vmatprep.subr.bf16.mxu0 0
    %654 = vmatpush1.bf16.msra.mxu0 0
    %655 = vmatprep.subr.bf16.mxu0 0
    %656 = vmatpush1.bf16.msra.mxu0 0
    %657 = vmatprep.subr.bf16.mxu0 0
    %658 = vmatpush1.bf16.msra.mxu0 0
    %659 = vmatprep.subr.bf16.mxu0 0
    %660 = vmatpush1.bf16.msra.mxu0 0
    %661 = vmatprep.mubr.bf16.mxu0 0
    %662 = vmatmul.mubr.bf16.gmra.mrb[0].mxu0 %v587
    %v663 = vpop.f32.mrb[0].mxu0
    %v664 = vadd.f32 0.0, %v663
    %v665 = vpop.f32.mrb[0].mxu0
    %v666 = vadd.f32 0.0, %v665
    %v667 = vpop.f32.mrb[0].mxu0
    %v668 = vpop.f32.mrb[0].mxu0
    %669 = vdwg.mxu0
    %v674 = vrot.slane %v623, 6
    %v675 = vrot.slane %v625, 6
    %v676 = vrot.slane %v664, 6
    %v677 = vrot.slane %v666, 6
    %v682 = vadd.f32 %v231, %v674
    %v683 = vadd.f32 %v233, %v675
    %v684 = vadd.f32 %v274, %v676
    %v685 = vadd.f32 %v276, %v677
    %v686 = vxor.u32 %v682, 2147483648
    %v687 = vxor.u32 %v683, 2147483648
    %v688 = vxor.u32 %v684, 2147483648
    %v689 = vmul.f32 %v686, 1.442695
    %v690 = vpow.pop %v689
    %v691 = vmul.f32 %v687, 1.442695
    %v692 = vpow.pop %v691
    %v693 = vmul.f32 %v688, 1.442695
    %v694 = vpow.pop %v693
    %v695 = vadd.f32 %v690, 1.0
    %v696 = vadd.f32 %v692, 1.0
    %v697 = vadd.f32 %v694, 1.0
    %v698 = vrcp.pop %v695
    %v699 = vmul.f32 1.0, %v698
    %v700 = vrcp.pop %v696
    %v701 = vmul.f32 1.0, %v700
    %v702 = vrcp.pop %v697
    %v703 = vmul.f32 1.0, %v702
    %v704 = vtanh.pop %v685
    %v706 = vrot.slane %v584, 6
    %v708 = vmul.f32 %v701, %v706
    %v709 = vmul.f32 %v699, %v704
    %v710 = vadd.f32 %v708, %v709
    %v711 = vtanh.pop %v710
    %v712 = vmul.f32 %v703, %v711
    %v713 = vpack.c.bf16 %v712, %v712
    %v715 = vrot.slane %v713, 1
    %717 = vmatprep.subr.bf16.mxu0 %v414
    %718 = vmatpush1.bf16.msra.mxu0 %v413
    %719 = vmatprep.subr.bf16.mxu0 %v418
    %720 = vmatpush1.bf16.msra.mxu0 %v417
    %721 = vmatprep.subr.bf16.mxu0 %v422
    %722 = vmatpush1.bf16.msra.mxu0 %v421
    %723 = vmatprep.subr.bf16.mxu0 %v426
    %724 = vmatpush1.bf16.msra.mxu0 %v425
    %725 = vmatprep.subr.bf16.mxu0 %v430
    %726 = vmatpush1.bf16.msra.mxu0 %v429
    %727 = vmatprep.subr.bf16.mxu0 %v434
    %728 = vmatpush1.bf16.msra.mxu0 %v433
    %729 = vmatprep.subr.bf16.mxu0 %v438
    %730 = vmatpush1.bf16.msra.mxu0 %v437
    %731 = vmatprep.subr.bf16.mxu0 %v442
    %732 = vmatpush1.bf16.msra.mxu0 %v441
    %733 = vmatprep.subr.bf16.mxu0 0
    %734 = vmatpush1.bf16.msra.mxu0 0
    %735 = vmatprep.subr.bf16.mxu0 0
    %736 = vmatpush1.bf16.msra.mxu0 0
    %737 = vmatprep.subr.bf16.mxu0 0
    %738 = vmatpush1.bf16.msra.mxu0 0
    %739 = vmatprep.subr.bf16.mxu0 0
    %740 = vmatpush1.bf16.msra.mxu0 0
    %741 = vmatprep.subr.bf16.mxu0 0
    %742 = vmatpush1.bf16.msra.mxu0 0
    %743 = vmatprep.subr.bf16.mxu0 0
    %744 = vmatpush1.bf16.msra.mxu0 0
    %745 = vmatprep.subr.bf16.mxu0 0
    %746 = vmatpush1.bf16.msra.mxu0 0
    %747 = vmatprep.subr.bf16.mxu0 0
    %748 = vmatpush1.bf16.msra.mxu0 0
    %749 = vmatprep.mubr.bf16.mxu0 0
    %750 = vmatmul.mubr.bf16.gmra.mrb[0].mxu0 %v715
    %v751 = vpop.f32.mrb[0].mxu0
    %v752 = vadd.f32 0.0, %v751
    %v753 = vpop.f32.mrb[0].mxu0
    %v754 = vadd.f32 0.0, %v753
    %v755 = vpop.f32.mrb[0].mxu0
    %v756 = vpop.f32.mrb[0].mxu0
    %757 = vdwg.mxu0
    %758 = vmatprep.subr.bf16.mxu0 %v416
    %759 = vmatpush1.bf16.msra.mxu0 %v415
    %760 = vmatprep.subr.bf16.mxu0 %v420
    %761 = vmatpush1.bf16.msra.mxu0 %v419
    %762 = vmatprep.subr.bf16.mxu0 %v424
    %763 = vmatpush1.bf16.msra.mxu0 %v423
    %764 = vmatprep.subr.bf16.mxu0 %v428
    %765 = vmatpush1.bf16.msra.mxu0 %v427
    %766 = vmatprep.subr.bf16.mxu0 %v432
    %767 = vmatpush1.bf16.msra.mxu0 %v431
    %768 = vmatprep.subr.bf16.mxu0 %v436
    %769 = vmatpush1.bf16.msra.mxu0 %v435
    %770 = vmatprep.subr.bf16.mxu0 %v440
    %771 = vmatpush1.bf16.msra.mxu0 %v439
    %772 = vmatprep.subr.bf16.mxu0 %v444
    %773 = vmatpush1.bf16.msra.mxu0 %v443
    %774 = vmatprep.subr.bf16.mxu0 0
    %775 = vmatpush1.bf16.msra.mxu0 0
    %776 = vmatprep.subr.bf16.mxu0 0
    %777 = vmatpush1.bf16.msra.mxu0 0
    %778 = vmatprep.subr.bf16.mxu0 0
    %779 = vmatpush1.bf16.msra.mxu0 0
    %780 = vmatprep.subr.bf16.mxu0 0
    %781 = vmatpush1.bf16.msra.mxu0 0
    %782 = vmatprep.subr.bf16.mxu0 0
    %783 = vmatpush1.bf16.msra.mxu0 0
    %784 = vmatprep.subr.bf16.mxu0 0
    %785 = vmatpush1.bf16.msra.mxu0 0
    %786 = vmatprep.subr.bf16.mxu0 0
    %787 = vmatpush1.bf16.msra.mxu0 0
    %788 = vmatprep.subr.bf16.mxu0 0
    %789 = vmatpush1.bf16.msra.mxu0 0
    %790 = vmatprep.mubr.bf16.mxu0 0
    %791 = vmatmul.mubr.bf16.gmra.mrb[0].mxu0 %v715
    %v792 = vpop.f32.mrb[0].mxu0
    %v793 = vadd.f32 0.0, %v792
    %v794 = vpop.f32.mrb[0].mxu0
    %v795 = vadd.f32 0.0, %v794
    %v796 = vpop.f32.mrb[0].mxu0
    %v797 = vpop.f32.mrb[0].mxu0
    %798 = vdwg.mxu0
    %v803 = vrot.slane %v752, 4
    %v804 = vrot.slane %v754, 4
    %v805 = vrot.slane %v793, 4
    %v806 = vrot.slane %v795, 4
    %v811 = vadd.f32 %v231, %v803
    %v812 = vadd.f32 %v233, %v804
    %v813 = vadd.f32 %v274, %v805
    %v814 = vadd.f32 %v276, %v806
    %v815 = vxor.u32 %v811, 2147483648
    %v816 = vxor.u32 %v812, 2147483648
    %v817 = vxor.u32 %v813, 2147483648
    %v818 = vmul.f32 %v815, 1.442695
    %v819 = vpow.pop %v818
    %v820 = vmul.f32 %v816, 1.442695
    %v821 = vpow.pop %v820
    %v822 = vmul.f32 %v817, 1.442695
    %v823 = vpow.pop %v822
    %v824 = vadd.f32 %v819, 1.0
    %v825 = vadd.f32 %v821, 1.0
    %v826 = vadd.f32 %v823, 1.0
    %v827 = vrcp.pop %v824
    %v828 = vmul.f32 1.0, %v827
    %v829 = vrcp.pop %v825
    %v830 = vmul.f32 1.0, %v829
    %v831 = vrcp.pop %v826
    %v832 = vmul.f32 1.0, %v831
    %v833 = vtanh.pop %v814
    %v835 = vrot.slane %v710, 6
    %v837 = vmul.f32 %v830, %v835
    %v838 = vmul.f32 %v828, %v833
    %v839 = vadd.f32 %v837, %v838
    %v840 = vtanh.pop %v839
    %v841 = vmul.f32 %v832, %v840
    %v842 = vpack.c.bf16 %v841, %v841
    %v844 = vrot.slane %v842, 2
    %846 = vmatprep.subr.bf16.mxu0 %v414
    %847 = vmatpush1.bf16.msra.mxu0 %v413
    %848 = vmatprep.subr.bf16.mxu0 %v418
    %849 = vmatpush1.bf16.msra.mxu0 %v417
    %850 = vmatprep.subr.bf16.mxu0 %v422
    %851 = vmatpush1.bf16.msra.mxu0 %v421
    %852 = vmatprep.subr.bf16.mxu0 %v426
    %853 = vmatpush1.bf16.msra.mxu0 %v425
    %854 = vmatprep.subr.bf16.mxu0 %v430
    %855 = vmatpush1.bf16.msra.mxu0 %v429
    %856 = vmatprep.subr.bf16.mxu0 %v434
    %857 = vmatpush1.bf16.msra.mxu0 %v433
    %858 = vmatprep.subr.bf16.mxu0 %v438
    %859 = vmatpush1.bf16.msra.mxu0 %v437
    %860 = vmatprep.subr.bf16.mxu0 %v442
    %861 = vmatpush1.bf16.msra.mxu0 %v441
    %862 = vmatprep.subr.bf16.mxu0 0
    %863 = vmatpush1.bf16.msra.mxu0 0
    %864 = vmatprep.subr.bf16.mxu0 0
    %865 = vmatpush1.bf16.msra.mxu0 0
    %866 = vmatprep.subr.bf16.mxu0 0
    %867 = vmatpush1.bf16.msra.mxu0 0
    %868 = vmatprep.subr.bf16.mxu0 0
    %869 = vmatpush1.bf16.msra.mxu0 0
    %870 = vmatprep.subr.bf16.mxu0 0
    %871 = vmatpush1.bf16.msra.mxu0 0
    %872 = vmatprep.subr.bf16.mxu0 0
    %873 = vmatpush1.bf16.msra.mxu0 0
    %874 = vmatprep.subr.bf16.mxu0 0
    %875 = vmatpush1.bf16.msra.mxu0 0
    %876 = vmatprep.subr.bf16.mxu0 0
    %877 = vmatpush1.bf16.msra.mxu0 0
    %878 = vmatprep.mubr.bf16.mxu0 0
    %879 = vmatmul.mubr.bf16.gmra.mrb[0].mxu0 %v844
    %v880 = vpop.f32.mrb[0].mxu0
    %v881 = vadd.f32 0.0, %v880
    %v882 = vpop.f32.mrb[0].mxu0
    %v883 = vadd.f32 0.0, %v882
    %v884 = vpop.f32.mrb[0].mxu0
    %v885 = vpop.f32.mrb[0].mxu0
    %886 = vdwg.mxu0
    %887 = vmatprep.subr.bf16.mxu0 %v416
    %888 = vmatpush1.bf16.msra.mxu0 %v415
    %889 = vmatprep.subr.bf16.mxu0 %v420
    %890 = vmatpush1.bf16.msra.mxu0 %v419
    %891 = vmatprep.subr.bf16.mxu0 %v424
    %892 = vmatpush1.bf16.msra.mxu0 %v423
    %893 = vmatprep.subr.bf16.mxu0 %v428
    %894 = vmatpush1.bf16.msra.mxu0 %v427
    %895 = vmatprep.subr.bf16.mxu0 %v432
    %896 = vmatpush1.bf16.msra.mxu0 %v431
    %897 = vmatprep.subr.bf16.mxu0 %v436
    %898 = vmatpush1.bf16.msra.mxu0 %v435
    %899 = vmatprep.subr.bf16.mxu0 %v440
    %900 = vmatpush1.bf16.msra.mxu0 %v439
    %901 = vmatprep.subr.bf16.mxu0 %v444
    %902 = vmatpush1.bf16.msra.mxu0 %v443
    %903 = vmatprep.subr.bf16.mxu0 0
    %904 = vmatpush1.bf16.msra.mxu0 0
    %905 = vmatprep.subr.bf16.mxu0 0
    %906 = vmatpush1.bf16.msra.mxu0 0
    %907 = vmatprep.subr.bf16.mxu0 0
    %908 = vmatpush1.bf16.msra.mxu0 0
    %909 = vmatprep.subr.bf16.mxu0 0
    %910 = vmatpush1.bf16.msra.mxu0 0
    %911 = vmatprep.subr.bf16.mxu0 0
    %912 = vmatpush1.bf16.msra.mxu0 0
    %913 = vmatprep.subr.bf16.mxu0 0
    %914 = vmatpush1.bf16.msra.mxu0 0
    %915 = vmatprep.subr.bf16.mxu0 0
    %916 = vmatpush1.bf16.msra.mxu0 0
    %917 = vmatprep.subr.bf16.mxu0 0
    %918 = vmatpush1.bf16.msra.mxu0 0
    %919 = vmatprep.mubr.bf16.mxu0 0
    %920 = vmatmul.mubr.bf16.gmra.mrb[0].mxu0 %v844
    %v921 = vpop.f32.mrb[0].mxu0
    %v922 = vadd.f32 0.0, %v921
    %v923 = vpop.f32.mrb[0].mxu0
    %v924 = vadd.f32 0.0, %v923
    %v925 = vpop.f32.mrb[0].mxu0
    %v926 = vpop.f32.mrb[0].mxu0
    %927 = vdwg.mxu0
    %v932 = vrot.slane %v881, 2
    %v933 = vrot.slane %v883, 2
    %v934 = vrot.slane %v922, 2
    %v935 = vrot.slane %v924, 2
    %v940 = vadd.f32 %v231, %v932
    %v941 = vadd.f32 %v233, %v933
    %v942 = vadd.f32 %v274, %v934
    %v943 = vadd.f32 %v276, %v935
    %v944 = vxor.u32 %v940, 2147483648
    %v945 = vxor.u32 %v941, 2147483648
    %v946 = vxor.u32 %v942, 2147483648
    %v947 = vmul.f32 %v944, 1.442695
    %v948 = vpow.pop %v947
    %v949 = vmul.f32 %v945, 1.442695
    %v950 = vpow.pop %v949
    %v951 = vmul.f32 %v946, 1.442695
    %v952 = vpow.pop %v951
    %v953 = vadd.f32 %v948, 1.0
    %v954 = vadd.f32 %v950, 1.0
    %v955 = vadd.f32 %v952, 1.0
    %v956 = vrcp.pop %v953
    %v957 = vmul.f32 1.0, %v956
    %v958 = vrcp.pop %v954
    %v959 = vmul.f32 1.0, %v958
    %v960 = vrcp.pop %v955
    %v961 = vmul.f32 1.0, %v960
    %v962 = vtanh.pop %v943
    %v964 = vrot.slane %v839, 6
    %v966 = vmul.f32 %v959, %v964
    %v967 = vmul.f32 %v957, %v962
    %v968 = vadd.f32 %v966, %v967
    %v969 = vtanh.pop %v968
    %v970 = vmul.f32 %v961, %v969
    %v971 = vpack.c.bf16 %v970, %v970
    %v973 = vrot.slane %v971, 3
    %975 = vmatprep.subr.bf16.mxu0 %v414
    %976 = vmatpush1.bf16.msra.mxu0 %v413
    %977 = vmatprep.subr.bf16.mxu0 %v418
    %978 = vmatpush1.bf16.msra.mxu0 %v417
    %979 = vmatprep.subr.bf16.mxu0 %v422
    %980 = vmatpush1.bf16.msra.mxu0 %v421
    %981 = vmatprep.subr.bf16.mxu0 %v426
    %982 = vmatpush1.bf16.msra.mxu0 %v425
    %983 = vmatprep.subr.bf16.mxu0 %v430
    %984 = vmatpush1.bf16.msra.mxu0 %v429
    %985 = vmatprep.subr.bf16.mxu0 %v434
    %986 = vmatpush1.bf16.msra.mxu0 %v433
    %987 = vmatprep.subr.bf16.mxu0 %v438
    %988 = vmatpush1.bf16.msra.mxu0 %v437
    %989 = vmatprep.subr.bf16.mxu0 %v442
    %990 = vmatpush1.bf16.msra.mxu0 %v441
    %991 = vmatprep.subr.bf16.mxu0 0
    %992 = vmatpush1.bf16.msra.mxu0 0
    %993 = vmatprep.subr.bf16.mxu0 0
    %994 = vmatpush1.bf16.msra.mxu0 0
    %995 = vmatprep.subr.bf16.mxu0 0
    %996 = vmatpush1.bf16.msra.mxu0 0
    %997 = vmatprep.subr.bf16.mxu0 0
    %998 = vmatpush1.bf16.msra.mxu0 0
    %999 = vmatprep.subr.bf16.mxu0 0
    %1000 = vmatpush1.bf16.msra.mxu0 0
    %1001 = vmatprep.subr.bf16.mxu0 0
    %1002 = vmatpush1.bf16.msra.mxu0 0
    %1003 = vmatprep.subr.bf16.mxu0 0
    %1004 = vmatpush1.bf16.msra.mxu0 0
    %1005 = vmatprep.subr.bf16.mxu0 0
    %1006 = vmatpush1.bf16.msra.mxu0 0
    %1007 = vmatprep.mubr.bf16.mxu0 0
    %1008 = vmatmul.mubr.bf16.gmra.mrb[0].mxu0 %v973
    %v1009 = vpop.f32.mrb[0].mxu0
    %v1010 = vadd.f32 0.0, %v1009
    %v1011 = vpop.f32.mrb[0].mxu0
    %v1012 = vadd.f32 0.0, %v1011
    %v1013 = vpop.f32.mrb[0].mxu0
    %v1014 = vpop.f32.mrb[0].mxu0
    %1015 = vdwg.mxu0
    %1016 = vmatprep.subr.bf16.mxu0 %v416
    %1017 = vmatpush1.bf16.msra.mxu0 %v415
    %1018 = vmatprep.subr.bf16.mxu0 %v420
    %1019 = vmatpush1.bf16.msra.mxu0 %v419
    %1020 = vmatprep.subr.bf16.mxu0 %v424
    %1021 = vmatpush1.bf16.msra.mxu0 %v423
    %1022 = vmatprep.subr.bf16.mxu0 %v428
    %1023 = vmatpush1.bf16.msra.mxu0 %v427
    %1024 = vmatprep.subr.bf16.mxu0 %v432
    %1025 = vmatpush1.bf16.msra.mxu0 %v431
    %1026 = vmatprep.subr.bf16.mxu0 %v436
    %1027 = vmatpush1.bf16.msra.mxu0 %v435
    %1028 = vmatprep.subr.bf16.mxu0 %v440
    %1029 = vmatpush1.bf16.msra.mxu0 %v439
    %1030 = vmatprep.subr.bf16.mxu0 %v444
    %1031 = vmatpush1.bf16.msra.mxu0 %v443
    %1032 = vmatprep.subr.bf16.mxu0 0
    %1033 = vmatpush1.bf16.msra.mxu0 0
    %1034 = vmatprep.subr.bf16.mxu0 0
    %1035 = vmatpush1.bf16.msra.mxu0 0
    %1036 = vmatprep.subr.bf16.mxu0 0
    %1037 = vmatpush1.bf16.msra.mxu0 0
    %1038 = vmatprep.subr.bf16.mxu0 0
    %1039 = vmatpush1.bf16.msra.mxu0 0
    %1040 = vmatprep.subr.bf16.mxu0 0
    %1041 = vmatpush1.bf16.msra.mxu0 0
    %1042 = vmatprep.subr.bf16.mxu0 0
    %1043 = vmatpush1.bf16.msra.mxu0 0
    %1044 = vmatprep.subr.bf16.mxu0 0
    %1045 = vmatpush1.bf16.msra.mxu0 0
    %1046 = vmatprep.subr.bf16.mxu0 0
    %1047 = vmatpush1.bf16.msra.mxu0 0
    %1048 = vmatprep.mubr.bf16.mxu0 0
    %1049 = vmatmul.mubr.bf16.gmra.mrb[0].mxu0 %v973
    %v1050 = vpop.f32.mrb[0].mxu0
    %v1051 = vadd.f32 0.0, %v1050
    %v1052 = vpop.f32.mrb[0].mxu0
    %v1053 = vadd.f32 0.0, %v1052
    %v1054 = vpop.f32.mrb[0].mxu0
    %v1055 = vpop.f32.mrb[0].mxu0
    %1056 = vdwg.mxu0
    %v1057 = vadd.f32 %v235, %v1010
    %v1058 = vadd.f32 %v237, %v1012
    %v1059 = vadd.f32 %v278, %v1051
    %v1060 = vadd.f32 %v280, %v1053
    %v1061 = vxor.u32 %v1057, 2147483648
    %v1062 = vxor.u32 %v1058, 2147483648
    %v1063 = vxor.u32 %v1059, 2147483648
    %v1064 = vmul.f32 %v1061, 1.442695
    %v1065 = vpow.pop %v1064
    %v1066 = vmul.f32 %v1062, 1.442695
    %v1067 = vpow.pop %v1066
    %v1068 = vmul.f32 %v1063, 1.442695
    %v1069 = vpow.pop %v1068
    %v1070 = vadd.f32 %v1065, 1.0
    %v1071 = vadd.f32 %v1067, 1.0
    %v1072 = vadd.f32 %v1069, 1.0
    %v1073 = vrcp.pop %v1070
    %v1074 = vmul.f32 1.0, %v1073
    %v1075 = vrcp.pop %v1071
    %v1076 = vmul.f32 1.0, %v1075
    %v1077 = vrcp.pop %v1072
    %v1078 = vmul.f32 1.0, %v1077
    %v1079 = vtanh.pop %v1060
    %v1081 = vrot.slane %v968, 6
    %v1083 = vmul.f32 %v1076, %v1081
    %v1084 = vmul.f32 %v1074, %v1079
    %v1085 = vadd.f32 %v1083, %v1084
    %v1086 = vtanh.pop %v1085
    %v1087 = vmul.f32 %v1078, %v1086
    %v1088 = vpack.c.bf16 %v1087, %v1087
    %1089 = vmatprep.subr.bf16.mxu0 %v414
    %1090 = vmatpush1.bf16.msra.mxu0 %v413
    %1091 = vmatprep.subr.bf16.mxu0 %v418
    %1092 = vmatpush1.bf16.msra.mxu0 %v417
    %1093 = vmatprep.subr.bf16.mxu0 %v422
    %1094 = vmatpush1.bf16.msra.mxu0 %v421
    %1095 = vmatprep.subr.bf16.mxu0 %v426
    %1096 = vmatpush1.bf16.msra.mxu0 %v425
    %1097 = vmatprep.subr.bf16.mxu0 %v430
    %1098 = vmatpush1.bf16.msra.mxu0 %v429
    %1099 = vmatprep.subr.bf16.mxu0 %v434
    %1100 = vmatpush1.bf16.msra.mxu0 %v433
    %1101 = vmatprep.subr.bf16.mxu0 %v438
    %1102 = vmatpush1.bf16.msra.mxu0 %v437
    %1103 = vmatprep.subr.bf16.mxu0 %v442
    %1104 = vmatpush1.bf16.msra.mxu0 %v441
    %1105 = vmatprep.subr.bf16.mxu0 0
    %1106 = vmatpush1.bf16.msra.mxu0 0
    %1107 = vmatprep.subr.bf16.mxu0 0
    %1108 = vmatpush1.bf16.msra.mxu0 0
    %1109 = vmatprep.subr.bf16.mxu0 0
    %1110 = vmatpush1.bf16.msra.mxu0 0
    %1111 = vmatprep.subr.bf16.mxu0 0
    %1112 = vmatpush1.bf16.msra.mxu0 0
    %1113 = vmatprep.subr.bf16.mxu0 0
    %1114 = vmatpush1.bf16.msra.mxu0 0
    %1115 = vmatprep.subr.bf16.mxu0 0
    %1116 = vmatpush1.bf16.msra.mxu0 0
    %1117 = vmatprep.subr.bf16.mxu0 0
    %1118 = vmatpush1.bf16.msra.mxu0 0
    %1119 = vmatprep.subr.bf16.mxu0 0
    %1120 = vmatpush1.bf16.msra.mxu0 0
    %1121 = vmatprep.mubr.bf16.mxu0 0
    %1122 = vmatmul.mubr.bf16.gmra.mrb[0].mxu0 %v1088
    %v1123 = vpop.f32.mrb[0].mxu0
    %v1124 = vadd.f32 0.0, %v1123
    %v1125 = vpop.f32.mrb[0].mxu0
    %v1126 = vadd.f32 0.0, %v1125
    %v1127 = vpop.f32.mrb[0].mxu0
    %v1128 = vpop.f32.mrb[0].mxu0
    %1129 = vdwg.mxu0
    %1130 = vmatprep.subr.bf16.mxu0 %v416
    %1131 = vmatpush1.bf16.msra.mxu0 %v415
    %1132 = vmatprep.subr.bf16.mxu0 %v420
    %1133 = vmatpush1.bf16.msra.mxu0 %v419
    %1134 = vmatprep.subr.bf16.mxu0 %v424
    %1135 = vmatpush1.bf16.msra.mxu0 %v423
    %1136 = vmatprep.subr.bf16.mxu0 %v428
    %1137 = vmatpush1.bf16.msra.mxu0 %v427
    %1138 = vmatprep.subr.bf16.mxu0 %v432
    %1139 = vmatpush1.bf16.msra.mxu0 %v431
    %1140 = vmatprep.subr.bf16.mxu0 %v436
    %1141 = vmatpush1.bf16.msra.mxu0 %v435
    %1142 = vmatprep.subr.bf16.mxu0 %v440
    %1143 = vmatpush1.bf16.msra.mxu0 %v439
    %1144 = vmatprep.subr.bf16.mxu0 %v444
    %1145 = vmatpush1.bf16.msra.mxu0 %v443
    %1146 = vmatprep.subr.bf16.mxu0 0
    %1147 = vmatpush1.bf16.msra.mxu0 0
    %1148 = vmatprep.subr.bf16.mxu0 0
    %1149 = vmatpush1.bf16.msra.mxu0 0
    %1150 = vmatprep.subr.bf16.mxu0 0
    %1151 = vmatpush1.bf16.msra.mxu0 0
    %1152 = vmatprep.subr.bf16.mxu0 0
    %1153 = vmatpush1.bf16.msra.mxu0 0
    %1154 = vmatprep.subr.bf16.mxu0 0
    %1155 = vmatpush1.bf16.msra.mxu0 0
    %1156 = vmatprep.subr.bf16.mxu0 0
    %1157 = vmatpush1.bf16.msra.mxu0 0
    %1158 = vmatprep.subr.bf16.mxu0 0
    %1159 = vmatpush1.bf16.msra.mxu0 0
    %1160 = vmatprep.subr.bf16.mxu0 0
    %1161 = vmatpush1.bf16.msra.mxu0 0
    %1162 = vmatprep.mubr.bf16.mxu0 0
    %1163 = vmatmul.mubr.bf16.gmra.mrb[0].mxu0 %v1088
    %v1164 = vpop.f32.mrb[0].mxu0
    %v1165 = vadd.f32 0.0, %v1164
    %v1166 = vpop.f32.mrb[0].mxu0
    %v1167 = vadd.f32 0.0, %v1166
    %v1168 = vpop.f32.mrb[0].mxu0
    %v1169 = vpop.f32.mrb[0].mxu0
    %1170 = vdwg.mxu0
    %v1175 = vrot.slane %v1124, 6
    %v1176 = vrot.slane %v1126, 6
    %v1177 = vrot.slane %v1165, 6
    %v1178 = vrot.slane %v1167, 6
    %v1183 = vadd.f32 %v235, %v1175
    %v1184 = vadd.f32 %v237, %v1176
    %v1185 = vadd.f32 %v278, %v1177
    %v1186 = vadd.f32 %v280, %v1178
    %v1187 = vxor.u32 %v1183, 2147483648
    %v1188 = vxor.u32 %v1184, 2147483648
    %v1189 = vxor.u32 %v1185, 2147483648
    %v1190 = vmul.f32 %v1187, 1.442695
    %v1191 = vpow.pop %v1190
    %v1192 = vmul.f32 %v1188, 1.442695
    %v1193 = vpow.pop %v1192
    %v1194 = vmul.f32 %v1189, 1.442695
    %v1195 = vpow.pop %v1194
    %v1196 = vadd.f32 %v1191, 1.0
    %v1197 = vadd.f32 %v1193, 1.0
    %v1198 = vadd.f32 %v1195, 1.0
    %v1199 = vrcp.pop %v1196
    %v1200 = vmul.f32 1.0, %v1199
    %v1201 = vrcp.pop %v1197
    %v1202 = vmul.f32 1.0, %v1201
    %v1203 = vrcp.pop %v1198
    %v1204 = vmul.f32 1.0, %v1203
    %v1205 = vtanh.pop %v1186
    %v1207 = vrot.slane %v1085, 6
    %v1209 = vmul.f32 %v1202, %v1207
    %v1210 = vmul.f32 %v1200, %v1205
    %v1211 = vadd.f32 %v1209, %v1210
    %v1212 = vtanh.pop %v1211
    %v1213 = vmul.f32 %v1204, %v1212
    %v1214 = vpack.c.bf16 %v1213, %v1213
    %v1216 = vrot.slane %v1214, 1
    %1218 = vmatprep.subr.bf16.mxu0 %v414
    %1219 = vmatpush1.bf16.msra.mxu0 %v413
    %1220 = vmatprep.subr.bf16.mxu0 %v418
    %1221 = vmatpush1.bf16.msra.mxu0 %v417
    %1222 = vmatprep.subr.bf16.mxu0 %v422
    %1223 = vmatpush1.bf16.msra.mxu0 %v421
    %1224 = vmatprep.subr.bf16.mxu0 %v426
    %1225 = vmatpush1.bf16.msra.mxu0 %v425
    %1226 = vmatprep.subr.bf16.mxu0 %v430
    %1227 = vmatpush1.bf16.msra.mxu0 %v429
    %1228 = vmatprep.subr.bf16.mxu0 %v434
    %1229 = vmatpush1.bf16.msra.mxu0 %v433
    %1230 = vmatprep.subr.bf16.mxu0 %v438
    %1231 = vmatpush1.bf16.msra.mxu0 %v437
    %1232 = vmatprep.subr.bf16.mxu0 %v442
    %1233 = vmatpush1.bf16.msra.mxu0 %v441
    %1234 = vmatprep.subr.bf16.mxu0 0
    %1235 = vmatpush1.bf16.msra.mxu0 0
    %1236 = vmatprep.subr.bf16.mxu0 0
    %1237 = vmatpush1.bf16.msra.mxu0 0
    %1238 = vmatprep.subr.bf16.mxu0 0
    %1239 = vmatpush1.bf16.msra.mxu0 0
    %1240 = vmatprep.subr.bf16.mxu0 0
    %1241 = vmatpush1.bf16.msra.mxu0 0
    %1242 = vmatprep.subr.bf16.mxu0 0
    %1243 = vmatpush1.bf16.msra.mxu0 0
    %1244 = vmatprep.subr.bf16.mxu0 0
    %1245 = vmatpush1.bf16.msra.mxu0 0
    %1246 = vmatprep.subr.bf16.mxu0 0
    %1247 = vmatpush1.bf16.msra.mxu0 0
    %1248 = vmatprep.subr.bf16.mxu0 0
    %1249 = vmatpush1.bf16.msra.mxu0 0
    %1250 = vmatprep.mubr.bf16.mxu0 0
    %1251 = vmatmul.mubr.bf16.gmra.mrb[0].mxu0 %v1216
    %v1252 = vpop.f32.mrb[0].mxu0
    %v1253 = vadd.f32 0.0, %v1252
    %v1254 = vpop.f32.mrb[0].mxu0
    %v1255 = vadd.f32 0.0, %v1254
    %v1256 = vpop.f32.mrb[0].mxu0
    %v1257 = vpop.f32.mrb[0].mxu0
    %1258 = vdwg.mxu0
    %1259 = vmatprep.subr.bf16.mxu0 %v416
    %1260 = vmatpush1.bf16.msra.mxu0 %v415
    %1261 = vmatprep.subr.bf16.mxu0 %v420
    %1262 = vmatpush1.bf16.msra.mxu0 %v419
    %1263 = vmatprep.subr.bf16.mxu0 %v424
    %1264 = vmatpush1.bf16.msra.mxu0 %v423
    %1265 = vmatprep.subr.bf16.mxu0 %v428
    %1266 = vmatpush1.bf16.msra.mxu0 %v427
    %1267 = vmatprep.subr.bf16.mxu0 %v432
    %1268 = vmatpush1.bf16.msra.mxu0 %v431
    %1269 = vmatprep.subr.bf16.mxu0 %v436
    %1270 = vmatpush1.bf16.msra.mxu0 %v435
    %1271 = vmatprep.subr.bf16.mxu0 %v440
    %1272 = vmatpush1.bf16.msra.mxu0 %v439
    %1273 = vmatprep.subr.bf16.mxu0 %v444
    %1274 = vmatpush1.bf16.msra.mxu0 %v443
    %1275 = vmatprep.subr.bf16.mxu0 0
    %1276 = vmatpush1.bf16.msra.mxu0 0
    %1277 = vmatprep.subr.bf16.mxu0 0
    %1278 = vmatpush1.bf16.msra.mxu0 0
    %1279 = vmatprep.subr.bf16.mxu0 0
    %1280 = vmatpush1.bf16.msra.mxu0 0
    %1281 = vmatprep.subr.bf16.mxu0 0
    %1282 = vmatpush1.bf16.msra.mxu0 0
    %1283 = vmatprep.subr.bf16.mxu0 0
    %1284 = vmatpush1.bf16.msra.mxu0 0
    %1285 = vmatprep.subr.bf16.mxu0 0
    %1286 = vmatpush1.bf16.msra.mxu0 0
    %1287 = vmatprep.subr.bf16.mxu0 0
    %1288 = vmatpush1.bf16.msra.mxu0 0
    %1289 = vmatprep.subr.bf16.mxu0 0
    %1290 = vmatpush1.bf16.msra.mxu0 0
    %1291 = vmatprep.mubr.bf16.mxu0 0
    %1292 = vmatmul.mubr.bf16.gmra.mrb[0].mxu0 %v1216
    %v1293 = vpop.f32.mrb[0].mxu0
    %v1294 = vadd.f32 0.0, %v1293
    %v1295 = vpop.f32.mrb[0].mxu0
    %v1296 = vadd.f32 0.0, %v1295
    %v1297 = vpop.f32.mrb[0].mxu0
    %v1298 = vpop.f32.mrb[0].mxu0
    %1299 = vdwg.mxu0
    %v1304 = vrot.slane %v1253, 4
    %v1305 = vrot.slane %v1255, 4
    %v1306 = vrot.slane %v1294, 4
    %v1307 = vrot.slane %v1296, 4
    %v1312 = vadd.f32 %v235, %v1304
    %v1313 = vadd.f32 %v237, %v1305
    %v1314 = vadd.f32 %v278, %v1306
    %v1315 = vadd.f32 %v280, %v1307
    %v1316 = vxor.u32 %v1312, 2147483648
    %v1317 = vxor.u32 %v1313, 2147483648
    %v1318 = vxor.u32 %v1314, 2147483648
    %v1319 = vmul.f32 %v1316, 1.442695
    %v1320 = vpow.pop %v1319
    %v1321 = vmul.f32 %v1317, 1.442695
    %v1322 = vpow.pop %v1321
    %v1323 = vmul.f32 %v1318, 1.442695
    %v1324 = vpow.pop %v1323
    %v1325 = vadd.f32 %v1320, 1.0
    %v1326 = vadd.f32 %v1322, 1.0
    %v1327 = vadd.f32 %v1324, 1.0
    %v1328 = vrcp.pop %v1325
    %v1329 = vmul.f32 1.0, %v1328
    %v1330 = vrcp.pop %v1326
    %v1331 = vmul.f32 1.0, %v1330
    %v1332 = vrcp.pop %v1327
    %v1333 = vmul.f32 1.0, %v1332
    %v1334 = vtanh.pop %v1315
    %v1336 = vrot.slane %v1211, 6
    %v1338 = vmul.f32 %v1331, %v1336
    %v1339 = vmul.f32 %v1329, %v1334
    %v1340 = vadd.f32 %v1338, %v1339
    %v1341 = vtanh.pop %v1340
    %v1342 = vmul.f32 %v1333, %v1341
    %v1343 = vpack.c.bf16 %v1342, %v1342
    %v1345 = vrot.slane %v1343, 2
    %1347 = vmatprep.subr.bf16.mxu0 %v414
    %1348 = vmatpush1.bf16.msra.mxu0 %v413
    %1349 = vmatprep.subr.bf16.mxu0 %v418
    %1350 = vmatpush1.bf16.msra.mxu0 %v417
    %1351 = vmatprep.subr.bf16.mxu0 %v422
    %1352 = vmatpush1.bf16.msra.mxu0 %v421
    %1353 = vmatprep.subr.bf16.mxu0 %v426
    %1354 = vmatpush1.bf16.msra.mxu0 %v425
    %1355 = vmatprep.subr.bf16.mxu0 %v430
    %1356 = vmatpush1.bf16.msra.mxu0 %v429
    %1357 = vmatprep.subr.bf16.mxu0 %v434
    %1358 = vmatpush1.bf16.msra.mxu0 %v433
    %1359 = vmatprep.subr.bf16.mxu0 %v438
    %1360 = vmatpush1.bf16.msra.mxu0 %v437
    %1361 = vmatprep.subr.bf16.mxu0 %v442
    %1362 = vmatpush1.bf16.msra.mxu0 %v441
    %1363 = vmatprep.subr.bf16.mxu0 0
    %1364 = vmatpush1.bf16.msra.mxu0 0
    %1365 = vmatprep.subr.bf16.mxu0 0
    %1366 = vmatpush1.bf16.msra.mxu0 0
    %1367 = vmatprep.subr.bf16.mxu0 0
    %1368 = vmatpush1.bf16.msra.mxu0 0
    %1369 = vmatprep.subr.bf16.mxu0 0
    %1370 = vmatpush1.bf16.msra.mxu0 0
    %1371 = vmatprep.subr.bf16.mxu0 0
    %1372 = vmatpush1.bf16.msra.mxu0 0
    %1373 = vmatprep.subr.bf16.mxu0 0
    %1374 = vmatpush1.bf16.msra.mxu0 0
    %1375 = vmatprep.subr.bf16.mxu0 0
    %1376 = vmatpush1.bf16.msra.mxu0 0
    %1377 = vmatprep.subr.bf16.mxu0 0
    %1378 = vmatpush1.bf16.msra.mxu0 0
    %1379 = vmatprep.mubr.bf16.mxu0 0
    %1380 = vmatmul.mubr.bf16.gmra.mrb[0].mxu0 %v1345
    %v1381 = vpop.f32.mrb[0].mxu0
    %v1382 = vadd.f32 0.0, %v1381
    %v1383 = vpop.f32.mrb[0].mxu0
    %v1384 = vadd.f32 0.0, %v1383
    %v1385 = vpop.f32.mrb[0].mxu0
    %v1386 = vpop.f32.mrb[0].mxu0
    %1387 = vdwg.mxu0
    %1388 = vmatprep.subr.bf16.mxu0 %v416
    %1389 = vmatpush1.bf16.msra.mxu0 %v415
    %1390 = vmatprep.subr.bf16.mxu0 %v420
    %1391 = vmatpush1.bf16.msra.mxu0 %v419
    %1392 = vmatprep.subr.bf16.mxu0 %v424
    %1393 = vmatpush1.bf16.msra.mxu0 %v423
    %1394 = vmatprep.subr.bf16.mxu0 %v428
    %1395 = vmatpush1.bf16.msra.mxu0 %v427
    %1396 = vmatprep.subr.bf16.mxu0 %v432
    %1397 = vmatpush1.bf16.msra.mxu0 %v431
    %1398 = vmatprep.subr.bf16.mxu0 %v436
    %1399 = vmatpush1.bf16.msra.mxu0 %v435
    %1400 = vmatprep.subr.bf16.mxu0 %v440
    %1401 = vmatpush1.bf16.msra.mxu0 %v439
    %1402 = vmatprep.subr.bf16.mxu0 %v444
    %1403 = vmatpush1.bf16.msra.mxu0 %v443
    %1404 = vmatprep.subr.bf16.mxu0 0
    %1405 = vmatpush1.bf16.msra.mxu0 0
    %1406 = vmatprep.subr.bf16.mxu0 0
    %1407 = vmatpush1.bf16.msra.mxu0 0
    %1408 = vmatprep.subr.bf16.mxu0 0
    %1409 = vmatpush1.bf16.msra.mxu0 0
    %1410 = vmatprep.subr.bf16.mxu0 0
    %1411 = vmatpush1.bf16.msra.mxu0 0
    %1412 = vmatprep.subr.bf16.mxu0 0
    %1413 = vmatpush1.bf16.msra.mxu0 0
    %1414 = vmatprep.subr.bf16.mxu0 0
    %1415 = vmatpush1.bf16.msra.mxu0 0
    %1416 = vmatprep.subr.bf16.mxu0 0
    %1417 = vmatpush1.bf16.msra.mxu0 0
    %1418 = vmatprep.subr.bf16.mxu0 0
    %1419 = vmatpush1.bf16.msra.mxu0 0
    %1420 = vmatprep.mubr.bf16.mxu0 0
    %1421 = vmatmul.mubr.bf16.gmra.mrb[0].mxu0 %v1345
    %v1422 = vpop.f32.mrb[0].mxu0
    %v1423 = vadd.f32 0.0, %v1422
    %v1424 = vpop.f32.mrb[0].mxu0
    %v1425 = vadd.f32 0.0, %v1424
    %v1426 = vpop.f32.mrb[0].mxu0
    %v1427 = vpop.f32.mrb[0].mxu0
    %1428 = vdwg.mxu0
    %v1433 = vrot.slane %v1382, 2
    %v1434 = vrot.slane %v1384, 2
    %v1435 = vrot.slane %v1423, 2
    %v1436 = vrot.slane %v1425, 2
    %v1441 = vadd.f32 %v235, %v1433
    %v1442 = vadd.f32 %v237, %v1434
    %v1443 = vadd.f32 %v278, %v1435
    %v1444 = vadd.f32 %v280, %v1436
    %v1445 = vxor.u32 %v1441, 2147483648
    %v1446 = vxor.u32 %v1442, 2147483648
    %v1447 = vxor.u32 %v1443, 2147483648
    %v1448 = vmul.f32 %v1445, 1.442695
    %v1449 = vpow.pop %v1448
    %v1450 = vmul.f32 %v1446, 1.442695
    %v1451 = vpow.pop %v1450
    %v1452 = vmul.f32 %v1447, 1.442695
    %v1453 = vpow.pop %v1452
    %v1454 = vadd.f32 %v1449, 1.0
    %v1455 = vadd.f32 %v1451, 1.0
    %v1456 = vadd.f32 %v1453, 1.0
    %v1457 = vrcp.pop %v1454
    %v1458 = vmul.f32 1.0, %v1457
    %v1459 = vrcp.pop %v1455
    %v1460 = vmul.f32 1.0, %v1459
    %v1461 = vrcp.pop %v1456
    %v1462 = vmul.f32 1.0, %v1461
    %v1463 = vtanh.pop %v1444
    %v1465 = vrot.slane %v1340, 6
    %v1467 = vmul.f32 %v1460, %v1465
    %v1468 = vmul.f32 %v1458, %v1463
    %v1469 = vadd.f32 %v1467, %v1468
    %v1470 = vtanh.pop %v1469
    %v1471 = vmul.f32 %v1462, %v1470
    %v1472 = vpack.c.bf16 %v1471, %v1471
    %1473 = vst [vmem:[#allocation13 - $0x6] sm:$0xc0] %v1471
    %1474 = vst [vmem:[#allocation14 - $0x6] sm:$0xc0] %v1469
    %v1476 = vrot.slane %v1088, 4
    %v1477 = vrot.slane %v1214, 4
    %v1478 = vrot.slane %v1343, 4
    %v1480 = vrot.slane %v1472, 4
    %vm1481 = vcmask 1040384
    %v1484 = vsel %vm1481, %v587, %v713
    %vm1485 = vcmask 1041408
    %v1487 = vsel %vm1485, %v1484, %v842
    %vm1488 = vcmask 1042432
    %v1490 = vsel %vm1488, %v1487, %v971
    %vm1491 = vcmask 1043456
    %v1493 = vsel %vm1491, %v1490, %v1476
    %vm1494 = vcmask 1044480
    %v1496 = vsel %vm1494, %v1493, %v1477
    %vm1497 = vcmask 1045504
    %v1499 = vsel %vm1497, %v1496, %v1478
    %vm1500 = vcmask 1046528
    %v1502 = vsel %vm1500, %v1499, %v1480
    %v1504 = vld [vmem:[#allocation8] sm:$0xff]
    %v1505 = vld [vmem:[#allocation8 + $0x8] sm:$0xff]
    %v1506 = vld [vmem:[#allocation8 + $0x10] sm:$0xff]
    %v1507 = vld [vmem:[#allocation8 + $0x18] sm:$0xff]
    %v1508 = vld [vmem:[#allocation8 + $0x20] sm:$0xff]
    %v1509 = vld [vmem:[#allocation8 + $0x28] sm:$0xff]
    %v1510 = vld [vmem:[#allocation8 + $0x30] sm:$0xff]
    %v1511 = vld [vmem:[#allocation8 + $0x38] sm:$0xff]
    %v1512 = vld [vmem:[#allocation8 + $0x40] sm:$0xff]
    %v1513 = vld [vmem:[#allocation8 + $0x48] sm:$0xff]
    %v1514 = vld [vmem:[#allocation8 + $0x50] sm:$0xff]
    %v1515 = vld [vmem:[#allocation8 + $0x58] sm:$0xff]
    %v1516 = vld [vmem:[#allocation8 + $0x60] sm:$0xff]
    %v1517 = vld [vmem:[#allocation8 + $0x68] sm:$0xff]
    %v1518 = vld [vmem:[#allocation8 + $0x70] sm:$0xff]
    %v1519 = vld [vmem:[#allocation8 + $0x78] sm:$0xff]
    %v1520 = vld [vmem:[#allocation8 + $0x80] sm:$0xff]
    %v1521 = vld [vmem:[#allocation8 + $0x88] sm:$0xff]
    %v1522 = vld [vmem:[#allocation8 + $0x90] sm:$0xff]
    %v1523 = vld [vmem:[#allocation8 + $0x98] sm:$0xff]
    %v1524 = vld [vmem:[#allocation8 + $0xa0] sm:$0xff]
    %v1525 = vld [vmem:[#allocation8 + $0xa8] sm:$0xff]
    %v1526 = vld [vmem:[#allocation8 + $0xb0] sm:$0xff]
    %v1527 = vld [vmem:[#allocation8 + $0xb8] sm:$0xff]
    %v1528 = vld [vmem:[#allocation8 + $0xc0] sm:$0xff]
    %v1529 = vld [vmem:[#allocation8 + $0xc8] sm:$0xff]
    %v1530 = vld [vmem:[#allocation8 + $0xd0] sm:$0xff]
    %v1531 = vld [vmem:[#allocation8 + $0xd8] sm:$0xff]
    %v1532 = vld [vmem:[#allocation8 + $0xe0] sm:$0xff]
    %v1533 = vld [vmem:[#allocation8 + $0xe8] sm:$0xff]
    %v1534 = vld [vmem:[#allocation8 + $0xf0] sm:$0xff]
    %v1535 = vld [vmem:[#allocation8 + $0xf8] sm:$0xff]
    %v1536 = vld [vmem:[%s8] sm:$0xf]
    %v1538 = vlaneseq
    %v1539 = vshrl.u32 %v1538, 7
    %v1540 = vsub.s32 0, %v1539
    %v1541 = vrot.slane %v1536, %v1540
    %v1542 = vlaneseq
    %v1543 = vshrl.u32 %v1542, 7
    %v1544 = vsub.s32 1, %v1543
    %v1545 = vrot.slane %v1536, %v1544
    %v1546 = vlaneseq
    %v1547 = vshrl.u32 %v1546, 7
    %v1548 = vsub.s32 2, %v1547
    %v1549 = vrot.slane %v1536, %v1548
    %v1550 = vlaneseq
    %v1551 = vshrl.u32 %v1550, 7
    %v1552 = vsub.s32 3, %v1551
    %v1553 = vrot.slane %v1536, %v1552
    %v1590 = vunpack.c.l.b16 %v1504
    %v1591 = vunpack.c.h.b16 %v1504
    %v1592 = vunpack.c.l.b16 %v1505
    %v1593 = vunpack.c.h.b16 %v1505
    %v1594 = vunpack.c.l.b16 %v1506
    %v1595 = vunpack.c.h.b16 %v1506
    %v1596 = vunpack.c.l.b16 %v1507
    %v1597 = vunpack.c.h.b16 %v1507
    %v1598 = vunpack.c.l.b16 %v1508
    %v1599 = vunpack.c.h.b16 %v1508
    %v1600 = vunpack.c.l.b16 %v1509
    %v1601 = vunpack.c.h.b16 %v1509
    %v1602 = vunpack.c.l.b16 %v1510
    %v1603 = vunpack.c.h.b16 %v1510
    %v1604 = vunpack.c.l.b16 %v1511
    %v1605 = vunpack.c.h.b16 %v1511
    %v1606 = vunpack.c.l.b16 %v1512
    %v1607 = vunpack.c.h.b16 %v1512
    %v1608 = vunpack.c.l.b16 %v1513
    %v1609 = vunpack.c.h.b16 %v1513
    %v1610 = vunpack.c.l.b16 %v1514
    %v1611 = vunpack.c.h.b16 %v1514
    %v1612 = vunpack.c.l.b16 %v1515
    %v1613 = vunpack.c.h.b16 %v1515
    %v1614 = vunpack.c.l.b16 %v1516
    %v1615 = vunpack.c.h.b16 %v1516
    %v1616 = vunpack.c.l.b16 %v1517
    %v1617 = vunpack.c.h.b16 %v1517
    %v1618 = vunpack.c.l.b16 %v1518
    %v1619 = vunpack.c.h.b16 %v1518
    %v1620 = vunpack.c.l.b16 %v1519
    %v1621 = vunpack.c.h.b16 %v1519
    %v1622 = vunpack.c.l.b16 %v1520
    %v1623 = vunpack.c.h.b16 %v1520
    %v1624 = vunpack.c.l.b16 %v1521
    %v1625 = vunpack.c.h.b16 %v1521
    %v1626 = vunpack.c.l.b16 %v1522
    %v1627 = vunpack.c.h.b16 %v1522
    %v1628 = vunpack.c.l.b16 %v1523
    %v1629 = vunpack.c.h.b16 %v1523
    %v1630 = vunpack.c.l.b16 %v1524
    %v1631 = vunpack.c.h.b16 %v1524
    %v1632 = vunpack.c.l.b16 %v1525
    %v1633 = vunpack.c.h.b16 %v1525
    %v1634 = vunpack.c.l.b16 %v1526
    %v1635 = vunpack.c.h.b16 %v1526
    %v1636 = vunpack.c.l.b16 %v1527
    %v1637 = vunpack.c.h.b16 %v1527
    %v1638 = vunpack.c.l.b16 %v1528
    %v1639 = vunpack.c.h.b16 %v1528
    %v1640 = vunpack.c.l.b16 %v1529
    %v1641 = vunpack.c.h.b16 %v1529
    %v1642 = vunpack.c.l.b16 %v1530
    %v1643 = vunpack.c.h.b16 %v1530
    %v1644 = vunpack.c.l.b16 %v1531
    %v1645 = vunpack.c.h.b16 %v1531
    %v1646 = vunpack.c.l.b16 %v1532
    %v1647 = vunpack.c.h.b16 %v1532
    %v1648 = vunpack.c.l.b16 %v1533
    %v1649 = vunpack.c.h.b16 %v1533
    %v1650 = vunpack.c.l.b16 %v1534
    %v1651 = vunpack.c.h.b16 %v1534
    %v1652 = vunpack.c.l.b16 %v1535
    %v1653 = vunpack.c.h.b16 %v1535
    %v1654 = vpack.c.b16 %v1594, %v1590
    %v1655 = vpack.c.b16 %v1595, %v1591
    %v1656 = vpack.c.b16 %v1596, %v1592
    %v1657 = vpack.c.b16 %v1597, %v1593
    %v1658 = vpack.c.b16 %v1602, %v1598
    %v1659 = vpack.c.b16 %v1603, %v1599
    %v1660 = vpack.c.b16 %v1604, %v1600
    %v1661 = vpack.c.b16 %v1605, %v1601
    %v1662 = vpack.c.b16 %v1610, %v1606
    %v1663 = vpack.c.b16 %v1611, %v1607
    %v1664 = vpack.c.b16 %v1612, %v1608
    %v1665 = vpack.c.b16 %v1613, %v1609
    %v1666 = vpack.c.b16 %v1618, %v1614
    %v1667 = vpack.c.b16 %v1619, %v1615
    %v1668 = vpack.c.b16 %v1620, %v1616
    %v1669 = vpack.c.b16 %v1621, %v1617
    %v1670 = vpack.c.b16 %v1626, %v1622
    %v1671 = vpack.c.b16 %v1627, %v1623
    %v1672 = vpack.c.b16 %v1628, %v1624
    %v1673 = vpack.c.b16 %v1629, %v1625
    %v1674 = vpack.c.b16 %v1634, %v1630
    %v1675 = vpack.c.b16 %v1635, %v1631
    %v1676 = vpack.c.b16 %v1636, %v1632
    %v1677 = vpack.c.b16 %v1637, %v1633
    %v1678 = vpack.c.b16 %v1642, %v1638
    %v1679 = vpack.c.b16 %v1643, %v1639
    %v1680 = vpack.c.b16 %v1644, %v1640
    %v1681 = vpack.c.b16 %v1645, %v1641
    %v1682 = vpack.c.b16 %v1650, %v1646
    %v1683 = vpack.c.b16 %v1651, %v1647
    %v1684 = vpack.c.b16 %v1652, %v1648
    %v1685 = vpack.c.b16 %v1653, %v1649
    %1718 = vmatprep.subr.bf16.mxu0 %v1655
    %1719 = vmatpush1.bf16.msra.mxu0 %v1654
    %1720 = vmatprep.subr.bf16.mxu0 %v1659
    %1721 = vmatpush1.bf16.msra.mxu0 %v1658
    %1722 = vmatprep.subr.bf16.mxu0 %v1663
    %1723 = vmatpush1.bf16.msra.mxu0 %v1662
    %1724 = vmatprep.subr.bf16.mxu0 %v1667
    %1725 = vmatpush1.bf16.msra.mxu0 %v1666
    %1726 = vmatprep.subr.bf16.mxu0 %v1671
    %1727 = vmatpush1.bf16.msra.mxu0 %v1670
    %1728 = vmatprep.subr.bf16.mxu0 %v1675
    %1729 = vmatpush1.bf16.msra.mxu0 %v1674
    %1730 = vmatprep.subr.bf16.mxu0 %v1679
    %1731 = vmatpush1.bf16.msra.mxu0 %v1678
    %1732 = vmatprep.subr.bf16.mxu0 %v1683
    %1733 = vmatpush1.bf16.msra.mxu0 %v1682
    %1734 = vmatprep.subr.bf16.mxu0 0
    %1735 = vmatpush1.bf16.msra.mxu0 0
    %1736 = vmatprep.subr.bf16.mxu0 0
    %1737 = vmatpush1.bf16.msra.mxu0 0
    %1738 = vmatprep.subr.bf16.mxu0 0
    %1739 = vmatpush1.bf16.msra.mxu0 0
    %1740 = vmatprep.subr.bf16.mxu0 0
    %1741 = vmatpush1.bf16.msra.mxu0 0
    %1742 = vmatprep.subr.bf16.mxu0 0
    %1743 = vmatpush1.bf16.msra.mxu0 0
    %1744 = vmatprep.subr.bf16.mxu0 0
    %1745 = vmatpush1.bf16.msra.mxu0 0
    %1746 = vmatprep.subr.bf16.mxu0 0
    %1747 = vmatpush1.bf16.msra.mxu0 0
    %1748 = vmatprep.subr.bf16.mxu0 0
    %1749 = vmatpush1.bf16.msra.mxu0 0
    %1750 = vmatprep.mubr.bf16.mxu0 0
    %1751 = vmatmul.mubr.bf16.gmra.mrb[0].mxu0 %v1502
    %v1752 = vpop.f32.mrb[0].mxu0
    %v1753 = vadd.f32 %v1541, %v1752
    %v1754 = vpop.f32.mrb[0].mxu0
    %v1755 = vadd.f32 %v1545, %v1754
    %v1756 = vpop.f32.mrb[0].mxu0
    %v1757 = vadd.f32 %v1541, %v1756
    %v1758 = vpop.f32.mrb[0].mxu0
    %v1759 = vadd.f32 %v1545, %v1758
    %1760 = vdwg.mxu0
    %1761 = vmatprep.subr.bf16.mxu0 %v1657
    %1762 = vmatpush1.bf16.msra.mxu0 %v1656
    %1763 = vmatprep.subr.bf16.mxu0 %v1661
    %1764 = vmatpush1.bf16.msra.mxu0 %v1660
    %1765 = vmatprep.subr.bf16.mxu0 %v1665
    %1766 = vmatpush1.bf16.msra.mxu0 %v1664
    %1767 = vmatprep.subr.bf16.mxu0 %v1669
    %1768 = vmatpush1.bf16.msra.mxu0 %v1668
    %1769 = vmatprep.subr.bf16.mxu0 %v1673
    %1770 = vmatpush1.bf16.msra.mxu0 %v1672
    %1771 = vmatprep.subr.bf16.mxu0 %v1677
    %1772 = vmatpush1.bf16.msra.mxu0 %v1676
    %1773 = vmatprep.subr.bf16.mxu0 %v1681
    %1774 = vmatpush1.bf16.msra.mxu0 %v1680
    %1775 = vmatprep.subr.bf16.mxu0 %v1685
    %1776 = vmatpush1.bf16.msra.mxu0 %v1684
    %1777 = vmatprep.subr.bf16.mxu0 0
    %1778 = vmatpush1.bf16.msra.mxu0 0
    %1779 = vmatprep.subr.bf16.mxu0 0
    %1780 = vmatpush1.bf16.msra.mxu0 0
    %1781 = vmatprep.subr.bf16.mxu0 0
    %1782 = vmatpush1.bf16.msra.mxu0 0
    %1783 = vmatprep.subr.bf16.mxu0 0
    %1784 = vmatpush1.bf16.msra.mxu0 0
    %1785 = vmatprep.subr.bf16.mxu0 0
    %1786 = vmatpush1.bf16.msra.mxu0 0
    %1787 = vmatprep.subr.bf16.mxu0 0
    %1788 = vmatpush1.bf16.msra.mxu0 0
    %1789 = vmatprep.subr.bf16.mxu0 0
    %1790 = vmatpush1.bf16.msra.mxu0 0
    %1791 = vmatprep.subr.bf16.mxu0 0
    %1792 = vmatpush1.bf16.msra.mxu0 0
    %1793 = vmatprep.mubr.bf16.mxu0 0
    %1794 = vmatmul.mubr.bf16.gmra.mrb[0].mxu0 %v1502
    %v1795 = vpop.f32.mrb[0].mxu0
    %v1796 = vadd.f32 %v1549, %v1795
    %v1797 = vpop.f32.mrb[0].mxu0
    %v1798 = vadd.f32 %v1553, %v1797
    %v1799 = vpop.f32.mrb[0].mxu0
    %v1800 = vadd.f32 %v1549, %v1799
    %v1801 = vpop.f32.mrb[0].mxu0
    %v1802 = vadd.f32 %v1553, %v1801
    %1803 = vdwg.mxu0
    %s1804 = scalar_lea.vmem [#allocation5], 2
    %v1805 = vld [vmem:[%s1804] sm:$0x3]
    %s1806 = scalar_lea.vmem %s2, 2
    %v1807 = vld [vmem:[%s1806] sm:$0x3]
    %v1808 = vpack.c.bf16 %v1805, %v1805
    %v1809 = vld [vmem:[#allocation11] sm:$0xff]
    %v1810 = vld [vmem:[#allocation11 + $0x8] sm:$0xff]
    %v1811 = vld [vmem:[#allocation11 + $0x10] sm:$0xff]
    %v1812 = vld [vmem:[#allocation11 + $0x18] sm:$0xff]
    %v1813 = vld [vmem:[#allocation11 + $0x20] sm:$0xff]
    %v1814 = vld [vmem:[#allocation11 + $0x28] sm:$0xff]
    %v1815 = vld [vmem:[#allocation11 + $0x30] sm:$0xff]
    %v1816 = vld [vmem:[#allocation11 + $0x38] sm:$0xff]
    %v1817 = vld [vmem:[#allocation11 + $0x40] sm:$0xff]
    %v1818 = vld [vmem:[#allocation11 + $0x48] sm:$0xff]
    %v1819 = vld [vmem:[#allocation11 + $0x50] sm:$0xff]
    %v1820 = vld [vmem:[#allocation11 + $0x58] sm:$0xff]
    %v1821 = vld [vmem:[#allocation11 + $0x60] sm:$0xff]
    %v1822 = vld [vmem:[#allocation11 + $0x68] sm:$0xff]
    %v1823 = vld [vmem:[#allocation11 + $0x70] sm:$0xff]
    %v1824 = vld [vmem:[#allocation11 + $0x78] sm:$0xff]
    %v1825 = vld [vmem:[#allocation11 + $0x80] sm:$0xff]
    %v1826 = vld [vmem:[#allocation11 + $0x88] sm:$0xff]
    %v1827 = vld [vmem:[#allocation11 + $0x90] sm:$0xff]
    %v1828 = vld [vmem:[#allocation11 + $0x98] sm:$0xff]
    %v1829 = vld [vmem:[#allocation11 + $0xa0] sm:$0xff]
    %v1830 = vld [vmem:[#allocation11 + $0xa8] sm:$0xff]
    %v1831 = vld [vmem:[#allocation11 + $0xb0] sm:$0xff]
    %v1832 = vld [vmem:[#allocation11 + $0xb8] sm:$0xff]
    %v1833 = vld [vmem:[#allocation11 + $0xc0] sm:$0xff]
    %v1834 = vld [vmem:[#allocation11 + $0xc8] sm:$0xff]
    %v1835 = vld [vmem:[#allocation11 + $0xd0] sm:$0xff]
    %v1836 = vld [vmem:[#allocation11 + $0xd8] sm:$0xff]
    %v1837 = vld [vmem:[#allocation11 + $0xe0] sm:$0xff]
    %v1838 = vld [vmem:[#allocation11 + $0xe8] sm:$0xff]
    %v1839 = vld [vmem:[#allocation11 + $0xf0] sm:$0xff]
    %v1840 = vld [vmem:[#allocation11 + $0xf8] sm:$0xff]
    %v1873 = vunpack.c.l.b16 %v1809
    %v1874 = vunpack.c.h.b16 %v1809
    %v1875 = vunpack.c.l.b16 %v1810
    %v1876 = vunpack.c.h.b16 %v1810
    %v1877 = vunpack.c.l.b16 %v1811
    %v1878 = vunpack.c.h.b16 %v1811
    %v1879 = vunpack.c.l.b16 %v1812
    %v1880 = vunpack.c.h.b16 %v1812
    %v1881 = vunpack.c.l.b16 %v1813
    %v1882 = vunpack.c.h.b16 %v1813
    %v1883 = vunpack.c.l.b16 %v1814
    %v1884 = vunpack.c.h.b16 %v1814
    %v1885 = vunpack.c.l.b16 %v1815
    %v1886 = vunpack.c.h.b16 %v1815
    %v1887 = vunpack.c.l.b16 %v1816
    %v1888 = vunpack.c.h.b16 %v1816
    %v1889 = vunpack.c.l.b16 %v1817
    %v1890 = vunpack.c.h.b16 %v1817
    %v1891 = vunpack.c.l.b16 %v1818
    %v1892 = vunpack.c.h.b16 %v1818
    %v1893 = vunpack.c.l.b16 %v1819
    %v1894 = vunpack.c.h.b16 %v1819
    %v1895 = vunpack.c.l.b16 %v1820
    %v1896 = vunpack.c.h.b16 %v1820
    %v1897 = vunpack.c.l.b16 %v1821
    %v1898 = vunpack.c.h.b16 %v1821
    %v1899 = vunpack.c.l.b16 %v1822
    %v1900 = vunpack.c.h.b16 %v1822
    %v1901 = vunpack.c.l.b16 %v1823
    %v1902 = vunpack.c.h.b16 %v1823
    %v1903 = vunpack.c.l.b16 %v1824
    %v1904 = vunpack.c.h.b16 %v1824
    %v1905 = vunpack.c.l.b16 %v1825
    %v1906 = vunpack.c.h.b16 %v1825
    %v1907 = vunpack.c.l.b16 %v1826
    %v1908 = vunpack.c.h.b16 %v1826
    %v1909 = vunpack.c.l.b16 %v1827
    %v1910 = vunpack.c.h.b16 %v1827
    %v1911 = vunpack.c.l.b16 %v1828
    %v1912 = vunpack.c.h.b16 %v1828
    %v1913 = vunpack.c.l.b16 %v1829
    %v1914 = vunpack.c.h.b16 %v1829
    %v1915 = vunpack.c.l.b16 %v1830
    %v1916 = vunpack.c.h.b16 %v1830
    %v1917 = vunpack.c.l.b16 %v1831
    %v1918 = vunpack.c.h.b16 %v1831
    %v1919 = vunpack.c.l.b16 %v1832
    %v1920 = vunpack.c.h.b16 %v1832
    %v1921 = vunpack.c.l.b16 %v1833
    %v1922 = vunpack.c.h.b16 %v1833
    %v1923 = vunpack.c.l.b16 %v1834
    %v1924 = vunpack.c.h.b16 %v1834
    %v1925 = vunpack.c.l.b16 %v1835
    %v1926 = vunpack.c.h.b16 %v1835
    %v1927 = vunpack.c.l.b16 %v1836
    %v1928 = vunpack.c.h.b16 %v1836
    %v1929 = vunpack.c.l.b16 %v1837
    %v1930 = vunpack.c.h.b16 %v1837
    %v1931 = vunpack.c.l.b16 %v1838
    %v1932 = vunpack.c.h.b16 %v1838
    %v1933 = vunpack.c.l.b16 %v1839
    %v1934 = vunpack.c.h.b16 %v1839
    %v1935 = vunpack.c.l.b16 %v1840
    %v1936 = vunpack.c.h.b16 %v1840
    %v1937 = vpack.c.b16 %v1877, %v1873
    %v1938 = vpack.c.b16 %v1878, %v1874
    %v1939 = vpack.c.b16 %v1879, %v1875
    %v1940 = vpack.c.b16 %v1880, %v1876
    %v1941 = vpack.c.b16 %v1885, %v1881
    %v1942 = vpack.c.b16 %v1886, %v1882
    %v1943 = vpack.c.b16 %v1887, %v1883
    %v1944 = vpack.c.b16 %v1888, %v1884
    %v1945 = vpack.c.b16 %v1893, %v1889
    %v1946 = vpack.c.b16 %v1894, %v1890
    %v1947 = vpack.c.b16 %v1895, %v1891
    %v1948 = vpack.c.b16 %v1896, %v1892
    %v1949 = vpack.c.b16 %v1901, %v1897
    %v1950 = vpack.c.b16 %v1902, %v1898
    %v1951 = vpack.c.b16 %v1903, %v1899
    %v1952 = vpack.c.b16 %v1904, %v1900
    %v1953 = vpack.c.b16 %v1909, %v1905
    %v1954 = vpack.c.b16 %v1910, %v1906
    %v1955 = vpack.c.b16 %v1911, %v1907
    %v1956 = vpack.c.b16 %v1912, %v1908
    %v1957 = vpack.c.b16 %v1917, %v1913
    %v1958 = vpack.c.b16 %v1918, %v1914
    %v1959 = vpack.c.b16 %v1919, %v1915
    %v1960 = vpack.c.b16 %v1920, %v1916
    %v1961 = vpack.c.b16 %v1925, %v1921
    %v1962 = vpack.c.b16 %v1926, %v1922
    %v1963 = vpack.c.b16 %v1927, %v1923
    %v1964 = vpack.c.b16 %v1928, %v1924
    %v1965 = vpack.c.b16 %v1933, %v1929
    %v1966 = vpack.c.b16 %v1934, %v1930
    %v1967 = vpack.c.b16 %v1935, %v1931
    %v1968 = vpack.c.b16 %v1936, %v1932
    %2001 = vmatprep.subr.bf16.mxu0 %v1938
    %2002 = vmatpush1.bf16.msra.mxu0 %v1937
    %2003 = vmatprep.subr.bf16.mxu0 %v1942
    %2004 = vmatpush1.bf16.msra.mxu0 %v1941
    %2005 = vmatprep.subr.bf16.mxu0 %v1946
    %2006 = vmatpush1.bf16.msra.mxu0 %v1945
    %2007 = vmatprep.subr.bf16.mxu0 %v1950
    %2008 = vmatpush1.bf16.msra.mxu0 %v1949
    %2009 = vmatprep.subr.bf16.mxu0 %v1954
    %2010 = vmatpush1.bf16.msra.mxu0 %v1953
    %2011 = vmatprep.subr.bf16.mxu0 %v1958
    %2012 = vmatpush1.bf16.msra.mxu0 %v1957
    %2013 = vmatprep.subr.bf16.mxu0 %v1962
    %2014 = vmatpush1.bf16.msra.mxu0 %v1961
    %2015 = vmatprep.subr.bf16.mxu0 %v1966
    %2016 = vmatpush1.bf16.msra.mxu0 %v1965
    %2017 = vmatprep.subr.bf16.mxu0 0
    %2018 = vmatpush1.bf16.msra.mxu0 0
    %2019 = vmatprep.subr.bf16.mxu0 0
    %2020 = vmatpush1.bf16.msra.mxu0 0
    %2021 = vmatprep.subr.bf16.mxu0 0
    %2022 = vmatpush1.bf16.msra.mxu0 0
    %2023 = vmatprep.subr.bf16.mxu0 0
    %2024 = vmatpush1.bf16.msra.mxu0 0
    %2025 = vmatprep.subr.bf16.mxu0 0
    %2026 = vmatpush1.bf16.msra.mxu0 0
    %2027 = vmatprep.subr.bf16.mxu0 0
    %2028 = vmatpush1.bf16.msra.mxu0 0
    %2029 = vmatprep.subr.bf16.mxu0 0
    %2030 = vmatpush1.bf16.msra.mxu0 0
    %2031 = vmatprep.subr.bf16.mxu0 0
    %2032 = vmatpush1.bf16.msra.mxu0 0
    %2033 = vmatprep.mubr.bf16.mxu0 0
    %2034 = vmatmul.mubr.bf16.gmra.mrb[0].mxu0 %v1808
    %v2035 = vpop.f32.mrb[0].mxu0
    %v2036 = vadd.f32 0.0, %v2035
    %v2037 = vpop.f32.mrb[0].mxu0
    %v2038 = vadd.f32 0.0, %v2037
    %v2039 = vpop.f32.mrb[0].mxu0
    %v2040 = vpop.f32.mrb[0].mxu0
    %2041 = vdwg.mxu0
    %2042 = vmatprep.subr.bf16.mxu0 %v1940
    %2043 = vmatpush1.bf16.msra.mxu0 %v1939
    %2044 = vmatprep.subr.bf16.mxu0 %v1944
    %2045 = vmatpush1.bf16.msra.mxu0 %v1943
    %2046 = vmatprep.subr.bf16.mxu0 %v1948
    %2047 = vmatpush1.bf16.msra.mxu0 %v1947
    %2048 = vmatprep.subr.bf16.mxu0 %v1952
    %2049 = vmatpush1.bf16.msra.mxu0 %v1951
    %2050 = vmatprep.subr.bf16.mxu0 %v1956
    %2051 = vmatpush1.bf16.msra.mxu0 %v1955
    %2052 = vmatprep.subr.bf16.mxu0 %v1960
    %2053 = vmatpush1.bf16.msra.mxu0 %v1959
    %2054 = vmatprep.subr.bf16.mxu0 %v1964
    %2055 = vmatpush1.bf16.msra.mxu0 %v1963
    %2056 = vmatprep.subr.bf16.mxu0 %v1968
    %2057 = vmatpush1.bf16.msra.mxu0 %v1967
    %2058 = vmatprep.subr.bf16.mxu0 0
    %2059 = vmatpush1.bf16.msra.mxu0 0
    %2060 = vmatprep.subr.bf16.mxu0 0
    %2061 = vmatpush1.bf16.msra.mxu0 0
    %2062 = vmatprep.subr.bf16.mxu0 0
    %2063 = vmatpush1.bf16.msra.mxu0 0
    %2064 = vmatprep.subr.bf16.mxu0 0
    %2065 = vmatpush1.bf16.msra.mxu0 0
    %2066 = vmatprep.subr.bf16.mxu0 0
    %2067 = vmatpush1.bf16.msra.mxu0 0
    %2068 = vmatprep.subr.bf16.mxu0 0
    %2069 = vmatpush1.bf16.msra.mxu0 0
    %2070 = vmatprep.subr.bf16.mxu0 0
    %2071 = vmatpush1.bf16.msra.mxu0 0
    %2072 = vmatprep.subr.bf16.mxu0 0
    %2073 = vmatpush1.bf16.msra.mxu0 0
    %2074 = vmatprep.mubr.bf16.mxu0 0
    %2075 = vmatmul.mubr.bf16.gmra.mrb[0].mxu0 %v1808
    %v2076 = vpop.f32.mrb[0].mxu0
    %v2077 = vadd.f32 0.0, %v2076
    %v2078 = vpop.f32.mrb[0].mxu0
    %v2079 = vadd.f32 0.0, %v2078
    %v2080 = vpop.f32.mrb[0].mxu0
    %v2081 = vpop.f32.mrb[0].mxu0
    %2082 = vdwg.mxu0
    %v2083 = vadd.f32 %v1753, %v2036
    %v2084 = vadd.f32 %v1755, %v2038
    %v2085 = vadd.f32 %v1796, %v2077
    %v2086 = vadd.f32 %v1798, %v2079
    %v2087 = vxor.u32 %v2083, 2147483648
    %v2088 = vxor.u32 %v2084, 2147483648
    %v2089 = vxor.u32 %v2085, 2147483648
    %v2090 = vmul.f32 %v2087, 1.442695
    %v2091 = vpow.pop %v2090
    %v2092 = vmul.f32 %v2088, 1.442695
    %v2093 = vpow.pop %v2092
    %v2094 = vmul.f32 %v2089, 1.442695
    %v2095 = vpow.pop %v2094
    %v2096 = vadd.f32 %v2091, 1.0
    %v2097 = vadd.f32 %v2093, 1.0
    %v2098 = vadd.f32 %v2095, 1.0
    %v2099 = vrcp.pop %v2096
    %v2100 = vmul.f32 1.0, %v2099
    %v2101 = vrcp.pop %v2097
    %v2102 = vmul.f32 1.0, %v2101
    %v2103 = vrcp.pop %v2098
    %v2104 = vmul.f32 1.0, %v2103
    %v2105 = vtanh.pop %v2086
    %v2106 = vmul.f32 %v2102, %v1807
    %v2107 = vmul.f32 %v2100, %v2105
    %v2108 = vadd.f32 %v2106, %v2107
    %v2109 = vtanh.pop %v2108
    %v2110 = vmul.f32 %v2104, %v2109
    %v2111 = vpack.c.bf16 %v2110, %v2110
    %2112 = vmatprep.subr.bf16.mxu0 %v1938
    %2113 = vmatpush1.bf16.msra.mxu0 %v1937
    %2114 = vmatprep.subr.bf16.mxu0 %v1942
    %2115 = vmatpush1.bf16.msra.mxu0 %v1941
    %2116 = vmatprep.subr.bf16.mxu0 %v1946
    %2117 = vmatpush1.bf16.msra.mxu0 %v1945
    %2118 = vmatprep.subr.bf16.mxu0 %v1950
    %2119 = vmatpush1.bf16.msra.mxu0 %v1949
    %2120 = vmatprep.subr.bf16.mxu0 %v1954
    %2121 = vmatpush1.bf16.msra.mxu0 %v1953
    %2122 = vmatprep.subr.bf16.mxu0 %v1958
    %2123 = vmatpush1.bf16.msra.mxu0 %v1957
    %2124 = vmatprep.subr.bf16.mxu0 %v1962
    %2125 = vmatpush1.bf16.msra.mxu0 %v1961
    %2126 = vmatprep.subr.bf16.mxu0 %v1966
    %2127 = vmatpush1.bf16.msra.mxu0 %v1965
    %2128 = vmatprep.subr.bf16.mxu0 0
    %2129 = vmatpush1.bf16.msra.mxu0 0
    %2130 = vmatprep.subr.bf16.mxu0 0
    %2131 = vmatpush1.bf16.msra.mxu0 0
    %2132 = vmatprep.subr.bf16.mxu0 0
    %2133 = vmatpush1.bf16.msra.mxu0 0
    %2134 = vmatprep.subr.bf16.mxu0 0
    %2135 = vmatpush1.bf16.msra.mxu0 0
    %2136 = vmatprep.subr.bf16.mxu0 0
    %2137 = vmatpush1.bf16.msra.mxu0 0
    %2138 = vmatprep.subr.bf16.mxu0 0
    %2139 = vmatpush1.bf16.msra.mxu0 0
    %2140 = vmatprep.subr.bf16.mxu0 0
    %2141 = vmatpush1.bf16.msra.mxu0 0
    %2142 = vmatprep.subr.bf16.mxu0 0
    %2143 = vmatpush1.bf16.msra.mxu0 0
    %2144 = vmatprep.mubr.bf16.mxu0 0
    %2145 = vmatmul.mubr.bf16.gmra.mrb[0].mxu0 %v2111
    %v2146 = vpop.f32.mrb[0].mxu0
    %v2147 = vadd.f32 0.0, %v2146
    %v2148 = vpop.f32.mrb[0].mxu0
    %v2149 = vadd.f32 0.0, %v2148
    %v2150 = vpop.f32.mrb[0].mxu0
    %v2151 = vpop.f32.mrb[0].mxu0
    %2152 = vdwg.mxu0
    %2153 = vmatprep.subr.bf16.mxu0 %v1940
    %2154 = vmatpush1.bf16.msra.mxu0 %v1939
    %2155 = vmatprep.subr.bf16.mxu0 %v1944
    %2156 = vmatpush1.bf16.msra.mxu0 %v1943
    %2157 = vmatprep.subr.bf16.mxu0 %v1948
    %2158 = vmatpush1.bf16.msra.mxu0 %v1947
    %2159 = vmatprep.subr.bf16.mxu0 %v1952
    %2160 = vmatpush1.bf16.msra.mxu0 %v1951
    %2161 = vmatprep.subr.bf16.mxu0 %v1956
    %2162 = vmatpush1.bf16.msra.mxu0 %v1955
    %2163 = vmatprep.subr.bf16.mxu0 %v1960
    %2164 = vmatpush1.bf16.msra.mxu0 %v1959
    %2165 = vmatprep.subr.bf16.mxu0 %v1964
    %2166 = vmatpush1.bf16.msra.mxu0 %v1963
    %2167 = vmatprep.subr.bf16.mxu0 %v1968
    %2168 = vmatpush1.bf16.msra.mxu0 %v1967
    %2169 = vmatprep.subr.bf16.mxu0 0
    %2170 = vmatpush1.bf16.msra.mxu0 0
    %2171 = vmatprep.subr.bf16.mxu0 0
    %2172 = vmatpush1.bf16.msra.mxu0 0
    %2173 = vmatprep.subr.bf16.mxu0 0
    %2174 = vmatpush1.bf16.msra.mxu0 0
    %2175 = vmatprep.subr.bf16.mxu0 0
    %2176 = vmatpush1.bf16.msra.mxu0 0
    %2177 = vmatprep.subr.bf16.mxu0 0
    %2178 = vmatpush1.bf16.msra.mxu0 0
    %2179 = vmatprep.subr.bf16.mxu0 0
    %2180 = vmatpush1.bf16.msra.mxu0 0
    %2181 = vmatprep.subr.bf16.mxu0 0
    %2182 = vmatpush1.bf16.msra.mxu0 0
    %2183 = vmatprep.subr.bf16.mxu0 0
    %2184 = vmatpush1.bf16.msra.mxu0 0
    %2185 = vmatprep.mubr.bf16.mxu0 0
    %2186 = vmatmul.mubr.bf16.gmra.mrb[0].mxu0 %v2111
    %v2187 = vpop.f32.mrb[0].mxu0
    %v2188 = vadd.f32 0.0, %v2187
    %v2189 = vpop.f32.mrb[0].mxu0
    %v2190 = vadd.f32 0.0, %v2189
    %v2191 = vpop.f32.mrb[0].mxu0
    %v2192 = vpop.f32.mrb[0].mxu0
    %2193 = vdwg.mxu0
    %v2198 = vrot.slane %v2147, 6
    %v2199 = vrot.slane %v2149, 6
    %v2200 = vrot.slane %v2188, 6
    %v2201 = vrot.slane %v2190, 6
    %v2206 = vadd.f32 %v1753, %v2198
    %v2207 = vadd.f32 %v1755, %v2199
    %v2208 = vadd.f32 %v1796, %v2200
    %v2209 = vadd.f32 %v1798, %v2201
    %v2210 = vxor.u32 %v2206, 2147483648
    %v2211 = vxor.u32 %v2207, 2147483648
    %v2212 = vxor.u32 %v2208, 2147483648
    %v2213 = vmul.f32 %v2210, 1.442695
    %v2214 = vpow.pop %v2213
    %v2215 = vmul.f32 %v2211, 1.442695
    %v2216 = vpow.pop %v2215
    %v2217 = vmul.f32 %v2212, 1.442695
    %v2218 = vpow.pop %v2217
    %v2219 = vadd.f32 %v2214, 1.0
    %v2220 = vadd.f32 %v2216, 1.0
    %v2221 = vadd.f32 %v2218, 1.0
    %v2222 = vrcp.pop %v2219
    %v2223 = vmul.f32 1.0, %v2222
    %v2224 = vrcp.pop %v2220
    %v2225 = vmul.f32 1.0, %v2224
    %v2226 = vrcp.pop %v2221
    %v2227 = vmul.f32 1.0, %v2226
    %v2228 = vtanh.pop %v2209
    %v2230 = vrot.slane %v2108, 6
    %v2232 = vmul.f32 %v2225, %v2230
    %v2233 = vmul.f32 %v2223, %v2228
    %v2234 = vadd.f32 %v2232, %v2233
    %v2235 = vtanh.pop %v2234
    %v2236 = vmul.f32 %v2227, %v2235
    %v2237 = vpack.c.bf16 %v2236, %v2236
    %v2239 = vrot.slane %v2237, 1
    %2241 = vmatprep.subr.bf16.mxu0 %v1938
    %2242 = vmatpush1.bf16.msra.mxu0 %v1937
    %2243 = vmatprep.subr.bf16.mxu0 %v1942
    %2244 = vmatpush1.bf16.msra.mxu0 %v1941
    %2245 = vmatprep.subr.bf16.mxu0 %v1946
    %2246 = vmatpush1.bf16.msra.mxu0 %v1945
    %2247 = vmatprep.subr.bf16.mxu0 %v1950
    %2248 = vmatpush1.bf16.msra.mxu0 %v1949
    %2249 = vmatprep.subr.bf16.mxu0 %v1954
    %2250 = vmatpush1.bf16.msra.mxu0 %v1953
    %2251 = vmatprep.subr.bf16.mxu0 %v1958
    %2252 = vmatpush1.bf16.msra.mxu0 %v1957
    %2253 = vmatprep.subr.bf16.mxu0 %v1962
    %2254 = vmatpush1.bf16.msra.mxu0 %v1961
    %2255 = vmatprep.subr.bf16.mxu0 %v1966
    %2256 = vmatpush1.bf16.msra.mxu0 %v1965
    %2257 = vmatprep.subr.bf16.mxu0 0
    %2258 = vmatpush1.bf16.msra.mxu0 0
    %2259 = vmatprep.subr.bf16.mxu0 0
    %2260 = vmatpush1.bf16.msra.mxu0 0
    %2261 = vmatprep.subr.bf16.mxu0 0
    %2262 = vmatpush1.bf16.msra.mxu0 0
    %2263 = vmatprep.subr.bf16.mxu0 0
    %2264 = vmatpush1.bf16.msra.mxu0 0
    %2265 = vmatprep.subr.bf16.mxu0 0
    %2266 = vmatpush1.bf16.msra.mxu0 0
    %2267 = vmatprep.subr.bf16.mxu0 0
    %2268 = vmatpush1.bf16.msra.mxu0 0
    %2269 = vmatprep.subr.bf16.mxu0 0
    %2270 = vmatpush1.bf16.msra.mxu0 0
    %2271 = vmatprep.subr.bf16.mxu0 0
    %2272 = vmatpush1.bf16.msra.mxu0 0
    %2273 = vmatprep.mubr.bf16.mxu0 0
    %2274 = vmatmul.mubr.bf16.gmra.mrb[0].mxu0 %v2239
    %v2275 = vpop.f32.mrb[0].mxu0
    %v2276 = vadd.f32 0.0, %v2275
    %v2277 = vpop.f32.mrb[0].mxu0
    %v2278 = vadd.f32 0.0, %v2277
    %v2279 = vpop.f32.mrb[0].mxu0
    %v2280 = vpop.f32.mrb[0].mxu0
    %2281 = vdwg.mxu0
    %2282 = vmatprep.subr.bf16.mxu0 %v1940
    %2283 = vmatpush1.bf16.msra.mxu0 %v1939
    %2284 = vmatprep.subr.bf16.mxu0 %v1944
    %2285 = vmatpush1.bf16.msra.mxu0 %v1943
    %2286 = vmatprep.subr.bf16.mxu0 %v1948
    %2287 = vmatpush1.bf16.msra.mxu0 %v1947
    %2288 = vmatprep.subr.bf16.mxu0 %v1952
    %2289 = vmatpush1.bf16.msra.mxu0 %v1951
    %2290 = vmatprep.subr.bf16.mxu0 %v1956
    %2291 = vmatpush1.bf16.msra.mxu0 %v1955
    %2292 = vmatprep.subr.bf16.mxu0 %v1960
    %2293 = vmatpush1.bf16.msra.mxu0 %v1959
    %2294 = vmatprep.subr.bf16.mxu0 %v1964
    %2295 = vmatpush1.bf16.msra.mxu0 %v1963
    %2296 = vmatprep.subr.bf16.mxu0 %v1968
    %2297 = vmatpush1.bf16.msra.mxu0 %v1967
    %2298 = vmatprep.subr.bf16.mxu0 0
    %2299 = vmatpush1.bf16.msra.mxu0 0
    %2300 = vmatprep.subr.bf16.mxu0 0
    %2301 = vmatpush1.bf16.msra.mxu0 0
    %2302 = vmatprep.subr.bf16.mxu0 0
    %2303 = vmatpush1.bf16.msra.mxu0 0
    %2304 = vmatprep.subr.bf16.mxu0 0
    %2305 = vmatpush1.bf16.msra.mxu0 0
    %2306 = vmatprep.subr.bf16.mxu0 0
    %2307 = vmatpush1.bf16.msra.mxu0 0
    %2308 = vmatprep.subr.bf16.mxu0 0
    %2309 = vmatpush1.bf16.msra.mxu0 0
    %2310 = vmatprep.subr.bf16.mxu0 0
    %2311 = vmatpush1.bf16.msra.mxu0 0
    %2312 = vmatprep.subr.bf16.mxu0 0
    %2313 = vmatpush1.bf16.msra.mxu0 0
    %2314 = vmatprep.mubr.bf16.mxu0 0
    %2315 = vmatmul.mubr.bf16.gmra.mrb[0].mxu0 %v2239
    %v2316 = vpop.f32.mrb[0].mxu0
    %v2317 = vadd.f32 0.0, %v2316
    %v2318 = vpop.f32.mrb[0].mxu0
    %v2319 = vadd.f32 0.0, %v2318
    %v2320 = vpop.f32.mrb[0].mxu0
    %v2321 = vpop.f32.mrb[0].mxu0
    %2322 = vdwg.mxu0
    %v2327 = vrot.slane %v2276, 4
    %v2328 = vrot.slane %v2278, 4
    %v2329 = vrot.slane %v2317, 4
    %v2330 = vrot.slane %v2319, 4
    %v2335 = vadd.f32 %v1753, %v2327
    %v2336 = vadd.f32 %v1755, %v2328
    %v2337 = vadd.f32 %v1796, %v2329
    %v2338 = vadd.f32 %v1798, %v2330
    %v2339 = vxor.u32 %v2335, 2147483648
    %v2340 = vxor.u32 %v2336, 2147483648
    %v2341 = vxor.u32 %v2337, 2147483648
    %v2342 = vmul.f32 %v2339, 1.442695
    %v2343 = vpow.pop %v2342
    %v2344 = vmul.f32 %v2340, 1.442695
    %v2345 = vpow.pop %v2344
    %v2346 = vmul.f32 %v2341, 1.442695
    %v2347 = vpow.pop %v2346
    %v2348 = vadd.f32 %v2343, 1.0
    %v2349 = vadd.f32 %v2345, 1.0
    %v2350 = vadd.f32 %v2347, 1.0
    %v2351 = vrcp.pop %v2348
    %v2352 = vmul.f32 1.0, %v2351
    %v2353 = vrcp.pop %v2349
    %v2354 = vmul.f32 1.0, %v2353
    %v2355 = vrcp.pop %v2350
    %v2356 = vmul.f32 1.0, %v2355
    %v2357 = vtanh.pop %v2338
    %v2359 = vrot.slane %v2234, 6
    %v2361 = vmul.f32 %v2354, %v2359
    %v2362 = vmul.f32 %v2352, %v2357
    %v2363 = vadd.f32 %v2361, %v2362
    %v2364 = vtanh.pop %v2363
    %v2365 = vmul.f32 %v2356, %v2364
    %v2366 = vpack.c.bf16 %v2365, %v2365
    %v2368 = vrot.slane %v2366, 2
    %2370 = vmatprep.subr.bf16.mxu0 %v1938
    %2371 = vmatpush1.bf16.msra.mxu0 %v1937
    %2372 = vmatprep.subr.bf16.mxu0 %v1942
    %2373 = vmatpush1.bf16.msra.mxu0 %v1941
    %2374 = vmatprep.subr.bf16.mxu0 %v1946
    %2375 = vmatpush1.bf16.msra.mxu0 %v1945
    %2376 = vmatprep.subr.bf16.mxu0 %v1950
    %2377 = vmatpush1.bf16.msra.mxu0 %v1949
    %2378 = vmatprep.subr.bf16.mxu0 %v1954
    %2379 = vmatpush1.bf16.msra.mxu0 %v1953
    %2380 = vmatprep.subr.bf16.mxu0 %v1958
    %2381 = vmatpush1.bf16.msra.mxu0 %v1957
    %2382 = vmatprep.subr.bf16.mxu0 %v1962
    %2383 = vmatpush1.bf16.msra.mxu0 %v1961
    %2384 = vmatprep.subr.bf16.mxu0 %v1966
    %2385 = vmatpush1.bf16.msra.mxu0 %v1965
    %2386 = vmatprep.subr.bf16.mxu0 0
    %2387 = vmatpush1.bf16.msra.mxu0 0
    %2388 = vmatprep.subr.bf16.mxu0 0
    %2389 = vmatpush1.bf16.msra.mxu0 0
    %2390 = vmatprep.subr.bf16.mxu0 0
    %2391 = vmatpush1.bf16.msra.mxu0 0
    %2392 = vmatprep.subr.bf16.mxu0 0
    %2393 = vmatpush1.bf16.msra.mxu0 0
    %2394 = vmatprep.subr.bf16.mxu0 0
    %2395 = vmatpush1.bf16.msra.mxu0 0
    %2396 = vmatprep.subr.bf16.mxu0 0
    %2397 = vmatpush1.bf16.msra.mxu0 0
    %2398 = vmatprep.subr.bf16.mxu0 0
    %2399 = vmatpush1.bf16.msra.mxu0 0
    %2400 = vmatprep.subr.bf16.mxu0 0
    %2401 = vmatpush1.bf16.msra.mxu0 0
    %2402 = vmatprep.mubr.bf16.mxu0 0
    %2403 = vmatmul.mubr.bf16.gmra.mrb[0].mxu0 %v2368
    %v2404 = vpop.f32.mrb[0].mxu0
    %v2405 = vadd.f32 0.0, %v2404
    %v2406 = vpop.f32.mrb[0].mxu0
    %v2407 = vadd.f32 0.0, %v2406
    %v2408 = vpop.f32.mrb[0].mxu0
    %v2409 = vpop.f32.mrb[0].mxu0
    %2410 = vdwg.mxu0
    %2411 = vmatprep.subr.bf16.mxu0 %v1940
    %2412 = vmatpush1.bf16.msra.mxu0 %v1939
    %2413 = vmatprep.subr.bf16.mxu0 %v1944
    %2414 = vmatpush1.bf16.msra.mxu0 %v1943
    %2415 = vmatprep.subr.bf16.mxu0 %v1948
    %2416 = vmatpush1.bf16.msra.mxu0 %v1947
    %2417 = vmatprep.subr.bf16.mxu0 %v1952
    %2418 = vmatpush1.bf16.msra.mxu0 %v1951
    %2419 = vmatprep.subr.bf16.mxu0 %v1956
    %2420 = vmatpush1.bf16.msra.mxu0 %v1955
    %2421 = vmatprep.subr.bf16.mxu0 %v1960
    %2422 = vmatpush1.bf16.msra.mxu0 %v1959
    %2423 = vmatprep.subr.bf16.mxu0 %v1964
    %2424 = vmatpush1.bf16.msra.mxu0 %v1963
    %2425 = vmatprep.subr.bf16.mxu0 %v1968
    %2426 = vmatpush1.bf16.msra.mxu0 %v1967
    %2427 = vmatprep.subr.bf16.mxu0 0
    %2428 = vmatpush1.bf16.msra.mxu0 0
    %2429 = vmatprep.subr.bf16.mxu0 0
    %2430 = vmatpush1.bf16.msra.mxu0 0
    %2431 = vmatprep.subr.bf16.mxu0 0
    %2432 = vmatpush1.bf16.msra.mxu0 0
    %2433 = vmatprep.subr.bf16.mxu0 0
    %2434 = vmatpush1.bf16.msra.mxu0 0
    %2435 = vmatprep.subr.bf16.mxu0 0
    %2436 = vmatpush1.bf16.msra.mxu0 0
    %2437 = vmatprep.subr.bf16.mxu0 0
    %2438 = vmatpush1.bf16.msra.mxu0 0
    %2439 = vmatprep.subr.bf16.mxu0 0
    %2440 = vmatpush1.bf16.msra.mxu0 0
    %2441 = vmatprep.subr.bf16.mxu0 0
    %2442 = vmatpush1.bf16.msra.mxu0 0
    %2443 = vmatprep.mubr.bf16.mxu0 0
    %2444 = vmatmul.mubr.bf16.gmra.mrb[0].mxu0 %v2368
    %v2445 = vpop.f32.mrb[0].mxu0
    %v2446 = vadd.f32 0.0, %v2445
    %v2447 = vpop.f32.mrb[0].mxu0
    %v2448 = vadd.f32 0.0, %v2447
    %v2449 = vpop.f32.mrb[0].mxu0
    %v2450 = vpop.f32.mrb[0].mxu0
    %2451 = vdwg.mxu0
    %v2456 = vrot.slane %v2405, 2
    %v2457 = vrot.slane %v2407, 2
    %v2458 = vrot.slane %v2446, 2
    %v2459 = vrot.slane %v2448, 2
    %v2464 = vadd.f32 %v1753, %v2456
    %v2465 = vadd.f32 %v1755, %v2457
    %v2466 = vadd.f32 %v1796, %v2458
    %v2467 = vadd.f32 %v1798, %v2459
    %v2468 = vxor.u32 %v2464, 2147483648
    %v2469 = vxor.u32 %v2465, 2147483648
    %v2470 = vxor.u32 %v2466, 2147483648
    %v2471 = vmul.f32 %v2468, 1.442695
    %v2472 = vpow.pop %v2471
    %v2473 = vmul.f32 %v2469, 1.442695
    %v2474 = vpow.pop %v2473
    %v2475 = vmul.f32 %v2470, 1.442695
    %v2476 = vpow.pop %v2475
    %v2477 = vadd.f32 %v2472, 1.0
    %v2478 = vadd.f32 %v2474, 1.0
    %v2479 = vadd.f32 %v2476, 1.0
    %v2480 = vrcp.pop %v2477
    %v2481 = vmul.f32 1.0, %v2480
    %v2482 = vrcp.pop %v2478
    %v2483 = vmul.f32 1.0, %v2482
    %v2484 = vrcp.pop %v2479
    %v2485 = vmul.f32 1.0, %v2484
    %v2486 = vtanh.pop %v2467
    %v2488 = vrot.slane %v2363, 6
    %v2490 = vmul.f32 %v2483, %v2488
    %v2491 = vmul.f32 %v2481, %v2486
    %v2492 = vadd.f32 %v2490, %v2491
    %v2493 = vtanh.pop %v2492
    %v2494 = vmul.f32 %v2485, %v2493
    %v2495 = vpack.c.bf16 %v2494, %v2494
    %v2497 = vrot.slane %v2495, 3
    %2499 = vmatprep.subr.bf16.mxu0 %v1938
    %2500 = vmatpush1.bf16.msra.mxu0 %v1937
    %2501 = vmatprep.subr.bf16.mxu0 %v1942
    %2502 = vmatpush1.bf16.msra.mxu0 %v1941
    %2503 = vmatprep.subr.bf16.mxu0 %v1946
    %2504 = vmatpush1.bf16.msra.mxu0 %v1945
    %2505 = vmatprep.subr.bf16.mxu0 %v1950
    %2506 = vmatpush1.bf16.msra.mxu0 %v1949
    %2507 = vmatprep.subr.bf16.mxu0 %v1954
    %2508 = vmatpush1.bf16.msra.mxu0 %v1953
    %2509 = vmatprep.subr.bf16.mxu0 %v1958
    %2510 = vmatpush1.bf16.msra.mxu0 %v1957
    %2511 = vmatprep.subr.bf16.mxu0 %v1962
    %2512 = vmatpush1.bf16.msra.mxu0 %v1961
    %2513 = vmatprep.subr.bf16.mxu0 %v1966
    %2514 = vmatpush1.bf16.msra.mxu0 %v1965
    %2515 = vmatprep.subr.bf16.mxu0 0
    %2516 = vmatpush1.bf16.msra.mxu0 0
    %2517 = vmatprep.subr.bf16.mxu0 0
    %2518 = vmatpush1.bf16.msra.mxu0 0
    %2519 = vmatprep.subr.bf16.mxu0 0
    %2520 = vmatpush1.bf16.msra.mxu0 0
    %2521 = vmatprep.subr.bf16.mxu0 0
    %2522 = vmatpush1.bf16.msra.mxu0 0
    %2523 = vmatprep.subr.bf16.mxu0 0
    %2524 = vmatpush1.bf16.msra.mxu0 0
    %2525 = vmatprep.subr.bf16.mxu0 0
    %2526 = vmatpush1.bf16.msra.mxu0 0
    %2527 = vmatprep.subr.bf16.mxu0 0
    %2528 = vmatpush1.bf16.msra.mxu0 0
    %2529 = vmatprep.subr.bf16.mxu0 0
    %2530 = vmatpush1.bf16.msra.mxu0 0
    %2531 = vmatprep.mubr.bf16.mxu0 0
    %2532 = vmatmul.mubr.bf16.gmra.mrb[0].mxu0 %v2497
    %v2533 = vpop.f32.mrb[0].mxu0
    %v2534 = vadd.f32 0.0, %v2533
    %v2535 = vpop.f32.mrb[0].mxu0
    %v2536 = vadd.f32 0.0, %v2535
    %v2537 = vpop.f32.mrb[0].mxu0
    %v2538 = vpop.f32.mrb[0].mxu0
    %2539 = vdwg.mxu0
    %2540 = vmatprep.subr.bf16.mxu0 %v1940
    %2541 = vmatpush1.bf16.msra.mxu0 %v1939
    %2542 = vmatprep.subr.bf16.mxu0 %v1944
    %2543 = vmatpush1.bf16.msra.mxu0 %v1943
    %2544 = vmatprep.subr.bf16.mxu0 %v1948
    %2545 = vmatpush1.bf16.msra.mxu0 %v1947
    %2546 = vmatprep.subr.bf16.mxu0 %v1952
    %2547 = vmatpush1.bf16.msra.mxu0 %v1951
    %2548 = vmatprep.subr.bf16.mxu0 %v1956
    %2549 = vmatpush1.bf16.msra.mxu0 %v1955
    %2550 = vmatprep.subr.bf16.mxu0 %v1960
    %2551 = vmatpush1.bf16.msra.mxu0 %v1959
    %2552 = vmatprep.subr.bf16.mxu0 %v1964
    %2553 = vmatpush1.bf16.msra.mxu0 %v1963
    %2554 = vmatprep.subr.bf16.mxu0 %v1968
    %2555 = vmatpush1.bf16.msra.mxu0 %v1967
    %2556 = vmatprep.subr.bf16.mxu0 0
    %2557 = vmatpush1.bf16.msra.mxu0 0
    %2558 = vmatprep.subr.bf16.mxu0 0
    %2559 = vmatpush1.bf16.msra.mxu0 0
    %2560 = vmatprep.subr.bf16.mxu0 0
    %2561 = vmatpush1.bf16.msra.mxu0 0
    %2562 = vmatprep.subr.bf16.mxu0 0
    %2563 = vmatpush1.bf16.msra.mxu0 0
    %2564 = vmatprep.subr.bf16.mxu0 0
    %2565 = vmatpush1.bf16.msra.mxu0 0
    %2566 = vmatprep.subr.bf16.mxu0 0
    %2567 = vmatpush1.bf16.msra.mxu0 0
    %2568 = vmatprep.subr.bf16.mxu0 0
    %2569 = vmatpush1.bf16.msra.mxu0 0
    %2570 = vmatprep.subr.bf16.mxu0 0
    %2571 = vmatpush1.bf16.msra.mxu0 0
    %2572 = vmatprep.mubr.bf16.mxu0 0
    %2573 = vmatmul.mubr.bf16.gmra.mrb[0].mxu0 %v2497
    %v2574 = vpop.f32.mrb[0].mxu0
    %v2575 = vadd.f32 0.0, %v2574
    %v2576 = vpop.f32.mrb[0].mxu0
    %v2577 = vadd.f32 0.0, %v2576
    %v2578 = vpop.f32.mrb[0].mxu0
    %v2579 = vpop.f32.mrb[0].mxu0
    %2580 = vdwg.mxu0
    %v2581 = vadd.f32 %v1757, %v2534
    %v2582 = vadd.f32 %v1759, %v2536
    %v2583 = vadd.f32 %v1800, %v2575
    %v2584 = vadd.f32 %v1802, %v2577
    %v2585 = vxor.u32 %v2581, 2147483648
    %v2586 = vxor.u32 %v2582, 2147483648
    %v2587 = vxor.u32 %v2583, 2147483648
    %v2588 = vmul.f32 %v2585, 1.442695
    %v2589 = vpow.pop %v2588
    %v2590 = vmul.f32 %v2586, 1.442695
    %v2591 = vpow.pop %v2590
    %v2592 = vmul.f32 %v2587, 1.442695
    %v2593 = vpow.pop %v2592
    %v2594 = vadd.f32 %v2589, 1.0
    %v2595 = vadd.f32 %v2591, 1.0
    %v2596 = vadd.f32 %v2593, 1.0
    %v2597 = vrcp.pop %v2594
    %v2598 = vmul.f32 1.0, %v2597
    %v2599 = vrcp.pop %v2595
    %v2600 = vmul.f32 1.0, %v2599
    %v2601 = vrcp.pop %v2596
    %v2602 = vmul.f32 1.0, %v2601
    %v2603 = vtanh.pop %v2584
    %v2605 = vrot.slane %v2492, 6
    %v2607 = vmul.f32 %v2600, %v2605
    %v2608 = vmul.f32 %v2598, %v2603
    %v2609 = vadd.f32 %v2607, %v2608
    %v2610 = vtanh.pop %v2609
    %v2611 = vmul.f32 %v2602, %v2610
    %v2612 = vpack.c.bf16 %v2611, %v2611
    %2613 = vmatprep.subr.bf16.mxu0 %v1938
    %2614 = vmatpush1.bf16.msra.mxu0 %v1937
    %2615 = vmatprep.subr.bf16.mxu0 %v1942
    %2616 = vmatpush1.bf16.msra.mxu0 %v1941
    %2617 = vmatprep.subr.bf16.mxu0 %v1946
    %2618 = vmatpush1.bf16.msra.mxu0 %v1945
    %2619 = vmatprep.subr.bf16.mxu0 %v1950
    %2620 = vmatpush1.bf16.msra.mxu0 %v1949
    %2621 = vmatprep.subr.bf16.mxu0 %v1954
    %2622 = vmatpush1.bf16.msra.mxu0 %v1953
    %2623 = vmatprep.subr.bf16.mxu0 %v1958
    %2624 = vmatpush1.bf16.msra.mxu0 %v1957
    %2625 = vmatprep.subr.bf16.mxu0 %v1962
    %2626 = vmatpush1.bf16.msra.mxu0 %v1961
    %2627 = vmatprep.subr.bf16.mxu0 %v1966
    %2628 = vmatpush1.bf16.msra.mxu0 %v1965
    %2629 = vmatprep.subr.bf16.mxu0 0
    %2630 = vmatpush1.bf16.msra.mxu0 0
    %2631 = vmatprep.subr.bf16.mxu0 0
    %2632 = vmatpush1.bf16.msra.mxu0 0
    %2633 = vmatprep.subr.bf16.mxu0 0
    %2634 = vmatpush1.bf16.msra.mxu0 0
    %2635 = vmatprep.subr.bf16.mxu0 0
    %2636 = vmatpush1.bf16.msra.mxu0 0
    %2637 = vmatprep.subr.bf16.mxu0 0
    %2638 = vmatpush1.bf16.msra.mxu0 0
    %2639 = vmatprep.subr.bf16.mxu0 0
    %2640 = vmatpush1.bf16.msra.mxu0 0
    %2641 = vmatprep.subr.bf16.mxu0 0
    %2642 = vmatpush1.bf16.msra.mxu0 0
    %2643 = vmatprep.subr.bf16.mxu0 0
    %2644 = vmatpush1.bf16.msra.mxu0 0
    %2645 = vmatprep.mubr.bf16.mxu0 0
    %2646 = vmatmul.mubr.bf16.gmra.mrb[0].mxu0 %v2612
    %v2647 = vpop.f32.mrb[0].mxu0
    %v2648 = vadd.f32 0.0, %v2647
    %v2649 = vpop.f32.mrb[0].mxu0
    %v2650 = vadd.f32 0.0, %v2649
    %v2651 = vpop.f32.mrb[0].mxu0
    %v2652 = vpop.f32.mrb[0].mxu0
    %2653 = vdwg.mxu0
    %2654 = vmatprep.subr.bf16.mxu0 %v1940
    %2655 = vmatpush1.bf16.msra.mxu0 %v1939
    %2656 = vmatprep.subr.bf16.mxu0 %v1944
    %2657 = vmatpush1.bf16.msra.mxu0 %v1943
    %2658 = vmatprep.subr.bf16.mxu0 %v1948
    %2659 = vmatpush1.bf16.msra.mxu0 %v1947
    %2660 = vmatprep.subr.bf16.mxu0 %v1952
    %2661 = vmatpush1.bf16.msra.mxu0 %v1951
    %2662 = vmatprep.subr.bf16.mxu0 %v1956
    %2663 = vmatpush1.bf16.msra.mxu0 %v1955
    %2664 = vmatprep.subr.bf16.mxu0 %v1960
    %2665 = vmatpush1.bf16.msra.mxu0 %v1959
    %2666 = vmatprep.subr.bf16.mxu0 %v1964
    %2667 = vmatpush1.bf16.msra.mxu0 %v1963
    %2668 = vmatprep.subr.bf16.mxu0 %v1968
    %2669 = vmatpush1.bf16.msra.mxu0 %v1967
    %2670 = vmatprep.subr.bf16.mxu0 0
    %2671 = vmatpush1.bf16.msra.mxu0 0
    %2672 = vmatprep.subr.bf16.mxu0 0
    %2673 = vmatpush1.bf16.msra.mxu0 0
    %2674 = vmatprep.subr.bf16.mxu0 0
    %2675 = vmatpush1.bf16.msra.mxu0 0
    %2676 = vmatprep.subr.bf16.mxu0 0
    %2677 = vmatpush1.bf16.msra.mxu0 0
    %2678 = vmatprep.subr.bf16.mxu0 0
    %2679 = vmatpush1.bf16.msra.mxu0 0
    %2680 = vmatprep.subr.bf16.mxu0 0
    %2681 = vmatpush1.bf16.msra.mxu0 0
    %2682 = vmatprep.subr.bf16.mxu0 0
    %2683 = vmatpush1.bf16.msra.mxu0 0
    %2684 = vmatprep.subr.bf16.mxu0 0
    %2685 = vmatpush1.bf16.msra.mxu0 0
    %2686 = vmatprep.mubr.bf16.mxu0 0
    %2687 = vmatmul.mubr.bf16.gmra.mrb[0].mxu0 %v2612
    %v2688 = vpop.f32.mrb[0].mxu0
    %v2689 = vadd.f32 0.0, %v2688
    %v2690 = vpop.f32.mrb[0].mxu0
    %v2691 = vadd.f32 0.0, %v2690
    %v2692 = vpop.f32.mrb[0].mxu0
    %v2693 = vpop.f32.mrb[0].mxu0
    %2694 = vdwg.mxu0
    %v2699 = vrot.slane %v2648, 6
    %v2700 = vrot.slane %v2650, 6
    %v2701 = vrot.slane %v2689, 6
    %v2702 = vrot.slane %v2691, 6
    %v2707 = vadd.f32 %v1757, %v2699
    %v2708 = vadd.f32 %v1759, %v2700
    %v2709 = vadd.f32 %v1800, %v2701
    %v2710 = vadd.f32 %v1802, %v2702
    %v2711 = vxor.u32 %v2707, 2147483648
    %v2712 = vxor.u32 %v2708, 2147483648
    %v2713 = vxor.u32 %v2709, 2147483648
    %v2714 = vmul.f32 %v2711, 1.442695
    %v2715 = vpow.pop %v2714
    %v2716 = vmul.f32 %v2712, 1.442695
    %v2717 = vpow.pop %v2716
    %v2718 = vmul.f32 %v2713, 1.442695
    %v2719 = vpow.pop %v2718
    %v2720 = vadd.f32 %v2715, 1.0
    %v2721 = vadd.f32 %v2717, 1.0
    %v2722 = vadd.f32 %v2719, 1.0
    %v2723 = vrcp.pop %v2720
    %v2724 = vmul.f32 1.0, %v2723
    %v2725 = vrcp.pop %v2721
    %v2726 = vmul.f32 1.0, %v2725
    %v2727 = vrcp.pop %v2722
    %v2728 = vmul.f32 1.0, %v2727
    %v2729 = vtanh.pop %v2710
    %v2731 = vrot.slane %v2609, 6
    %v2733 = vmul.f32 %v2726, %v2731
    %v2734 = vmul.f32 %v2724, %v2729
    %v2735 = vadd.f32 %v2733, %v2734
    %v2736 = vtanh.pop %v2735
    %v2737 = vmul.f32 %v2728, %v2736
    %v2738 = vpack.c.bf16 %v2737, %v2737
    %v2740 = vrot.slane %v2738, 1
    %2742 = vmatprep.subr.bf16.mxu0 %v1938
    %2743 = vmatpush1.bf16.msra.mxu0 %v1937
    %2744 = vmatprep.subr.bf16.mxu0 %v1942
    %2745 = vmatpush1.bf16.msra.mxu0 %v1941
    %2746 = vmatprep.subr.bf16.mxu0 %v1946
    %2747 = vmatpush1.bf16.msra.mxu0 %v1945
    %2748 = vmatprep.subr.bf16.mxu0 %v1950
    %2749 = vmatpush1.bf16.msra.mxu0 %v1949
    %2750 = vmatprep.subr.bf16.mxu0 %v1954
    %2751 = vmatpush1.bf16.msra.mxu0 %v1953
    %2752 = vmatprep.subr.bf16.mxu0 %v1958
    %2753 = vmatpush1.bf16.msra.mxu0 %v1957
    %2754 = vmatprep.subr.bf16.mxu0 %v1962
    %2755 = vmatpush1.bf16.msra.mxu0 %v1961
    %2756 = vmatprep.subr.bf16.mxu0 %v1966
    %2757 = vmatpush1.bf16.msra.mxu0 %v1965
    %2758 = vmatprep.subr.bf16.mxu0 0
    %2759 = vmatpush1.bf16.msra.mxu0 0
    %2760 = vmatprep.subr.bf16.mxu0 0
    %2761 = vmatpush1.bf16.msra.mxu0 0
    %2762 = vmatprep.subr.bf16.mxu0 0
    %2763 = vmatpush1.bf16.msra.mxu0 0
    %2764 = vmatprep.subr.bf16.mxu0 0
    %2765 = vmatpush1.bf16.msra.mxu0 0
    %2766 = vmatprep.subr.bf16.mxu0 0
    %2767 = vmatpush1.bf16.msra.mxu0 0
    %2768 = vmatprep.subr.bf16.mxu0 0
    %2769 = vmatpush1.bf16.msra.mxu0 0
    %2770 = vmatprep.subr.bf16.mxu0 0
    %2771 = vmatpush1.bf16.msra.mxu0 0
    %2772 = vmatprep.subr.bf16.mxu0 0
    %2773 = vmatpush1.bf16.msra.mxu0 0
    %2774 = vmatprep.mubr.bf16.mxu0 0
    %2775 = vmatmul.mubr.bf16.gmra.mrb[0].mxu0 %v2740
    %v2776 = vpop.f32.mrb[0].mxu0
    %v2777 = vadd.f32 0.0, %v2776
    %v2778 = vpop.f32.mrb[0].mxu0
    %v2779 = vadd.f32 0.0, %v2778
    %v2780 = vpop.f32.mrb[0].mxu0
    %v2781 = vpop.f32.mrb[0].mxu0
    %2782 = vdwg.mxu0
    %2783 = vmatprep.subr.bf16.mxu0 %v1940
    %2784 = vmatpush1.bf16.msra.mxu0 %v1939
    %2785 = vmatprep.subr.bf16.mxu0 %v1944
    %2786 = vmatpush1.bf16.msra.mxu0 %v1943
    %2787 = vmatprep.subr.bf16.mxu0 %v1948
    %2788 = vmatpush1.bf16.msra.mxu0 %v1947
    %2789 = vmatprep.subr.bf16.mxu0 %v1952
    %2790 = vmatpush1.bf16.msra.mxu0 %v1951
    %2791 = vmatprep.subr.bf16.mxu0 %v1956
    %2792 = vmatpush1.bf16.msra.mxu0 %v1955
    %2793 = vmatprep.subr.bf16.mxu0 %v1960
    %2794 = vmatpush1.bf16.msra.mxu0 %v1959
    %2795 = vmatprep.subr.bf16.mxu0 %v1964
    %2796 = vmatpush1.bf16.msra.mxu0 %v1963
    %2797 = vmatprep.subr.bf16.mxu0 %v1968
    %2798 = vmatpush1.bf16.msra.mxu0 %v1967
    %2799 = vmatprep.subr.bf16.mxu0 0
    %2800 = vmatpush1.bf16.msra.mxu0 0
    %2801 = vmatprep.subr.bf16.mxu0 0
    %2802 = vmatpush1.bf16.msra.mxu0 0
    %2803 = vmatprep.subr.bf16.mxu0 0
    %2804 = vmatpush1.bf16.msra.mxu0 0
    %2805 = vmatprep.subr.bf16.mxu0 0
    %2806 = vmatpush1.bf16.msra.mxu0 0
    %2807 = vmatprep.subr.bf16.mxu0 0
    %2808 = vmatpush1.bf16.msra.mxu0 0
    %2809 = vmatprep.subr.bf16.mxu0 0
    %2810 = vmatpush1.bf16.msra.mxu0 0
    %2811 = vmatprep.subr.bf16.mxu0 0
    %2812 = vmatpush1.bf16.msra.mxu0 0
    %2813 = vmatprep.subr.bf16.mxu0 0
    %2814 = vmatpush1.bf16.msra.mxu0 0
    %2815 = vmatprep.mubr.bf16.mxu0 0
    %2816 = vmatmul.mubr.bf16.gmra.mrb[0].mxu0 %v2740
    %v2817 = vpop.f32.mrb[0].mxu0
    %v2818 = vadd.f32 0.0, %v2817
    %v2819 = vpop.f32.mrb[0].mxu0
    %v2820 = vadd.f32 0.0, %v2819
    %v2821 = vpop.f32.mrb[0].mxu0
    %v2822 = vpop.f32.mrb[0].mxu0
    %2823 = vdwg.mxu0
    %v2828 = vrot.slane %v2777, 4
    %v2829 = vrot.slane %v2779, 4
    %v2830 = vrot.slane %v2818, 4
    %v2831 = vrot.slane %v2820, 4
    %v2836 = vadd.f32 %v1757, %v2828
    %v2837 = vadd.f32 %v1759, %v2829
    %v2838 = vadd.f32 %v1800, %v2830
    %v2839 = vadd.f32 %v1802, %v2831
    %v2840 = vxor.u32 %v2836, 2147483648
    %v2841 = vxor.u32 %v2837, 2147483648
    %v2842 = vxor.u32 %v2838, 2147483648
    %v2843 = vmul.f32 %v2840, 1.442695
    %v2844 = vpow.pop %v2843
    %v2845 = vmul.f32 %v2841, 1.442695
    %v2846 = vpow.pop %v2845
    %v2847 = vmul.f32 %v2842, 1.442695
    %v2848 = vpow.pop %v2847
    %v2849 = vadd.f32 %v2844, 1.0
    %v2850 = vadd.f32 %v2846, 1.0
    %v2851 = vadd.f32 %v2848, 1.0
    %v2852 = vrcp.pop %v2849
    %v2853 = vmul.f32 1.0, %v2852
    %v2854 = vrcp.pop %v2850
    %v2855 = vmul.f32 1.0, %v2854
    %v2856 = vrcp.pop %v2851
    %v2857 = vmul.f32 1.0, %v2856
    %v2858 = vtanh.pop %v2839
    %v2860 = vrot.slane %v2735, 6
    %v2862 = vmul.f32 %v2855, %v2860
    %v2863 = vmul.f32 %v2853, %v2858
    %v2864 = vadd.f32 %v2862, %v2863
    %v2865 = vtanh.pop %v2864
    %v2866 = vmul.f32 %v2857, %v2865
    %v2867 = vpack.c.bf16 %v2866, %v2866
    %v2869 = vrot.slane %v2867, 2
    %2871 = vmatprep.subr.bf16.mxu0 %v1938
    %2872 = vmatpush1.bf16.msra.mxu0 %v1937
    %2873 = vmatprep.subr.bf16.mxu0 %v1942
    %2874 = vmatpush1.bf16.msra.mxu0 %v1941
    %2875 = vmatprep.subr.bf16.mxu0 %v1946
    %2876 = vmatpush1.bf16.msra.mxu0 %v1945
    %2877 = vmatprep.subr.bf16.mxu0 %v1950
    %2878 = vmatpush1.bf16.msra.mxu0 %v1949
    %2879 = vmatprep.subr.bf16.mxu0 %v1954
    %2880 = vmatpush1.bf16.msra.mxu0 %v1953
    %2881 = vmatprep.subr.bf16.mxu0 %v1958
    %2882 = vmatpush1.bf16.msra.mxu0 %v1957
    %2883 = vmatprep.subr.bf16.mxu0 %v1962
    %2884 = vmatpush1.bf16.msra.mxu0 %v1961
    %2885 = vmatprep.subr.bf16.mxu0 %v1966
    %2886 = vmatpush1.bf16.msra.mxu0 %v1965
    %2887 = vmatprep.subr.bf16.mxu0 0
    %2888 = vmatpush1.bf16.msra.mxu0 0
    %2889 = vmatprep.subr.bf16.mxu0 0
    %2890 = vmatpush1.bf16.msra.mxu0 0
    %2891 = vmatprep.subr.bf16.mxu0 0
    %2892 = vmatpush1.bf16.msra.mxu0 0
    %2893 = vmatprep.subr.bf16.mxu0 0
    %2894 = vmatpush1.bf16.msra.mxu0 0
    %2895 = vmatprep.subr.bf16.mxu0 0
    %2896 = vmatpush1.bf16.msra.mxu0 0
    %2897 = vmatprep.subr.bf16.mxu0 0
    %2898 = vmatpush1.bf16.msra.mxu0 0
    %2899 = vmatprep.subr.bf16.mxu0 0
    %2900 = vmatpush1.bf16.msra.mxu0 0
    %2901 = vmatprep.subr.bf16.mxu0 0
    %2902 = vmatpush1.bf16.msra.mxu0 0
    %2903 = vmatprep.mubr.bf16.mxu0 0
    %2904 = vmatmul.mubr.bf16.gmra.mrb[0].mxu0 %v2869
    %v2905 = vpop.f32.mrb[0].mxu0
    %v2906 = vadd.f32 0.0, %v2905
    %v2907 = vpop.f32.mrb[0].mxu0
    %v2908 = vadd.f32 0.0, %v2907
    %v2909 = vpop.f32.mrb[0].mxu0
    %v2910 = vpop.f32.mrb[0].mxu0
    %2911 = vdwg.mxu0
    %2912 = vmatprep.subr.bf16.mxu0 %v1940
    %2913 = vmatpush1.bf16.msra.mxu0 %v1939
    %2914 = vmatprep.subr.bf16.mxu0 %v1944
    %2915 = vmatpush1.bf16.msra.mxu0 %v1943
    %2916 = vmatprep.subr.bf16.mxu0 %v1948
    %2917 = vmatpush1.bf16.msra.mxu0 %v1947
    %2918 = vmatprep.subr.bf16.mxu0 %v1952
    %2919 = vmatpush1.bf16.msra.mxu0 %v1951
    %2920 = vmatprep.subr.bf16.mxu0 %v1956
    %2921 = vmatpush1.bf16.msra.mxu0 %v1955
    %2922 = vmatprep.subr.bf16.mxu0 %v1960
    %2923 = vmatpush1.bf16.msra.mxu0 %v1959
    %2924 = vmatprep.subr.bf16.mxu0 %v1964
    %2925 = vmatpush1.bf16.msra.mxu0 %v1963
    %2926 = vmatprep.subr.bf16.mxu0 %v1968
    %2927 = vmatpush1.bf16.msra.mxu0 %v1967
    %2928 = vmatprep.subr.bf16.mxu0 0
    %2929 = vmatpush1.bf16.msra.mxu0 0
    %2930 = vmatprep.subr.bf16.mxu0 0
    %2931 = vmatpush1.bf16.msra.mxu0 0
    %2932 = vmatprep.subr.bf16.mxu0 0
    %2933 = vmatpush1.bf16.msra.mxu0 0
    %2934 = vmatprep.subr.bf16.mxu0 0
    %2935 = vmatpush1.bf16.msra.mxu0 0
    %2936 = vmatprep.subr.bf16.mxu0 0
    %2937 = vmatpush1.bf16.msra.mxu0 0
    %2938 = vmatprep.subr.bf16.mxu0 0
    %2939 = vmatpush1.bf16.msra.mxu0 0
    %2940 = vmatprep.subr.bf16.mxu0 0
    %2941 = vmatpush1.bf16.msra.mxu0 0
    %2942 = vmatprep.subr.bf16.mxu0 0
    %2943 = vmatpush1.bf16.msra.mxu0 0
    %2944 = vmatprep.mubr.bf16.mxu0 0
    %2945 = vmatmul.mubr.bf16.gmra.mrb[0].mxu0 %v2869
    %v2946 = vpop.f32.mrb[0].mxu0
    %v2947 = vadd.f32 0.0, %v2946
    %v2948 = vpop.f32.mrb[0].mxu0
    %v2949 = vadd.f32 0.0, %v2948
    %v2950 = vpop.f32.mrb[0].mxu0
    %v2951 = vpop.f32.mrb[0].mxu0
    %2952 = vdwg.mxu0
    %v2957 = vrot.slane %v2906, 2
    %v2958 = vrot.slane %v2908, 2
    %v2959 = vrot.slane %v2947, 2
    %v2960 = vrot.slane %v2949, 2
    %v2965 = vadd.f32 %v1757, %v2957
    %v2966 = vadd.f32 %v1759, %v2958
    %v2967 = vadd.f32 %v1800, %v2959
    %v2968 = vadd.f32 %v1802, %v2960
    %v2969 = vxor.u32 %v2965, 2147483648
    %v2970 = vxor.u32 %v2966, 2147483648
    %v2971 = vxor.u32 %v2967, 2147483648
    %v2972 = vmul.f32 %v2969, 1.442695
    %v2973 = vpow.pop %v2972
    %v2974 = vmul.f32 %v2970, 1.442695
    %v2975 = vpow.pop %v2974
    %v2976 = vmul.f32 %v2971, 1.442695
    %v2977 = vpow.pop %v2976
    %v2978 = vadd.f32 %v2973, 1.0
    %v2979 = vadd.f32 %v2975, 1.0
    %v2980 = vadd.f32 %v2977, 1.0
    %v2981 = vrcp.pop %v2978
    %v2982 = vmul.f32 1.0, %v2981
    %v2983 = vrcp.pop %v2979
    %v2984 = vmul.f32 1.0, %v2983
    %v2985 = vrcp.pop %v2980
    %v2986 = vmul.f32 1.0, %v2985
    %v2987 = vtanh.pop %v2968
    %v2989 = vrot.slane %v2864, 6
    %v2991 = vmul.f32 %v2984, %v2989
    %v2992 = vmul.f32 %v2982, %v2987
    %v2993 = vadd.f32 %v2991, %v2992
    %v2994 = vtanh.pop %v2993
    %v2995 = vmul.f32 %v2986, %v2994
    %s2996 = scalar_lea.vmem [#allocation13], 2
    %2997 = vst [vmem:[%s2996 - $0x6] sm:$0xc0] %v2995
    %s2998 = scalar_lea.vmem [#allocation14], 2
    %2999 = vst [vmem:[%s2998 - $0x6] sm:$0xc0] %v2993
    // Predicated region
    $region62: #{tpu_custom_call.1} parent=1 // pred_check
      _
    $region63: #{tpu_custom_call.1} parent=1 // pred_check_branch
      %3001 = sbr.rel (0) target = $region65
    $region64: #{tpu_custom_call.1} parent=1 // pred_region
      %s3003 = ssub.s32 64, 64
      %3004 = vsyncadd [#allocation4], %s3003
      %s3005 = sshll.u32 [#allocation13], 4
      %s3006 = int_to_ptr.vmem [resolvable:$true] %s3005
      %3011 = dma.vmem_to_hbm [thread:$0]  %s3006, 64, %s9, [#allocation4], 32, 32, 2
    $region65: #{tpu_custom_call.1} parent=1 // pred_fallthru
      _
    // Predicated region
    $region66: #{tpu_custom_call.1} parent=1 // pred_check
      _
    $region67: #{tpu_custom_call.1} parent=1 // pred_check_branch
      %3013 = sbr.rel (0) target = $region69
    $region68: #{tpu_custom_call.1} parent=1 // pred_region
      %s3015 = ssub.s32 64, 64
      %3016 = vsyncadd [#allocation15], %s3015
      %s3017 = sshll.u32 [#allocation14], 4
      %s3018 = int_to_ptr.vmem [resolvable:$true] %s3017
      %3023 = dma.vmem_to_hbm [thread:$0]  %s3018, 64, %s10, [#allocation15], 32, 32, 2
    $region69: #{tpu_custom_call.1} parent=1 // pred_fallthru
      _
    // Predicated region
    $region70: #{tpu_custom_call.1} parent=1 // pred_check
      _
    $region71: #{tpu_custom_call.1} parent=1 // pred_check_branch
      %3025 = sbr.rel (0) target = $region73
    $region72: #{tpu_custom_call.1} parent=1 // pred_region
      %3026 = dma.done [#allocation4], 64
    $region73: #{tpu_custom_call.1} parent=1 // pred_fallthru
      _
    // Predicated region
    $region74: #{tpu_custom_call.1} parent=1 // pred_check
      _
    $region75: #{tpu_custom_call.1} parent=1 // pred_check_branch
      %3028 = sbr.rel (0) target = $region77
    $region76: #{tpu_custom_call.1} parent=1 // pred_region
      %3029 = dma.done [#allocation15], 64
    $region77: #{tpu_custom_call.1} parent=1 // pred_fallthru
      _
    %3030 = vsyncpa [#allocation3], 1
    %3031 = vsyncpa [#allocation6], 1
    %3032 = vsyncpa [#allocation9], 1
    %3033 = vsyncpa [#allocation12], 1
    %3034 = vsyncpa [#allocation4], 1
    %3035 = vsyncpa [#allocation15], 1

</llo_original>
